<compile_context>
chip_gen: v5e
topology: v5e:2x2
jax: 0.10.0
libtpu: 0.0.40
codegen_flags: <defaults>
</compile_context>

<pallas_src>
import numpy as np
import jax
import jax.numpy as jnp
from jax import lax
from jax.experimental import pallas as pl
from jax.experimental.pallas import tpu as pltpu


# ----------------------------------------------------------------------------
# Host-side glue: everything in DCE.__init__ / _param_to_conc_tcm_SnB that does
# NOT depend on the per-voxel parameter map (deterministic, pure NumPy).
# ----------------------------------------------------------------------------
def _build_dce_constants(sample_time, Cp, sig_baseline, R1, R1CA, FA, TR):
    sample_time = np.squeeze(np.asarray(sample_time)).astype(np.float32)
    Cp = np.asarray(Cp, dtype=np.float32).T.reshape(-1)      # transpose(0,1).view(-1)

    FA_rad = FA * np.pi / 180.0
    E1 = np.exp(-TR * R1)
    topM0 = sig_baseline * (1.0 - np.cos(FA_rad) * E1)
    bottomM0 = np.sin(FA_rad) * (1.0 - E1)
    M0 = topM0 / bottomM0
    M0_trans = M0 * np.sin(FA_rad)
    M_steady = M0_trans * (1.0 - E1) / (1.0 - E1 * np.cos(FA_rad))

    step = 0.1
    t_end = float(sample_time[-1])
    t_samp = np.arange(0.0, t_end + step, step, dtype=np.float32)
    T_fine = len(t_samp)

    # TODO(synk): original uses scipy pchip_interpolate; linear interpolation used here.
    aifci = np.interp(t_samp, sample_time, Cp).astype(np.float32)
    delay = int(3 / step)
    aif_d = np.roll(aifci, delay)
    aif_d[:delay] = 0.0

    # Causal lower-triangular Toeplitz == full fftconvolve truncated to first T_fine samples:
    #   conv[t] = sum_{s<=t} aif_d[t-s] * h[s]
    idx = np.arange(T_fine)
    dmat = idx[:, None] - idx[None, :]
    L = np.where(dmat >= 0, aif_d[np.clip(dmat, 0, None)], 0.0).astype(np.float32)

    # logIdx selection (verbatim port of the python loop in _param_to_conc_tcm_SnB)
    logIdx = np.zeros(T_fine, dtype=bool)
    start_idx = 0
    for i in range(len(sample_time)):
        for j in range(start_idx, T_fine):
            if sample_time[i] <= t_samp[j]:
                logIdx[j] = True
                start_idx = j
                break
    sel = np.flatnonzero(logIdx)
    S = np.zeros((len(sel), T_fine), dtype=np.float32)
    S[np.arange(len(sel)), sel] = 1.0
    LS = (S @ L).astype(np.float32)            # (T_s, T_fine): conv + sub-sampling fused

    consts = dict(
        TR=float(TR), R1=float(R1), R1CA=float(R1CA),
        cos_FA=float(np.cos(FA_rad)),
        M0_trans=float(M0_trans),
        M_steady=float(M_steady),
        sig_baseline=float(sig_baseline),
        step=step,
    )
    return t_samp, LS, consts


def _augment_ls(LS):
    """Append a ones row (fuses the two time-normalization sums into the matmul)
    and zero-pad the time axis for a clean MXU contraction dim.  The ones row is
    zero in the padded time columns."""
    T_s, T_fine = LS.shape
    T_pad = int(np.ceil(T_fine / 128.0)) * 128
    if T_pad > 128:
        # v6e/v7x MXUs are 256-deep on the contraction dim; padded columns are
        # zero in LS so this is free (mildly wasteful on v5e only).
        T_pad = int(np.ceil(T_fine / 256.0)) * 256
    R_pad = int(np.ceil((T_s + 1) / 16.0)) * 16      # bf16 sublane tile = 16
    LS_aug = np.zeros((R_pad, T_pad), dtype=np.float32)
    LS_aug[:T_s, :T_fine] = LS
    LS_aug[T_s, :T_fine] = 1.0
    return LS_aug, T_pad


# ----------------------------------------------------------------------------
# Pallas kernel
# ----------------------------------------------------------------------------
def _make_dce_kernel(consts, T_s, T_pad):
    TR = consts["TR"]; R1 = consts["R1"]; R1CA = consts["R1CA"]
    cos_FA = consts["cos_FA"]; M0_trans = consts["M0_trans"]
    M_steady = consts["M_steady"]; sig_baseline = consts["sig_baseline"]
    step = consts["step"]
    n_blk = T_pad // 8                      # coarse blocks of 8 fine time steps

    def kernel(param_ref, ls_ref, out_ref, ework_ref):
        pm = param_ref[...]                 # (4, TP) f32
        ve = pm[0:1, :]
        vp = pm[1:2, :]
        fp = pm[2:3, :]
        ps = pm[3:4, :]
        TP = pm.shape[1]

        # ---- per-pixel TCM time constants / eigenvalues (all (1, TP)) ----
        inv_fp = 1.0 / fp
        Te = ve / ps
        Tt = (vp + ve) * inv_fp
        Tc = vp * inv_fp
        Te = jnp.where(jnp.isnan(Te), 0.0, Te)
        Tt = jnp.where(jnp.isnan(Tt), 0.0, Tt)
        Tc = jnp.where(jnp.isnan(Tc), 0.0, Tc)

        ssum = Tt + Te
        sq = jnp.sqrt(ssum * ssum - 4.0 * Tc * Te)
        inv_den = 1.0 / (2.0 * Tc * Te)
        th_p = (ssum + sq) * inv_den
        th_m = (ssum - sq) * inv_den
        th_p = jnp.where(jnp.isnan(th_p), 0.0, th_p)
        th_m = jnp.where(jnp.isnan(th_m), 0.0, th_m)

        # Validity guard for degenerate voxels.  In the reference, he/hp carry a
        # factor k = th_p*th_m/(th_p-th_m) that cancels against the time
        # normalization unless it is 0 / inf / NaN, in which case the NaN
        # cleanup zeroes the responses.  Computed here without a divide.
        dth = th_p - th_m
        prod_th = th_p * th_m
        valid = jnp.isfinite(prod_th) & jnp.isfinite(dth) \
                & (prod_th != 0.0) & (dth != 0.0)            # (1, TP) bool

        # Per-pixel coefficients hoisted past the matmul:
        #   hp ∝ A*e_m + B*e_p = A*(e_m - e_p) + (A+B)*e_p,  A+B = Te*(th_p-th_m)
        A = 1.0 - Te * th_m                                   # (1, TP)
        C = Te * dth                                          # (1, TP)  (= A+B)

        # ---- impulse-response exponentials on the fine time grid -----------
        # e[8q + r] = exp(-0.8*q*th) * exp(-0.1*r*th); one fully-packed exp for
        # the coarse factor + one for the fine factor (EUP at full occupancy).
        r_idx = lax.broadcasted_iota(jnp.int32, (8, 1), 0).astype(jnp.float32)
        q_idx = lax.broadcasted_iota(jnp.int32, (n_blk, 1), 0).astype(jnp.float32)
        fine_m = jnp.exp((-step) * r_idx * th_m)              # (8, TP)
        fine_p = jnp.exp((-step) * r_idx * th_p)              # (8, TP)
        coarse_m = jnp.exp((-8.0 * step) * q_idx * th_m)      # (n_blk, TP)
        coarse_p = jnp.exp((-8.0 * step) * q_idx * th_p)      # (n_blk, TP)
        e_m = (coarse_m[:, None, :] * fine_m[None, :, :]).reshape(T_pad, TP)
        e_p = (coarse_p[:, None, :] * fine_p[None, :, :]).reshape(T_pad, TP)

        # Difference taken in f32 BEFORE the bf16 cast (keeps the sensitive
        # e_m - e_p cancellation accurate), then written once into the bf16
        # VMEM scratch that feeds the MXU: columns [0:TP] = D, [TP:2TP] = e_p.
        d_mp = e_m - e_p
        ework_ref[:, 0:TP] = d_mp.astype(ework_ref.dtype)
        ework_ref[:, TP:2 * TP] = e_p.astype(ework_ref.dtype)

        # ---- convolution w/ AIF + sub-sampling + time sums: one bf16 MXU matmul
        res = jnp.dot(ls_ref[...], ework_ref[...],
                      preferred_element_type=jnp.float32)      # (R_pad, 2*TP) f32
        SD = res[0:T_s, 0:TP]                  # LS @ (e_m - e_p) at sample times
        Sp = res[0:T_s, TP:2 * TP]             # LS @ e_p         at sample times
        sumD = res[T_s:T_s + 1, 0:TP]          # sum_t (e_m - e_p)   (ones row)
        sum_p = res[T_s:T_s + 1, TP:2 * TP]    # sum_t e_p           (ones row)

        # normalized tissue responses at the sample times (k cancelled); exact
        # reciprocals on the (1, TP) denominators + isfinite guards.
        ce = SD * (1.0 / sumD)
        cp = (A * SD + C * Sp) * (1.0 / (A * sumD + C * sum_p))
        ce = jnp.where(jnp.isfinite(ce) & valid, ce, 0.0)
        cp = jnp.where(jnp.isfinite(cp) & valid, cp, 0.0)

        conc = vp * cp + ve * ce                               # (T_s, TP)

        # ---- SPGR signal equation ----
        E1CA = jnp.exp((-TR) * (R1 + R1CA * conc))
        CA_trans = M0_trans * (1.0 - E1CA) / (1.0 - E1CA * cos_FA)
        out_ref[...] = (CA_trans + (sig_baseline - M_steady)).astype(out_ref.dtype)

    return kernel


def dce_forward(param, sample_time, Cp, *, sig_baseline=100.0, R1=1.0,
                R1CA=4.3, FA=10.0, TR=0.00487, tile_pixels=1024):
    """Pallas port of DCE.forward. Returns `sig` of shape (T_s, 1, H, W).
    The torch forward also computes ksp = ifft2c(sig) but returns only sig,
    so the ifft2c is skipped."""
    nparam, H, W = param.shape
    assert nparam == 4, "parameter map must be (4, H, W): ve, vp, fp, ps"
    P = H * W

    t_samp, LS, consts = _build_dce_constants(
        sample_time, Cp, sig_baseline, R1, R1CA, FA, TR)
    T_s = LS.shape[0]
    LS_aug, T_pad = _augment_ls(LS)
    R_pad = LS_aug.shape[0]

    # pixel tiling: lane axis, multiple of 128; avoid over-padding tiny images.
    tile_pixels = max(128, (int(tile_pixels) // 128) * 128)
    tile_pixels = min(tile_pixels, int(np.ceil(P / 128.0)) * 128)
    P_pad = int(np.ceil(P / tile_pixels)) * tile_pixels
    param_flat = param.reshape(nparam, P).astype(jnp.float32)
    if P_pad != P:
        # benign strictly-positive padding pixels; their outputs are discarded
        param_flat = jnp.pad(param_flat, ((0, 0), (0, P_pad - P)),
                             constant_values=1.0)

    ls_bf16 = jnp.asarray(LS_aug).astype(jnp.bfloat16)   # bf16 MXU operand

    kernel = _make_dce_kernel(consts, T_s, T_pad)
    sig_flat = pl.pallas_call(
        kernel,
        out_shape=jax.ShapeDtypeStruct((T_s, P_pad), jnp.float32),
        grid_spec=pltpu.PrefetchScalarGridSpec(
            num_scalar_prefetch=0,
            grid=(P_pad // tile_pixels,),
            in_specs=[
                pl.BlockSpec((nparam, tile_pixels), lambda p: (0, p)),
                pl.BlockSpec((R_pad, T_pad), lambda p: (0, 0)),
            ],
            out_specs=pl.BlockSpec((T_s, tile_pixels), lambda p: (0, p)),
            scratch_shapes=[
                pltpu.VMEM((T_pad, 2 * tile_pixels), jnp.bfloat16),
            ]),
        compiler_params=pltpu.CompilerParams(
            dimension_semantics=("parallel",)),   # pixel tiles independent (v7x 2 TCs)
    )(param_flat, ls_bf16)

    return sig_flat[:, :P].reshape(T_s, 1, H, W)


# ----------------------------------------------------------------------------
# Pure-NumPy reference: the ORIGINAL (un-hoisted) math, for a sanity check of
# the algebraic restructuring done in the kernel.
# ----------------------------------------------------------------------------
def dce_forward_reference(param, sample_time, Cp, *, sig_baseline=100.0, R1=1.0,
                          R1CA=4.3, FA=10.0, TR=0.00487):
    t_samp, LS, c = _build_dce_constants(sample_time, Cp, sig_baseline, R1, R1CA, FA, TR)
    t_fine = t_samp.reshape(-1, 1)
    nparam, H, W = param.shape
    pm = np.asarray(param).reshape(nparam, H * W).astype(np.float32)
    ve, vp, fp, ps = pm[0:1], pm[1:2], pm[2:3], pm[3:4]
    Te = ve / ps; Tt = (vp + ve) / fp; Tc = vp / fp
    Te = np.where(np.isnan(Te), 0.0, Te).astype(np.float32)
    Tt = np.where(np.isnan(Tt), 0.0, Tt).astype(np.float32)
    Tc = np.where(np.isnan(Tc), 0.0, Tc).astype(np.float32)
    sq = np.sqrt((Tt + Te) ** 2 - 4.0 * Tc * Te)
    den = 2.0 * Tc * Te
    th_p = np.where(np.isnan((Tt + Te + sq) / den), 0.0, (Tt + Te + sq) / den).astype(np.float32)
    th_m = np.where(np.isnan((Tt + Te - sq) / den), 0.0, (Tt + Te - sq) / den).astype(np.float32)
    e_m = np.exp(-t_fine * th_m); e_p = np.exp(-t_fine * th_p)
    d = th_p - th_m
    he = th_p * th_m * (e_m - e_p) / d
    hp = th_p * th_m * (((1.0 - Te * th_m) * e_m + (Te * th_p - 1.0) * e_p) / d)
    he = he / he.sum(0, keepdims=True); hp = hp / hp.sum(0, keepdims=True)
    he = np.where(np.isnan(he), 0.0, he).astype(np.float32)
    hp = np.where(np.isnan(hp), 0.0, hp).astype(np.float32)
    ce = LS @ he; cp = LS @ hp
    conc = vp * cp + ve * ce
    E1CA = np.exp(-c["TR"] * (c["R1"] + c["R1CA"] * conc))
    CA_trans = c["M0_trans"] * (1.0 - E1CA) / (1.0 - E1CA * c["cos_FA"])
    sig = CA_trans + (c["sig_baseline"] - c["M_steady"])
    return sig.reshape(-1, 1, H, W).astype(np.float32)


if __name__ == "__main__":
    key = jax.random.PRNGKey(0)
    H = W = 64
    # parameter map: (ve, vp, fp, ps) per voxel, strictly positive
    param = jax.random.uniform(key, (4, H, W), dtype=jnp.float32, minval=0.05, maxval=1.0)
    # 8 sample times (minutes) and a plasma (AIF) concentration curve at those times
    sample_time = (np.arange(8, dtype=np.float32) * 1.75).reshape(1, 8)   # last = 12.25
    Cp = np.array([[0.0, 0.6, 3.2, 2.1, 1.6, 1.3, 1.1, 0.95]], dtype=np.float32)

    sig = dce_forward(param, sample_time, Cp)     # grid = 4 pixel tiles of 1024 (even, v7x-friendly)
    sig = jax.block_until_ready(sig)

    ref = dce_forward_reference(param, sample_time, Cp)
    np.testing.assert_allclose(np.asarray(sig), ref, rtol=1e-2, atol=1e-2)

    print("KERNEL_OK")
</pallas_src>

<mosaic_0001>
module attributes {stable_mosaic.version = 11 : i64} {
  func.func @kernel(%arg0: i32, %arg1: memref<4x1024xf32, #tpu.memory_space<vmem>>, %arg2: memref<16x128xbf16, #tpu.memory_space<vmem>>, %arg3: memref<8x1024xf32, #tpu.memory_space<vmem>>, %arg4: memref<128x2048xbf16, #tpu.memory_space<vmem>>) attributes {dimension_semantics = [#tpu.dimension_semantics<parallel>], iteration_bounds = array<i64: 4>, scalar_prefetch = 0 : i64, scratch_operands = 1 : i64, tpu.core_type = #tpu.core_type<tc>, window_params = [{transform_indices = @transform_0, window_bounds = array<i64: 4, 1024>}, {pipeline_mode = #tpu.pipeline_mode<synchronous>, transform_indices = @transform_1, window_bounds = array<i64: 16, 128>}, {transform_indices = @transform_2, window_bounds = array<i64: 8, 1024>}]} {
    %c0 = arith.constant 0 : index
    %c0_0 = arith.constant 0 : index
    %0 = vector.load %arg1[%c0, %c0_0] : memref<4x1024xf32, #tpu.memory_space<vmem>>, vector<4x1024xf32>
    %1 = vector.extract_strided_slice %0 {offsets = [0, 0], sizes = [1, 1024], strides = [1, 1]} : vector<4x1024xf32> to vector<1x1024xf32>
    %2 = vector.extract_strided_slice %0 {offsets = [1, 0], sizes = [1, 1024], strides = [1, 1]} : vector<4x1024xf32> to vector<1x1024xf32>
    %3 = vector.extract_strided_slice %0 {offsets = [2, 0], sizes = [1, 1024], strides = [1, 1]} : vector<4x1024xf32> to vector<1x1024xf32>
    %4 = vector.extract_strided_slice %0 {offsets = [3, 0], sizes = [1, 1024], strides = [1, 1]} : vector<4x1024xf32> to vector<1x1024xf32>
    %cst = arith.constant 1.000000e+00 : f32
    %5 = vector.broadcast %cst : f32 to vector<1x1024xf32>
    %6 = arith.divf %5, %3 : vector<1x1024xf32>
    %7 = arith.divf %1, %4 : vector<1x1024xf32>
    %8 = arith.addf %2, %1 : vector<1x1024xf32>
    %9 = arith.mulf %8, %6 : vector<1x1024xf32>
    %10 = arith.mulf %2, %6 : vector<1x1024xf32>
    %11 = arith.cmpf one, %7, %7 : vector<1x1024xf32>
    %cst_1 = arith.constant 0.000000e+00 : f32
    %12 = vector.broadcast %cst_1 : f32 to vector<1x1024xf32>
    %13 = arith.select %11, %12, %7 : vector<1x1024xi1>, vector<1x1024xf32>
    %14 = arith.cmpf one, %9, %9 : vector<1x1024xf32>
    %cst_2 = arith.constant 0.000000e+00 : f32
    %15 = vector.broadcast %cst_2 : f32 to vector<1x1024xf32>
    %16 = arith.select %14, %15, %9 : vector<1x1024xi1>, vector<1x1024xf32>
    %17 = arith.cmpf one, %10, %10 : vector<1x1024xf32>
    %cst_3 = arith.constant 0.000000e+00 : f32
    %18 = vector.broadcast %cst_3 : f32 to vector<1x1024xf32>
    %19 = arith.select %17, %18, %10 : vector<1x1024xi1>, vector<1x1024xf32>
    %20 = arith.addf %16, %13 : vector<1x1024xf32>
    %21 = arith.mulf %20, %20 : vector<1x1024xf32>
    %cst_4 = arith.constant 4.000000e+00 : f32
    %22 = vector.broadcast %cst_4 : f32 to vector<1x1024xf32>
    %23 = arith.mulf %22, %19 : vector<1x1024xf32>
    %24 = arith.mulf %23, %13 : vector<1x1024xf32>
    %25 = arith.subf %21, %24 : vector<1x1024xf32>
    %26 = math.sqrt %25 : vector<1x1024xf32>
    %cst_5 = arith.constant 2.000000e+00 : f32
    %27 = vector.broadcast %cst_5 : f32 to vector<1x1024xf32>
    %28 = arith.mulf %27, %19 : vector<1x1024xf32>
    %29 = arith.mulf %28, %13 : vector<1x1024xf32>
    %cst_6 = arith.constant 1.000000e+00 : f32
    %30 = vector.broadcast %cst_6 : f32 to vector<1x1024xf32>
    %31 = arith.divf %30, %29 : vector<1x1024xf32>
    %32 = arith.addf %20, %26 : vector<1x1024xf32>
    %33 = arith.mulf %32, %31 : vector<1x1024xf32>
    %34 = arith.subf %20, %26 : vector<1x1024xf32>
    %35 = arith.mulf %34, %31 : vector<1x1024xf32>
    %36 = arith.cmpf one, %33, %33 : vector<1x1024xf32>
    %cst_7 = arith.constant 0.000000e+00 : f32
    %37 = vector.broadcast %cst_7 : f32 to vector<1x1024xf32>
    %38 = arith.select %36, %37, %33 : vector<1x1024xi1>, vector<1x1024xf32>
    %39 = arith.cmpf one, %35, %35 : vector<1x1024xf32>
    %cst_8 = arith.constant 0.000000e+00 : f32
    %40 = vector.broadcast %cst_8 : f32 to vector<1x1024xf32>
    %41 = arith.select %39, %40, %35 : vector<1x1024xi1>, vector<1x1024xf32>
    %42 = arith.subf %38, %41 : vector<1x1024xf32>
    %43 = arith.mulf %38, %41 : vector<1x1024xf32>
    %44 = tpu.weird %43 : vector<1x1024xf32> -> vector<1x1024xi1>
    %cst_9 = arith.constant dense<true> : vector<1x1024xi1>
    %45 = arith.xori %44, %cst_9 : vector<1x1024xi1>
    %46 = tpu.weird %42 : vector<1x1024xf32> -> vector<1x1024xi1>
    %cst_10 = arith.constant dense<true> : vector<1x1024xi1>
    %47 = arith.xori %46, %cst_10 : vector<1x1024xi1>
    %48 = arith.andi %45, %47 : vector<1x1024xi1>
    %cst_11 = arith.constant 0.000000e+00 : f32
    %49 = vector.broadcast %cst_11 : f32 to vector<1x1024xf32>
    %50 = arith.cmpf one, %43, %49 : vector<1x1024xf32>
    %51 = arith.andi %48, %50 : vector<1x1024xi1>
    %cst_12 = arith.constant 0.000000e+00 : f32
    %52 = vector.broadcast %cst_12 : f32 to vector<1x1024xf32>
    %53 = arith.cmpf one, %42, %52 : vector<1x1024xf32>
    %54 = arith.andi %51, %53 : vector<1x1024xi1>
    %55 = arith.mulf %13, %41 : vector<1x1024xf32>
    %cst_13 = arith.constant 1.000000e+00 : f32
    %56 = vector.broadcast %cst_13 : f32 to vector<1x1024xf32>
    %57 = arith.subf %56, %55 : vector<1x1024xf32>
    %58 = arith.mulf %13, %42 : vector<1x1024xf32>
    %59 = tpu.iota {dimensions = array<i32: 0>} : vector<8x1xi32>
    %60 = arith.sitofp %59 : vector<8x1xi32> to vector<8x1xf32>
    %61 = tpu.iota {dimensions = array<i32: 0>} : vector<16x1xi32>
    %62 = arith.sitofp %61 : vector<16x1xi32> to vector<16x1xf32>
    %cst_14 = arith.constant -1.000000e-01 : f32
    %63 = vector.broadcast %cst_14 : f32 to vector<8x1xf32>
    %64 = arith.mulf %63, %60 : vector<8x1xf32>
    %65 = vector.broadcast %64 : vector<8x1xf32> to vector<8x1024xf32>
    %66 = vector.broadcast %41 : vector<1x1024xf32> to vector<8x1024xf32>
    %67 = arith.mulf %65, %66 : vector<8x1024xf32>
    %68 = math.exp %67 : vector<8x1024xf32>
    %cst_15 = arith.constant -1.000000e-01 : f32
    %69 = vector.broadcast %cst_15 : f32 to vector<8x1xf32>
    %70 = arith.mulf %69, %60 : vector<8x1xf32>
    %71 = vector.broadcast %70 : vector<8x1xf32> to vector<8x1024xf32>
    %72 = vector.broadcast %38 : vector<1x1024xf32> to vector<8x1024xf32>
    %73 = arith.mulf %71, %72 : vector<8x1024xf32>
    %74 = math.exp %73 : vector<8x1024xf32>
    %cst_16 = arith.constant -8.000000e-01 : f32
    %75 = vector.broadcast %cst_16 : f32 to vector<16x1xf32>
    %76 = arith.mulf %75, %62 : vector<16x1xf32>
    %77 = vector.broadcast %76 : vector<16x1xf32> to vector<16x1024xf32>
    %78 = vector.broadcast %41 : vector<1x1024xf32> to vector<16x1024xf32>
    %79 = arith.mulf %77, %78 : vector<16x1024xf32>
    %80 = math.exp %79 : vector<16x1024xf32>
    %cst_17 = arith.constant -8.000000e-01 : f32
    %81 = vector.broadcast %cst_17 : f32 to vector<16x1xf32>
    %82 = arith.mulf %81, %62 : vector<16x1xf32>
    %83 = vector.broadcast %82 : vector<16x1xf32> to vector<16x1024xf32>
    %84 = vector.broadcast %38 : vector<1x1024xf32> to vector<16x1024xf32>
    %85 = arith.mulf %83, %84 : vector<16x1024xf32>
    %86 = math.exp %85 : vector<16x1024xf32>
    %87 = vector.shape_cast %80 : vector<16x1024xf32> to vector<16x1x1024xf32>
    %88 = vector.shape_cast %68 : vector<8x1024xf32> to vector<1x8x1024xf32>
    %89 = vector.broadcast %87 : vector<16x1x1024xf32> to vector<16x8x1024xf32>
    %90 = vector.broadcast %88 : vector<1x8x1024xf32> to vector<16x8x1024xf32>
    %91 = arith.mulf %89, %90 : vector<16x8x1024xf32>
    %92 = vector.shape_cast %91 : vector<16x8x1024xf32> to vector<128x1024xf32>
    %93 = vector.shape_cast %86 : vector<16x1024xf32> to vector<16x1x1024xf32>
    %94 = vector.shape_cast %74 : vector<8x1024xf32> to vector<1x8x1024xf32>
    %95 = vector.broadcast %93 : vector<16x1x1024xf32> to vector<16x8x1024xf32>
    %96 = vector.broadcast %94 : vector<1x8x1024xf32> to vector<16x8x1024xf32>
    %97 = arith.mulf %95, %96 : vector<16x8x1024xf32>
    %98 = vector.shape_cast %97 : vector<16x8x1024xf32> to vector<128x1024xf32>
    %99 = arith.subf %92, %98 : vector<128x1024xf32>
    %100 = arith.truncf %99 : vector<128x1024xf32> to vector<128x1024xbf16>
    %c0_18 = arith.constant 0 : index
    %c0_19 = arith.constant 0 : index
    %101 = vector.load %arg4[%c0_18, %c0_19] : memref<128x2048xbf16, #tpu.memory_space<vmem>>, vector<128x1024xbf16>
    tpu.vector_store %arg4[%c0_18, %c0_19], %100 {strides = array<i32>} : memref<128x2048xbf16, #tpu.memory_space<vmem>>, vector<128x1024xbf16>,
    %102 = arith.truncf %98 : vector<128x1024xf32> to vector<128x1024xbf16>
    %c0_20 = arith.constant 0 : index
    %c1024 = arith.constant 1024 : index
    %103 = vector.load %arg4[%c0_20, %c1024] : memref<128x2048xbf16, #tpu.memory_space<vmem>>, vector<128x1024xbf16>
    tpu.vector_store %arg4[%c0_20, %c1024], %102 {strides = array<i32>} : memref<128x2048xbf16, #tpu.memory_space<vmem>>, vector<128x1024xbf16>,
    %c0_21 = arith.constant 0 : index
    %c0_22 = arith.constant 0 : index
    %104 = vector.load %arg2[%c0_21, %c0_22] : memref<16x128xbf16, #tpu.memory_space<vmem>>, vector<16x128xbf16>
    %c0_23 = arith.constant 0 : index
    %c0_24 = arith.constant 0 : index
    %105 = vector.load %arg4[%c0_23, %c0_24] : memref<128x2048xbf16, #tpu.memory_space<vmem>>, vector<128x2048xbf16>
    %cst_25 = arith.constant dense<0.000000e+00> : vector<16x2048xf32>
    %106 = tpu.matmul %104, %105, %cst_25 {dimension_numbers = #tpu.dot_dimension_numbers<[1], [0], [0], [1], [0, 0, 1, 1], [], []>} : vector<16x128xbf16>, vector<128x2048xbf16>, vector<16x2048xf32> -> vector<16x2048xf32>
    %107 = vector.extract_strided_slice %106 {offsets = [0, 0], sizes = [8, 1024], strides = [1, 1]} : vector<16x2048xf32> to vector<8x1024xf32>
    %108 = vector.extract_strided_slice %106 {offsets = [0, 1024], sizes = [8, 1024], strides = [1, 1]} : vector<16x2048xf32> to vector<8x1024xf32>
    %109 = vector.extract_strided_slice %106 {offsets = [8, 0], sizes = [1, 1024], strides = [1, 1]} : vector<16x2048xf32> to vector<1x1024xf32>
    %110 = vector.extract_strided_slice %106 {offsets = [8, 1024], sizes = [1, 1024], strides = [1, 1]} : vector<16x2048xf32> to vector<1x1024xf32>
    %cst_26 = arith.constant 1.000000e+00 : f32
    %111 = vector.broadcast %cst_26 : f32 to vector<1x1024xf32>
    %112 = arith.divf %111, %109 : vector<1x1024xf32>
    %113 = vector.broadcast %112 : vector<1x1024xf32> to vector<8x1024xf32>
    %114 = arith.mulf %107, %113 : vector<8x1024xf32>
    %115 = vector.broadcast %57 : vector<1x1024xf32> to vector<8x1024xf32>
    %116 = arith.mulf %115, %107 : vector<8x1024xf32>
    %117 = vector.broadcast %58 : vector<1x1024xf32> to vector<8x1024xf32>
    %118 = arith.mulf %117, %108 : vector<8x1024xf32>
    %119 = arith.addf %116, %118 : vector<8x1024xf32>
    %120 = arith.mulf %57, %109 : vector<1x1024xf32>
    %121 = arith.mulf %58, %110 : vector<1x1024xf32>
    %122 = arith.addf %120, %121 : vector<1x1024xf32>
    %cst_27 = arith.constant 1.000000e+00 : f32
    %123 = vector.broadcast %cst_27 : f32 to vector<1x1024xf32>
    %124 = arith.divf %123, %122 : vector<1x1024xf32>
    %125 = vector.broadcast %124 : vector<1x1024xf32> to vector<8x1024xf32>
    %126 = arith.mulf %119, %125 : vector<8x1024xf32>
    %127 = tpu.weird %114 : vector<8x1024xf32> -> vector<8x1024xi1>
    %cst_28 = arith.constant dense<true> : vector<8x1024xi1>
    %128 = arith.xori %127, %cst_28 : vector<8x1024xi1>
    %129 = vector.broadcast %54 : vector<1x1024xi1> to vector<8x1024xi1>
    %130 = arith.andi %128, %129 : vector<8x1024xi1>
    %cst_29 = arith.constant 0.000000e+00 : f32
    %131 = vector.broadcast %cst_29 : f32 to vector<8x1024xf32>
    %132 = arith.select %130, %114, %131 : vector<8x1024xi1>, vector<8x1024xf32>
    %133 = tpu.weird %126 : vector<8x1024xf32> -> vector<8x1024xi1>
    %cst_30 = arith.constant dense<true> : vector<8x1024xi1>
    %134 = arith.xori %133, %cst_30 : vector<8x1024xi1>
    %135 = vector.broadcast %54 : vector<1x1024xi1> to vector<8x1024xi1>
    %136 = arith.andi %134, %135 : vector<8x1024xi1>
    %cst_31 = arith.constant 0.000000e+00 : f32
    %137 = vector.broadcast %cst_31 : f32 to vector<8x1024xf32>
    %138 = arith.select %136, %126, %137 : vector<8x1024xi1>, vector<8x1024xf32>
    %139 = vector.broadcast %2 : vector<1x1024xf32> to vector<8x1024xf32>
    %140 = arith.mulf %139, %138 : vector<8x1024xf32>
    %141 = vector.broadcast %1 : vector<1x1024xf32> to vector<8x1024xf32>
    %142 = arith.mulf %141, %132 : vector<8x1024xf32>
    %143 = arith.addf %140, %142 : vector<8x1024xf32>
    %cst_32 = arith.constant 4.300000e+00 : f32
    %144 = vector.broadcast %cst_32 : f32 to vector<8x1024xf32>
    %145 = arith.mulf %144, %143 : vector<8x1024xf32>
    %cst_33 = arith.constant 1.000000e+00 : f32
    %146 = vector.broadcast %cst_33 : f32 to vector<8x1024xf32>
    %147 = arith.addf %146, %145 : vector<8x1024xf32>
    %cst_34 = arith.constant -4.870000e-03 : f32
    %148 = vector.broadcast %cst_34 : f32 to vector<8x1024xf32>
    %149 = arith.mulf %148, %147 : vector<8x1024xf32>
    %150 = math.exp %149 : vector<8x1024xf32>
    %cst_35 = arith.constant 1.000000e+00 : f32
    %151 = vector.broadcast %cst_35 : f32 to vector<8x1024xf32>
    %152 = arith.subf %151, %150 : vector<8x1024xf32>
    %cst_36 = arith.constant 411.196808 : f32
    %153 = vector.broadcast %cst_36 : f32 to vector<8x1024xf32>
    %154 = arith.mulf %153, %152 : vector<8x1024xf32>
    %cst_37 = arith.constant 0.984807729 : f32
    %155 = vector.broadcast %cst_37 : f32 to vector<8x1024xf32>
    %156 = arith.mulf %150, %155 : vector<8x1024xf32>
    %cst_38 = arith.constant 1.000000e+00 : f32
    %157 = vector.broadcast %cst_38 : f32 to vector<8x1024xf32>
    %158 = arith.subf %157, %156 : vector<8x1024xf32>
    %159 = arith.divf %154, %158 : vector<8x1024xf32>
    %cst_39 = arith.constant 1.42108547E-14 : f32
    %160 = vector.broadcast %cst_39 : f32 to vector<8x1024xf32>
    %161 = arith.addf %159, %160 : vector<8x1024xf32>
    %c0_40 = arith.constant 0 : index
    %c0_41 = arith.constant 0 : index
    %162 = vector.load %arg3[%c0_40, %c0_41] : memref<8x1024xf32, #tpu.memory_space<vmem>>, vector<8x1024xf32>
    tpu.vector_store %arg3[%c0_40, %c0_41], %161 {strides = array<i32>} : memref<8x1024xf32, #tpu.memory_space<vmem>>, vector<8x1024xf32>,
    return
  }
  func.func @transform_0(%arg0: i32) -> (i32, i32) {
    %c0_i32 = arith.constant 0 : i32
    %c0_i32_0 = arith.constant 0 : i32
    return %c0_i32, %arg0 : i32, i32
  }
  func.func @transform_1(%arg0: i32) -> (i32, i32) {
    %c0_i32 = arith.constant 0 : i32
    %c0_i32_0 = arith.constant 0 : i32
    %c0_i32_1 = arith.constant 0 : i32
    return %c0_i32, %c0_i32_0 : i32, i32
  }
  func.func @transform_2(%arg0: i32) -> (i32, i32) {
    %c0_i32 = arith.constant 0 : i32
    %c0_i32_0 = arith.constant 0 : i32
    return %c0_i32, %arg0 : i32, i32
  }
}

</mosaic_0001>

<llo_original>
// kernel: tpu_custom_call.1
$region0: #{tpu_custom_call.1}
  #allocation0 [shape = 'u32[]', space=smem, size = 0x4, offset = 0x4, fixed_abs, tag = 'smem constant byte address 0x4 - core index']
  #allocation1 [shape = 'u32[72,128]{1,0:T(1,128)}', space=vmem, size = 0x9000, scoped, tag = 'internal scratch']
  #allocation2 [shape = 'bf16[128,2048]{1,0:T(8,128)(2,1)}', space=vmem, size = 0x80000, scoped, tag = 'scratch operand']
  %s0 = inlined_call_operand.hbm [shape: f32[4,4096], index: 0, kind: input, shape index: {}]
  %s1 = inlined_call_operand.hbm [shape: bf16[16,128], index: 1, kind: input, shape index: {}]
  %s2 = inlined_call_operand.hbm [shape: f32[8,4096], index: 2, kind: output, shape index: {}]
  %s3 = sld [smem:[#allocation0]]
  $region49: #{tpu_custom_call.1} parent=0
    _
  %s5 = ssub.s32 1, %s3
  %s6 = scalar_select 0, %s5, %s3
  $region1: #{tpu_custom_call.1} parent=0
    #allocation3 [shape = 'u8[32768]{0}', space=vmem, size = 0x8000, scoped, tag = 'input window, operand 0']
    #allocation4 [shape = 's32[2]{0}', space=sflag, size = 0x8, scoped, tag = 'scoped memory for tpu_custom_call.1']
    #allocation5 [shape = 's32[2]{0}', space=sflag, size = 0x8, scoped, tag = 'scoped memory for tpu_custom_call.1']
    #allocation6 [shape = 'u8[4096]{0}', space=vmem, size = 0x1000, scoped, tag = 'input window, operand 1, single buffered']
    #allocation7 [shape = 's32[1]{0}', space=sflag, size = 0x4, scoped, tag = 'scoped memory for tpu_custom_call.1']
    #allocation8 [shape = 'u8[65536]{0}', space=vmem, size = 0x10000, scoped, tag = 'output window, operand 0']
    %7 = vsyncpa [#allocation4], 0
    %s8 = scalar_lea.sflag [#allocation4], 1
    %9 = vsyncpa %s8, 0
    %10 = vsyncpa [#allocation7], 0
    %11 = vsyncpa [#allocation5], 0
    %s12 = scalar_lea.sflag [#allocation5], 1
    %13 = vsyncpa %s12, 0
    loop: start=0, step=1, limit=6
    $region2: #{tpu_custom_call.1} parent=1 // loop_pre_header
      _
    $region3: #{tpu_custom_call.1} parent=1 // loop_header
      %s15 = sphi 0, %s19
      %p16 = scmp.ge.s32.totalorder %s15, 6
      %s25 = sphi 0, %s27
      %s28 = sphi 0, %s25
      %s29 = sphi 0, %s28
      %s45 = sphi 0, %s29
      %s49 = sphi 0, %s49
      %s51 = sphi 0, %s49
      %s52 = sphi 0, %s51
      %s66 = sphi 0, %s52
      %s72 = sphi 0, %s74
      %s75 = sphi 0, %s72
      %s76 = sphi 0, %s75
      %s92 = sphi 0, %s76
    $region4: #{tpu_custom_call.1} parent=1 // loop_header_branch
      %18 = sbr.rel (%p16) target = $region8
    $region5: #{tpu_custom_call.1} parent=1 // loop_body
      %s20 = ssub.s32 %s15, 1
      %s21 = ssub.s32 %s15, 2
      %s22 = sadd.s32 %s15, 1
      %s23 = ssub.s32 %s15, %s22
      %p24 = scmp.eq.s32.totalorder %s23, 0
      %s26 = sadd.s32 %s25, 1
      %s27 = scalar_select %p24, %s25, %s26
      %p30 = pneg %p24
      %p31 = scmp.eq.s32.totalorder %s15, 3
      %p32 = por %p30, %p31
      %p33 = scmp.ne.s32.totalorder %s25, %s28
      %p34 = scmp.eq.s32.totalorder %s15, 0
      %p35 = por %p33, %p34
      %p36 = scmp.ne.s32.totalorder %s25, %s28
      %p37 = scmp.eq.s32.totalorder %s20, 3
      %p38 = por %p36, %p37
      %p39 = scmp.ne.s32.totalorder %s28, %s29
      %p40 = scmp.eq.s32.totalorder %s20, 0
      %p41 = por %p39, %p40
      %p42 = scmp.ne.s32.totalorder %s28, %s29
      %p43 = scmp.eq.s32.totalorder %s21, 3
      %p44 = por %p42, %p43
      %p46 = scmp.ne.s32.totalorder %s29, %s45
      %p47 = scmp.eq.s32.totalorder %s21, 0
      %p48 = por %p46, %p47
      %s50 = sadd.s32 %s49, 1
      %p53 = scmp.eq.s32.totalorder %s15, 3
      %p54 = scmp.ne.s32.totalorder %s49, %s51
      %p55 = scmp.eq.s32.totalorder %s15, 0
      %p56 = por %p54, %p55
      %p57 = scmp.ne.s32.totalorder %s49, %s51
      %p58 = scmp.eq.s32.totalorder %s20, 3
      %p59 = por %p57, %p58
      %p60 = scmp.ne.s32.totalorder %s51, %s52
      %p61 = scmp.eq.s32.totalorder %s20, 0
      %p62 = por %p60, %p61
      %p63 = scmp.ne.s32.totalorder %s51, %s52
      %p64 = scmp.eq.s32.totalorder %s21, 3
      %p65 = por %p63, %p64
      %p67 = scmp.ne.s32.totalorder %s52, %s66
      %p68 = scmp.eq.s32.totalorder %s21, 0
      %p69 = por %p67, %p68
      %s70 = ssub.s32 %s15, %s22
      %p71 = scmp.eq.s32.totalorder %s70, 0
      %s73 = sadd.s32 %s72, 1
      %s74 = scalar_select %p71, %s72, %s73
      %p77 = pneg %p71
      %p78 = scmp.eq.s32.totalorder %s15, 3
      %p79 = por %p77, %p78
      %p80 = scmp.ne.s32.totalorder %s72, %s75
      %p81 = scmp.eq.s32.totalorder %s15, 0
      %p82 = por %p80, %p81
      %p83 = scmp.ne.s32.totalorder %s72, %s75
      %p84 = scmp.eq.s32.totalorder %s20, 3
      %p85 = por %p83, %p84
      %p86 = scmp.ne.s32.totalorder %s75, %s76
      %p87 = scmp.eq.s32.totalorder %s20, 0
      %p88 = por %p86, %p87
      %p89 = scmp.ne.s32.totalorder %s75, %s76
      %p90 = scmp.eq.s32.totalorder %s21, 3
      %p91 = por %p89, %p90
      %p93 = scmp.ne.s32.totalorder %s76, %s92
      %p94 = scmp.eq.s32.totalorder %s21, 0
      %p95 = por %p93, %p94
      %p96 = scmp.le.s32.totalorder 1, %s15
      %p97 = scmp.lt.s32.totalorder %s15, 5
      %p98 = pnand %p96, %p97
      %p99 = pneg %p98
      // Predicated region
      $region9: #{tpu_custom_call.1} parent=5 // pred_check
        _
      $region10: #{tpu_custom_call.1} parent=5 // pred_check_branch
        %101 = sbr.rel (%p98) target = $region12
      $region11: #{tpu_custom_call.1} parent=5 // pred_region
        %s102 = ssub.s32 %s15, 1
        // Predicated region
        $region13: #{tpu_custom_call.1} parent=11 // pred_check
          %p103 = pneg %p62
        $region14: #{tpu_custom_call.1} parent=11 // pred_check_branch
          %105 = sbr.rel (%p103) target = $region16
        $region15: #{tpu_custom_call.1} parent=11 // pred_region
          %107 = vsyncadd [#allocation7], 0
          %s108 = sshll.u32 %s1, 4
          %s109 = int_to_ptr.hbm [resolvable:$true] %s108
          %s110 = sshll.u32 [#allocation6], 4
          %s111 = int_to_ptr.vmem [resolvable:$true] %s110
          %116 = dma.hbm_to_vmem [thread:$0]  %s109, 128, %s111, [#allocation7], 64, 64, 4
        $region16: #{tpu_custom_call.1} parent=11 // pred_fallthru
          _
      $region12: #{tpu_custom_call.1} parent=5 // pred_fallthru
        _
      %p117 = scmp.lt.s32.totalorder %s15, 4
      // Predicated region
      $region17: #{tpu_custom_call.1} parent=5 // pred_check
        %p118 = pneg %p117
      $region18: #{tpu_custom_call.1} parent=5 // pred_check_branch
        %120 = sbr.rel (%p118) target = $region20
      $region19: #{tpu_custom_call.1} parent=5 // pred_region
        // Predicated region
        $region21: #{tpu_custom_call.1} parent=19 // pred_check
          %p121 = pneg %p35
        $region22: #{tpu_custom_call.1} parent=19 // pred_check_branch
          %123 = sbr.rel (%p121) target = $region24
        $region23: #{tpu_custom_call.1} parent=19 // pred_region
          %s124 = sand.u32 %s25, 1
          %s125 = scalar_lea.sflag [#allocation4], %s124
          %s126 = sand.u32 %s25, 1
          %s127 = smul.addr %s126, 32
          %s128 = scalar_lea.vmem [#allocation3], %s127
          %s129 = smul.u32 8, %s15
          %131 = vsyncadd %s125, 0
          %s132 = smul.addr %s129, 4
          %s133 = scalar_lea.hbm %s0, %s132
          %s135 = sshll.u32 %s133, 4
          %s136 = int_to_ptr.hbm [resolvable:$true] %s135
          %s137 = sshll.u32 %s128, 4
          %s138 = int_to_ptr.vmem [resolvable:$true] %s137
          %140 = dma.hbm_to_vmem [thread:$0]  %s136, 512, %s138, %s125
        $region24: #{tpu_custom_call.1} parent=19 // pred_fallthru
          _
      $region20: #{tpu_custom_call.1} parent=5 // pred_fallthru
        _
      %p141 = scmp.le.s32.totalorder 1, %s15
      %p142 = scmp.lt.s32.totalorder %s15, 5
      %p143 = pnand %p141, %p142
      %p144 = pneg %p143
      // Predicated region
      $region25: #{tpu_custom_call.1} parent=5 // pred_check
        _
      $region26: #{tpu_custom_call.1} parent=5 // pred_check_branch
        %146 = sbr.rel (%p143) target = $region28
      $region27: #{tpu_custom_call.1} parent=5 // pred_region
        %s147 = ssub.s32 %s15, 1
        %s148 = sand.u32 %s28, 1
        %s149 = scalar_lea.sflag [#allocation4], %s148
        %s150 = sand.u32 %s28, 1
        %s151 = smul.addr %s150, 32
        %s152 = scalar_lea.vmem [#allocation3], %s151
        // Predicated region
        $region29: #{tpu_custom_call.1} parent=27 // pred_check
          %p153 = pneg %p41
        $region30: #{tpu_custom_call.1} parent=27 // pred_check_branch
          %155 = sbr.rel (%p153) target = $region32
        $region31: #{tpu_custom_call.1} parent=27 // pred_region
          %157 = dma.done %s149, 512
        $region32: #{tpu_custom_call.1} parent=27 // pred_fallthru
          _
        // Predicated region
        $region33: #{tpu_custom_call.1} parent=27 // pred_check
          %p158 = pneg %p62
        $region34: #{tpu_custom_call.1} parent=27 // pred_check_branch
          %160 = sbr.rel (%p158) target = $region36
        $region35: #{tpu_custom_call.1} parent=27 // pred_region
          %162 = dma.done [#allocation7], 128
        $region36: #{tpu_custom_call.1} parent=27 // pred_fallthru
          _
        %s163 = sand.u32 %s28, 1
        %s164 = scalar_lea.sflag [#allocation4], %s163
        %s165 = sand.u32 %s28, 1
        %s166 = smul.addr %s165, 32
        %s167 = scalar_lea.vmem [#allocation3], %s166
        %p168 = pneg %p41
        %p169 = pneg %p38
        %p170 = pneg %p62
        %p171 = pneg %p59
        %p172 = pneg %p88
        %p173 = pneg %p85
        %s174 = sand.u32 %s75, 1
        %s175 = scalar_lea.sflag [#allocation5], %s174
        %s176 = sand.u32 %s75, 1
        %s177 = smul.addr %s176, 64
        %s178 = scalar_lea.vmem [#allocation8], %s177
        %s179 = smul.u32 8, %s20
        %s180 = smul.u32 8, %s20
        %v181 = vld [vmem:[%s152] sm:$0xff]
        %v182 = vld [vmem:[%s152 + $0x8] sm:$0xff]
        %v183 = vld [vmem:[%s152 + $0x10] sm:$0xff]
        %v184 = vld [vmem:[%s152 + $0x18] sm:$0xff]
        %v185 = vrcp.pop %v181
        %v186 = vmul.f32 %v181, %v185
        %v187 = vsub.f32 1.0, %v186
        %v188 = vmul.f32 %v185, %v187
        %v189 = vadd.f32 %v185, %v188
        %vm190 = vweird.f32 %v181
        %vm191 = vweird.f32 %v185
        %vm192 = vmor %vm190, %vm191
        %v193 = vsel %vm192, %v185, %v189
        %v194 = vand.u32 2147483647, %v181
        %vm195 = vcmp.eq.f32.partialorder %v194, 8.507059e+37
        %v196 = vand.u32 %v181, 2147483648
        %v197 = vor.u32 1.1754944e-38, %v196
        %v198 = vsel %vm195, %v197, %v193
        %v199 = vmul.f32 1.0, %v198
        %v200 = vrcp.pop %v182
        %v201 = vmul.f32 %v182, %v200
        %v202 = vsub.f32 1.0, %v201
        %v203 = vmul.f32 %v200, %v202
        %v204 = vadd.f32 %v200, %v203
        %vm205 = vweird.f32 %v182
        %vm206 = vweird.f32 %v200
        %vm207 = vmor %vm205, %vm206
        %v208 = vsel %vm207, %v200, %v204
        %v209 = vand.u32 2147483647, %v182
        %vm210 = vcmp.eq.f32.partialorder %v209, 8.507059e+37
        %v211 = vand.u32 %v182, 2147483648
        %v212 = vor.u32 1.1754944e-38, %v211
        %v213 = vsel %vm210, %v212, %v208
        %v214 = vmul.f32 1.0, %v213
        %v215 = vrcp.pop %v183
        %v216 = vmul.f32 %v183, %v215
        %v217 = vsub.f32 1.0, %v216
        %v218 = vmul.f32 %v215, %v217
        %v219 = vadd.f32 %v215, %v218
        %vm220 = vweird.f32 %v183
        %vm221 = vweird.f32 %v215
        %vm222 = vmor %vm220, %vm221
        %v223 = vsel %vm222, %v215, %v219
        %v224 = vand.u32 2147483647, %v183
        %vm225 = vcmp.eq.f32.partialorder %v224, 8.507059e+37
        %v226 = vand.u32 %v183, 2147483648
        %v227 = vor.u32 1.1754944e-38, %v226
        %v228 = vsel %vm225, %v227, %v223
        %v229 = vmul.f32 1.0, %v228
        %v230 = vrcp.pop %v184
        %v231 = vmul.f32 %v184, %v230
        %v232 = vsub.f32 1.0, %v231
        %v233 = vmul.f32 %v230, %v232
        %v234 = vadd.f32 %v230, %v233
        %vm235 = vweird.f32 %v184
        %vm236 = vweird.f32 %v230
        %vm237 = vmor %vm235, %vm236
        %v238 = vsel %vm237, %v230, %v234
        %v239 = vand.u32 2147483647, %v184
        %vm240 = vcmp.eq.f32.partialorder %v239, 8.507059e+37
        %v241 = vand.u32 %v184, 2147483648
        %v242 = vor.u32 1.1754944e-38, %v241
        %v243 = vsel %vm240, %v242, %v238
        %v244 = vmul.f32 1.0, %v243
        %v249 = vrot.slane %v181, 7
        %v250 = vrot.slane %v249, 4
        %v251 = vrot.slane %v182, 7
        %v252 = vrot.slane %v251, 4
        %v253 = vrot.slane %v183, 7
        %v254 = vrot.slane %v253, 4
        %v255 = vrot.slane %v184, 7
        %v256 = vrot.slane %v255, 4
        %v261 = vrcp.pop %v250
        %v262 = vmul.f32 %v250, %v261
        %v263 = vsub.f32 1.0, %v262
        %v264 = vmul.f32 %v261, %v263
        %v265 = vadd.f32 %v261, %v264
        %vm266 = vweird.f32 %v250
        %vm267 = vweird.f32 %v261
        %vm268 = vmor %vm266, %vm267
        %v269 = vsel %vm268, %v261, %v265
        %v270 = vand.u32 2147483647, %v250
        %vm271 = vcmp.eq.f32.partialorder %v270, 8.507059e+37
        %v272 = vand.u32 %v250, 2147483648
        %v273 = vor.u32 1.1754944e-38, %v272
        %v274 = vsel %vm271, %v273, %v269
        %v275 = vmul.f32 %v181, %v274
        %v276 = vrcp.pop %v252
        %v277 = vmul.f32 %v252, %v276
        %v278 = vsub.f32 1.0, %v277
        %v279 = vmul.f32 %v276, %v278
        %v280 = vadd.f32 %v276, %v279
        %vm281 = vweird.f32 %v252
        %vm282 = vweird.f32 %v276
        %vm283 = vmor %vm281, %vm282
        %v284 = vsel %vm283, %v276, %v280
        %v285 = vand.u32 2147483647, %v252
        %vm286 = vcmp.eq.f32.partialorder %v285, 8.507059e+37
        %v287 = vand.u32 %v252, 2147483648
        %v288 = vor.u32 1.1754944e-38, %v287
        %v289 = vsel %vm286, %v288, %v284
        %v290 = vmul.f32 %v182, %v289
        %v291 = vrcp.pop %v254
        %v292 = vmul.f32 %v254, %v291
        %v293 = vsub.f32 1.0, %v292
        %v294 = vmul.f32 %v291, %v293
        %v295 = vadd.f32 %v291, %v294
        %vm296 = vweird.f32 %v254
        %vm297 = vweird.f32 %v291
        %vm298 = vmor %vm296, %vm297
        %v299 = vsel %vm298, %v291, %v295
        %v300 = vand.u32 2147483647, %v254
        %vm301 = vcmp.eq.f32.partialorder %v300, 8.507059e+37
        %v302 = vand.u32 %v254, 2147483648
        %v303 = vor.u32 1.1754944e-38, %v302
        %v304 = vsel %vm301, %v303, %v299
        %v305 = vmul.f32 %v183, %v304
        %v306 = vrcp.pop %v256
        %v307 = vmul.f32 %v256, %v306
        %v308 = vsub.f32 1.0, %v307
        %v309 = vmul.f32 %v306, %v308
        %v310 = vadd.f32 %v306, %v309
        %vm311 = vweird.f32 %v256
        %vm312 = vweird.f32 %v306
        %vm313 = vmor %vm311, %vm312
        %v314 = vsel %vm313, %v306, %v310
        %v315 = vand.u32 2147483647, %v256
        %vm316 = vcmp.eq.f32.partialorder %v315, 8.507059e+37
        %v317 = vand.u32 %v256, 2147483648
        %v318 = vor.u32 1.1754944e-38, %v317
        %v319 = vsel %vm316, %v318, %v314
        %v320 = vmul.f32 %v184, %v319
        %v325 = vadd.f32 %v181, %v249
        %v326 = vadd.f32 %v182, %v251
        %v327 = vadd.f32 %v183, %v253
        %v328 = vadd.f32 %v184, %v255
        %v333 = vrot.slane %v199, 5
        %v334 = vrot.slane %v333, 4
        %v335 = vrot.slane %v214, 5
        %v336 = vrot.slane %v335, 4
        %v337 = vrot.slane %v229, 5
        %v338 = vrot.slane %v337, 4
        %v339 = vrot.slane %v244, 5
        %v340 = vrot.slane %v339, 4
        %v345 = vmul.f32 %v325, %v334
        %v346 = vmul.f32 %v326, %v336
        %v347 = vmul.f32 %v327, %v338
        %v348 = vmul.f32 %v328, %v340
        %v349 = vmul.f32 %v181, %v334
        %v350 = vmul.f32 %v182, %v336
        %v351 = vmul.f32 %v183, %v338
        %v352 = vmul.f32 %v184, %v340
        %vm353 = vcmp.ne.f32.partialorder %v275, %v275
        %vm354 = vcmp.ne.f32.partialorder %v290, %v290
        %vm355 = vcmp.ne.f32.partialorder %v305, %v305
        %vm356 = vcmp.ne.f32.partialorder %v320, %v320
        %v357 = vsel %vm353, 0.0, %v275
        %v358 = vsel %vm354, 0.0, %v290
        %v359 = vsel %vm355, 0.0, %v305
        %v360 = vsel %vm356, 0.0, %v320
        %vm361 = vcmp.ne.f32.partialorder %v345, %v345
        %vm362 = vcmp.ne.f32.partialorder %v346, %v346
        %vm363 = vcmp.ne.f32.partialorder %v347, %v347
        %vm364 = vcmp.ne.f32.partialorder %v348, %v348
        %v365 = vsel %vm361, 0.0, %v345
        %v366 = vsel %vm362, 0.0, %v346
        %v367 = vsel %vm363, 0.0, %v347
        %v368 = vsel %vm364, 0.0, %v348
        %vm369 = vcmp.ne.f32.partialorder %v349, %v349
        %vm370 = vcmp.ne.f32.partialorder %v350, %v350
        %vm371 = vcmp.ne.f32.partialorder %v351, %v351
        %vm372 = vcmp.ne.f32.partialorder %v352, %v352
        %v373 = vsel %vm369, 0.0, %v349
        %v374 = vsel %vm370, 0.0, %v350
        %v375 = vsel %vm371, 0.0, %v351
        %v376 = vsel %vm372, 0.0, %v352
        %v381 = vrot.slane %v357, 7
        %v382 = vrot.slane %v358, 7
        %v383 = vrot.slane %v359, 7
        %v384 = vrot.slane %v360, 7
        %v389 = vadd.f32 %v365, %v381
        %v390 = vadd.f32 %v366, %v382
        %v391 = vadd.f32 %v367, %v383
        %v392 = vadd.f32 %v368, %v384
        %v393 = vmul.f32 %v389, %v389
        %v394 = vmul.f32 %v390, %v390
        %v395 = vmul.f32 %v391, %v391
        %v396 = vmul.f32 %v392, %v392
        %v397 = vmul.f32 %v373, 4.0
        %v398 = vmul.f32 %v374, 4.0
        %v399 = vmul.f32 %v375, 4.0
        %v400 = vmul.f32 %v376, 4.0
        %v401 = vmul.f32 %v397, %v381
        %v402 = vmul.f32 %v398, %v382
        %v403 = vmul.f32 %v399, %v383
        %v404 = vmul.f32 %v400, %v384
        %v405 = vsub.f32 %v393, %v401
        %v406 = vsub.f32 %v394, %v402
        %v407 = vsub.f32 %v395, %v403
        %v408 = vsub.f32 %v396, %v404
        %v409 = vrsqrt.pop %v405
        %v410 = vmul.f32 %v409, %v405
        %v411 = vmul.f32 %v410, %v409
        %v412 = vmul.f32 0.5, %v411
        %v413 = vsub.f32 1.5, %v412
        %v414 = vmul.f32 %v409, %v413
        %v415 = vmul.f32 %v405, %v414
        %vm416 = vcmp.eq.f32.partialorder %v405, inf
        %v417 = vsel %vm416, %v405, %v415
        %vm418 = vcmp.eq.f32.partialorder %v405, 0.0
        %v419 = vand.u32 %v405, 2147483648
        %v420 = vsel %vm418, %v419, %v417
        %v421 = vrsqrt.pop %v406
        %v422 = vmul.f32 %v421, %v406
        %v423 = vmul.f32 %v422, %v421
        %v424 = vmul.f32 0.5, %v423
        %v425 = vsub.f32 1.5, %v424
        %v426 = vmul.f32 %v421, %v425
        %v427 = vmul.f32 %v406, %v426
        %vm428 = vcmp.eq.f32.partialorder %v406, inf
        %v429 = vsel %vm428, %v406, %v427
        %vm430 = vcmp.eq.f32.partialorder %v406, 0.0
        %v431 = vand.u32 %v406, 2147483648
        %v432 = vsel %vm430, %v431, %v429
        %v433 = vrsqrt.pop %v407
        %v434 = vmul.f32 %v433, %v407
        %v435 = vmul.f32 %v434, %v433
        %v436 = vmul.f32 0.5, %v435
        %v437 = vsub.f32 1.5, %v436
        %v438 = vmul.f32 %v433, %v437
        %v439 = vmul.f32 %v407, %v438
        %vm440 = vcmp.eq.f32.partialorder %v407, inf
        %v441 = vsel %vm440, %v407, %v439
        %vm442 = vcmp.eq.f32.partialorder %v407, 0.0
        %v443 = vand.u32 %v407, 2147483648
        %v444 = vsel %vm442, %v443, %v441
        %v445 = vrsqrt.pop %v408
        %v446 = vmul.f32 %v445, %v408
        %v447 = vmul.f32 %v446, %v445
        %v448 = vmul.f32 0.5, %v447
        %v449 = vsub.f32 1.5, %v448
        %v450 = vmul.f32 %v445, %v449
        %v451 = vmul.f32 %v408, %v450
        %vm452 = vcmp.eq.f32.partialorder %v408, inf
        %v453 = vsel %vm452, %v408, %v451
        %vm454 = vcmp.eq.f32.partialorder %v408, 0.0
        %v455 = vand.u32 %v408, 2147483648
        %v456 = vsel %vm454, %v455, %v453
        %v457 = vmul.f32 %v373, 2.0
        %v458 = vmul.f32 %v374, 2.0
        %v459 = vmul.f32 %v375, 2.0
        %v460 = vmul.f32 %v376, 2.0
        %v461 = vmul.f32 %v457, %v381
        %v462 = vmul.f32 %v458, %v382
        %v463 = vmul.f32 %v459, %v383
        %v464 = vmul.f32 %v460, %v384
        %v465 = vrcp.pop %v461
        %v466 = vmul.f32 %v461, %v465
        %v467 = vsub.f32 1.0, %v466
        %v468 = vmul.f32 %v465, %v467
        %v469 = vadd.f32 %v465, %v468
        %vm470 = vweird.f32 %v461
        %vm471 = vweird.f32 %v465
        %vm472 = vmor %vm470, %vm471
        %v473 = vsel %vm472, %v465, %v469
        %v474 = vand.u32 2147483647, %v461
        %vm475 = vcmp.eq.f32.partialorder %v474, 8.507059e+37
        %v476 = vand.u32 %v461, 2147483648
        %v477 = vor.u32 1.1754944e-38, %v476
        %v478 = vsel %vm475, %v477, %v473
        %v479 = vmul.f32 1.0, %v478
        %v480 = vrcp.pop %v462
        %v481 = vmul.f32 %v462, %v480
        %v482 = vsub.f32 1.0, %v481
        %v483 = vmul.f32 %v480, %v482
        %v484 = vadd.f32 %v480, %v483
        %vm485 = vweird.f32 %v462
        %vm486 = vweird.f32 %v480
        %vm487 = vmor %vm485, %vm486
        %v488 = vsel %vm487, %v480, %v484
        %v489 = vand.u32 2147483647, %v462
        %vm490 = vcmp.eq.f32.partialorder %v489, 8.507059e+37
        %v491 = vand.u32 %v462, 2147483648
        %v492 = vor.u32 1.1754944e-38, %v491
        %v493 = vsel %vm490, %v492, %v488
        %v494 = vmul.f32 1.0, %v493
        %v495 = vrcp.pop %v463
        %v496 = vmul.f32 %v463, %v495
        %v497 = vsub.f32 1.0, %v496
        %v498 = vmul.f32 %v495, %v497
        %v499 = vadd.f32 %v495, %v498
        %vm500 = vweird.f32 %v463
        %vm501 = vweird.f32 %v495
        %vm502 = vmor %vm500, %vm501
        %v503 = vsel %vm502, %v495, %v499
        %v504 = vand.u32 2147483647, %v463
        %vm505 = vcmp.eq.f32.partialorder %v504, 8.507059e+37
        %v506 = vand.u32 %v463, 2147483648
        %v507 = vor.u32 1.1754944e-38, %v506
        %v508 = vsel %vm505, %v507, %v503
        %v509 = vmul.f32 1.0, %v508
        %v510 = vrcp.pop %v464
        %v511 = vmul.f32 %v464, %v510
        %v512 = vsub.f32 1.0, %v511
        %v513 = vmul.f32 %v510, %v512
        %v514 = vadd.f32 %v510, %v513
        %vm515 = vweird.f32 %v464
        %vm516 = vweird.f32 %v510
        %vm517 = vmor %vm515, %vm516
        %v518 = vsel %vm517, %v510, %v514
        %v519 = vand.u32 2147483647, %v464
        %vm520 = vcmp.eq.f32.partialorder %v519, 8.507059e+37
        %v521 = vand.u32 %v464, 2147483648
        %v522 = vor.u32 1.1754944e-38, %v521
        %v523 = vsel %vm520, %v522, %v518
        %v524 = vmul.f32 1.0, %v523
        %v525 = vadd.f32 %v389, %v420
        %v526 = vadd.f32 %v390, %v432
        %v527 = vadd.f32 %v391, %v444
        %v528 = vadd.f32 %v392, %v456
        %v529 = vmul.f32 %v525, %v479
        %v530 = vmul.f32 %v526, %v494
        %v531 = vmul.f32 %v527, %v509
        %v532 = vmul.f32 %v528, %v524
        %v533 = vsub.f32 %v389, %v420
        %v534 = vsub.f32 %v390, %v432
        %v535 = vsub.f32 %v391, %v444
        %v536 = vsub.f32 %v392, %v456
        %v537 = vmul.f32 %v533, %v479
        %v538 = vmul.f32 %v534, %v494
        %v539 = vmul.f32 %v535, %v509
        %v540 = vmul.f32 %v536, %v524
        %vm541 = vcmp.ne.f32.partialorder %v529, %v529
        %vm542 = vcmp.ne.f32.partialorder %v530, %v530
        %vm543 = vcmp.ne.f32.partialorder %v531, %v531
        %vm544 = vcmp.ne.f32.partialorder %v532, %v532
        %v545 = vsel %vm541, 0.0, %v529
        %v546 = vsel %vm542, 0.0, %v530
        %v547 = vsel %vm543, 0.0, %v531
        %v548 = vsel %vm544, 0.0, %v532
        %vm549 = vcmp.ne.f32.partialorder %v537, %v537
        %vm550 = vcmp.ne.f32.partialorder %v538, %v538
        %vm551 = vcmp.ne.f32.partialorder %v539, %v539
        %vm552 = vcmp.ne.f32.partialorder %v540, %v540
        %v553 = vsel %vm549, 0.0, %v537
        %v554 = vsel %vm550, 0.0, %v538
        %v555 = vsel %vm551, 0.0, %v539
        %v556 = vsel %vm552, 0.0, %v540
        %v557 = vsub.f32 %v545, %v553
        %v558 = vsub.f32 %v546, %v554
        %v559 = vsub.f32 %v547, %v555
        %v560 = vsub.f32 %v548, %v556
        %v561 = vmul.f32 %v545, %v553
        %v562 = vmul.f32 %v546, %v554
        %v563 = vmul.f32 %v547, %v555
        %v564 = vmul.f32 %v548, %v556
        %vm565 = vweird.f32 %v561
        %vm566 = vweird.f32 %v562
        %vm567 = vweird.f32 %v563
        %vm568 = vweird.f32 %v564
        %vm569 = vmxor %vm565, 1
        %vm570 = vmxor %vm566, 1
        %vm571 = vmxor %vm567, 1
        %vm572 = vmxor %vm568, 1
        %vm573 = vweird.f32 %v557
        %vm574 = vweird.f32 %v558
        %vm575 = vweird.f32 %v559
        %vm576 = vweird.f32 %v560
        %vm577 = vmxor %vm573, 1
        %vm578 = vmxor %vm574, 1
        %vm579 = vmxor %vm575, 1
        %vm580 = vmxor %vm576, 1
        %vm581 = vmand %vm569, %vm577
        %vm582 = vmand %vm570, %vm578
        %vm583 = vmand %vm571, %vm579
        %vm584 = vmand %vm572, %vm580
        %vm585 = vcmp.ne.f32.partialorder %v561, 0.0
        %vm586 = vcmp.ne.f32.partialorder %v562, 0.0
        %vm587 = vcmp.ne.f32.partialorder %v563, 0.0
        %vm588 = vcmp.ne.f32.partialorder %v564, 0.0
        %vm589 = vmand %vm581, %vm585
        %vm590 = vmand %vm582, %vm586
        %vm591 = vmand %vm583, %vm587
        %vm592 = vmand %vm584, %vm588
        %vm593 = vcmp.ne.f32.partialorder %v557, 0.0
        %vm594 = vcmp.ne.f32.partialorder %v558, 0.0
        %vm595 = vcmp.ne.f32.partialorder %v559, 0.0
        %vm596 = vcmp.ne.f32.partialorder %v560, 0.0
        %vm597 = vmand %vm589, %vm593
        %vm598 = vmand %vm590, %vm594
        %vm599 = vmand %vm591, %vm595
        %vm600 = vmand %vm592, %vm596
        %v605 = vrot.slane %v553, 5
        %v606 = vrot.slane %v605, 4
        %v607 = vrot.slane %v554, 5
        %v608 = vrot.slane %v607, 4
        %v609 = vrot.slane %v555, 5
        %v610 = vrot.slane %v609, 4
        %v611 = vrot.slane %v556, 5
        %v612 = vrot.slane %v611, 4
        %v617 = vmul.f32 %v357, %v606
        %v618 = vmul.f32 %v358, %v608
        %v619 = vmul.f32 %v359, %v610
        %v620 = vmul.f32 %v360, %v612
        %v621 = vsub.f32 1.0, %v617
        %v622 = vsub.f32 1.0, %v618
        %v623 = vsub.f32 1.0, %v619
        %v624 = vsub.f32 1.0, %v620
        %v629 = vrot.slane %v557, 5
        %v630 = vrot.slane %v629, 4
        %v631 = vrot.slane %v558, 5
        %v632 = vrot.slane %v631, 4
        %v633 = vrot.slane %v559, 5
        %v634 = vrot.slane %v633, 4
        %v635 = vrot.slane %v560, 5
        %v636 = vrot.slane %v635, 4
        %v641 = vmul.f32 %v357, %v630
        %v642 = vmul.f32 %v358, %v632
        %v643 = vmul.f32 %v359, %v634
        %v644 = vmul.f32 %v360, %v636
        %v645 = vlaneseq
        %v646 = vshrl.u32 %v645, 7
        %v647 = vcvt.s32.f32 %v646
        %v648 = vadd.s32 %v646, 8
        %v649 = vcvt.s32.f32 %v648
        %v650 = vmul.f32 %v647, -0.1
        %v651 = vperm.slane %v553, 1
        %v652 = vperm.slane %v553, 5
        %v653 = vperm.slane %v554, 1
        %v654 = vperm.slane %v554, 5
        %v655 = vperm.slane %v555, 1
        %v656 = vperm.slane %v555, 5
        %v657 = vperm.slane %v556, 1
        %v658 = vperm.slane %v556, 5
        %v667 = vperm.slane %v651, 1
        %v668 = vperm.slane %v652, 1
        %v669 = vperm.slane %v653, 1
        %v670 = vperm.slane %v654, 1
        %v671 = vperm.slane %v655, 1
        %v672 = vperm.slane %v656, 1
        %v673 = vperm.slane %v657, 1
        %v674 = vperm.slane %v658, 1
        %v675 = vmul.f32 %v650, %v667
        %v676 = vmul.f32 %v650, %v668
        %v677 = vmul.f32 %v650, %v669
        %v678 = vmul.f32 %v650, %v670
        %v679 = vmul.f32 %v650, %v671
        %v680 = vmul.f32 %v650, %v672
        %v681 = vmul.f32 %v650, %v673
        %v682 = vmul.f32 %v650, %v674
        %v683 = vmul.f32 %v675, 1.442695
        %v684 = vpow.pop %v683
        %v685 = vmul.f32 %v676, 1.442695
        %v686 = vpow.pop %v685
        %v687 = vmul.f32 %v677, 1.442695
        %v688 = vpow.pop %v687
        %v689 = vmul.f32 %v678, 1.442695
        %v690 = vpow.pop %v689
        %v691 = vmul.f32 %v679, 1.442695
        %v692 = vpow.pop %v691
        %v693 = vmul.f32 %v680, 1.442695
        %v694 = vpow.pop %v693
        %v695 = vmul.f32 %v681, 1.442695
        %v696 = vpow.pop %v695
        %v697 = vmul.f32 %v682, 1.442695
        %v698 = vpow.pop %v697
        %v703 = vperm.slane %v545, 1
        %v704 = vperm.slane %v545, 5
        %v705 = vperm.slane %v546, 1
        %v706 = vperm.slane %v546, 5
        %v707 = vperm.slane %v547, 1
        %v708 = vperm.slane %v547, 5
        %v709 = vperm.slane %v548, 1
        %v710 = vperm.slane %v548, 5
        %v719 = vperm.slane %v703, 1
        %v720 = vperm.slane %v704, 1
        %v721 = vperm.slane %v705, 1
        %v722 = vperm.slane %v706, 1
        %v723 = vperm.slane %v707, 1
        %v724 = vperm.slane %v708, 1
        %v725 = vperm.slane %v709, 1
        %v726 = vperm.slane %v710, 1
        %v727 = vmul.f32 %v650, %v719
        %v728 = vmul.f32 %v650, %v720
        %v729 = vmul.f32 %v650, %v721
        %v730 = vmul.f32 %v650, %v722
        %v731 = vmul.f32 %v650, %v723
        %v732 = vmul.f32 %v650, %v724
        %v733 = vmul.f32 %v650, %v725
        %v734 = vmul.f32 %v650, %v726
        %v735 = vmul.f32 %v727, 1.442695
        %v736 = vpow.pop %v735
        %v737 = vmul.f32 %v728, 1.442695
        %v738 = vpow.pop %v737
        %v739 = vmul.f32 %v729, 1.442695
        %v740 = vpow.pop %v739
        %v741 = vmul.f32 %v730, 1.442695
        %v742 = vpow.pop %v741
        %v743 = vmul.f32 %v731, 1.442695
        %v744 = vpow.pop %v743
        %v745 = vmul.f32 %v732, 1.442695
        %v746 = vpow.pop %v745
        %v747 = vmul.f32 %v733, 1.442695
        %v748 = vpow.pop %v747
        %v749 = vmul.f32 %v734, 1.442695
        %v750 = vpow.pop %v749
        %v751 = vmul.f32 %v647, -0.8
        %v752 = vmul.f32 %v649, -0.8
        %v753 = vmul.f32 %v751, %v667
        %v754 = vmul.f32 %v751, %v668
        %v755 = vmul.f32 %v751, %v669
        %v756 = vmul.f32 %v751, %v670
        %v757 = vmul.f32 %v751, %v671
        %v758 = vmul.f32 %v751, %v672
        %v759 = vmul.f32 %v751, %v673
        %v760 = vmul.f32 %v751, %v674
        %v761 = vmul.f32 %v752, %v667
        %v762 = vmul.f32 %v752, %v668
        %v763 = vmul.f32 %v752, %v669
        %v764 = vmul.f32 %v752, %v670
        %v765 = vmul.f32 %v752, %v671
        %v766 = vmul.f32 %v752, %v672
        %v767 = vmul.f32 %v752, %v673
        %v768 = vmul.f32 %v752, %v674
        %v769 = vmul.f32 %v753, 1.442695
        %v770 = vpow.pop %v769
        %v771 = vmul.f32 %v754, 1.442695
        %v772 = vpow.pop %v771
        %v773 = vmul.f32 %v755, 1.442695
        %v774 = vpow.pop %v773
        %v775 = vmul.f32 %v756, 1.442695
        %v776 = vpow.pop %v775
        %v777 = vmul.f32 %v757, 1.442695
        %v778 = vpow.pop %v777
        %v779 = vmul.f32 %v758, 1.442695
        %v780 = vpow.pop %v779
        %v781 = vmul.f32 %v759, 1.442695
        %v782 = vpow.pop %v781
        %v783 = vmul.f32 %v760, 1.442695
        %v784 = vpow.pop %v783
        %v785 = vmul.f32 %v761, 1.442695
        %v786 = vpow.pop %v785
        %v787 = vmul.f32 %v762, 1.442695
        %v788 = vpow.pop %v787
        %v789 = vmul.f32 %v763, 1.442695
        %v790 = vpow.pop %v789
        %v791 = vmul.f32 %v764, 1.442695
        %v792 = vpow.pop %v791
        %v793 = vmul.f32 %v765, 1.442695
        %v794 = vpow.pop %v793
        %v795 = vmul.f32 %v766, 1.442695
        %v796 = vpow.pop %v795
        %v797 = vmul.f32 %v767, 1.442695
        %v798 = vpow.pop %v797
        %v799 = vmul.f32 %v768, 1.442695
        %v800 = vpow.pop %v799
        %v801 = vmul.f32 %v751, %v719
        %v802 = vmul.f32 %v751, %v720
        %v803 = vmul.f32 %v751, %v721
        %v804 = vmul.f32 %v751, %v722
        %v805 = vmul.f32 %v751, %v723
        %v806 = vmul.f32 %v751, %v724
        %v807 = vmul.f32 %v751, %v725
        %v808 = vmul.f32 %v751, %v726
        %v809 = vmul.f32 %v752, %v719
        %v810 = vmul.f32 %v752, %v720
        %v811 = vmul.f32 %v752, %v721
        %v812 = vmul.f32 %v752, %v722
        %v813 = vmul.f32 %v752, %v723
        %v814 = vmul.f32 %v752, %v724
        %v815 = vmul.f32 %v752, %v725
        %v816 = vmul.f32 %v752, %v726
        %v817 = vmul.f32 %v801, 1.442695
        %v818 = vpow.pop %v817
        %v819 = vmul.f32 %v802, 1.442695
        %v820 = vpow.pop %v819
        %v821 = vmul.f32 %v803, 1.442695
        %v822 = vpow.pop %v821
        %v823 = vmul.f32 %v804, 1.442695
        %v824 = vpow.pop %v823
        %v825 = vmul.f32 %v805, 1.442695
        %v826 = vpow.pop %v825
        %v827 = vmul.f32 %v806, 1.442695
        %v828 = vpow.pop %v827
        %v829 = vmul.f32 %v807, 1.442695
        %v830 = vpow.pop %v829
        %v831 = vmul.f32 %v808, 1.442695
        %v832 = vpow.pop %v831
        %v833 = vmul.f32 %v809, 1.442695
        %v834 = vpow.pop %v833
        %v835 = vmul.f32 %v810, 1.442695
        %v836 = vpow.pop %v835
        %v837 = vmul.f32 %v811, 1.442695
        %v838 = vpow.pop %v837
        %v839 = vmul.f32 %v812, 1.442695
        %v840 = vpow.pop %v839
        %v841 = vmul.f32 %v813, 1.442695
        %v842 = vpow.pop %v841
        %v843 = vmul.f32 %v814, 1.442695
        %v844 = vpow.pop %v843
        %v845 = vmul.f32 %v815, 1.442695
        %v846 = vpow.pop %v845
        %v847 = vmul.f32 %v816, 1.442695
        %v848 = vpow.pop %v847
        %v865 = vrot.slane %v772, 7
        %v866 = vrot.slane %v774, 6
        %v867 = vrot.slane %v776, 5
        %v868 = vrot.slane %v778, 4
        %v869 = vrot.slane %v780, 3
        %v870 = vrot.slane %v782, 2
        %v871 = vrot.slane %v784, 1
        %v872 = vrot.slane %v788, 7
        %v873 = vrot.slane %v790, 6
        %v874 = vrot.slane %v792, 5
        %v875 = vrot.slane %v794, 4
        %v876 = vrot.slane %v796, 3
        %v877 = vrot.slane %v798, 2
        %v878 = vrot.slane %v800, 1
        %vm879 = vcmask 1040384
        %v880 = vsel %vm879, %v770, %v865
        %vm881 = vcmask 1042434
        %v882 = vsel %vm881, %v866, %v867
        %vm883 = vcmask 1041408
        %v884 = vsel %vm883, %v880, %v882
        %vm885 = vcmask 1044484
        %v886 = vsel %vm885, %v868, %v869
        %vm887 = vcmask 1046534
        %v888 = vsel %vm887, %v870, %v871
        %vm889 = vcmask 1045508
        %v890 = vsel %vm889, %v886, %v888
        %vm891 = vcmask 1043456
        %v892 = vsel %vm891, %v884, %v890
        %vm893 = vcmask 1041409
        %v894 = vsel %vm893, %v770, %v865
        %vm895 = vcmask 1043459
        %v896 = vsel %vm895, %v866, %v867
        %vm897 = vcmask 1042433
        %v898 = vsel %vm897, %v894, %v896
        %vm899 = vcmask 1045509
        %v900 = vsel %vm899, %v868, %v869
        %vm901 = vcmask 1046528
        %v902 = vsel %vm901, %v871, %v870
        %vm903 = vcmask 1046533
        %v904 = vsel %vm903, %v900, %v902
        %vm905 = vcmask 1044481
        %v906 = vsel %vm905, %v898, %v904
        %v907 = vrot.slane %v906, 1
        %v908 = vsel %vm881, %v770, %v865
        %v909 = vsel %vm885, %v866, %v867
        %vm910 = vcmask 1043458
        %v911 = vsel %vm910, %v908, %v909
        %v912 = vsel %vm887, %v868, %v869
        %v913 = vsel %vm879, %v870, %v871
        %vm914 = vcmask 1045504
        %v915 = vsel %vm914, %v913, %v912
        %vm916 = vcmask 1045506
        %v917 = vsel %vm916, %v911, %v915
        %v918 = vrot.slane %v917, 2
        %v919 = vsel %vm895, %v770, %v865
        %v920 = vsel %vm899, %v866, %v867
        %vm921 = vcmask 1044483
        %v922 = vsel %vm921, %v919, %v920
        %v923 = vsel %vm901, %v869, %v868
        %v924 = vsel %vm893, %v870, %v871
        %vm925 = vcmask 1046529
        %v926 = vsel %vm925, %v924, %v923
        %vm927 = vcmask 1046531
        %v928 = vsel %vm927, %v922, %v926
        %v929 = vrot.slane %v928, 3
        %v930 = vsel %vm885, %v770, %v865
        %v931 = vsel %vm887, %v866, %v867
        %v932 = vsel %vm889, %v930, %v931
        %v933 = vsel %vm879, %v868, %v869
        %v934 = vsel %vm881, %v870, %v871
        %v935 = vsel %vm883, %v933, %v934
        %v936 = vsel %vm891, %v935, %v932
        %v937 = vrot.slane %v936, 4
        %v938 = vsel %vm899, %v770, %v865
        %v939 = vsel %vm901, %v867, %v866
        %v940 = vsel %vm903, %v938, %v939
        %v941 = vsel %vm893, %v868, %v869
        %v942 = vsel %vm895, %v870, %v871
        %v943 = vsel %vm897, %v941, %v942
        %v944 = vsel %vm905, %v943, %v940
        %v945 = vrot.slane %v944, 5
        %v946 = vsel %vm887, %v770, %v865
        %v947 = vsel %vm879, %v866, %v867
        %v948 = vsel %vm914, %v947, %v946
        %v949 = vsel %vm881, %v868, %v869
        %v950 = vsel %vm885, %v870, %v871
        %v951 = vsel %vm910, %v949, %v950
        %v952 = vsel %vm916, %v951, %v948
        %v953 = vrot.slane %v952, 6
        %v954 = vsel %vm901, %v865, %v770
        %v955 = vsel %vm893, %v866, %v867
        %v956 = vsel %vm925, %v955, %v954
        %v957 = vsel %vm895, %v868, %v869
        %v958 = vsel %vm899, %v870, %v871
        %v959 = vsel %vm921, %v957, %v958
        %v960 = vsel %vm927, %v959, %v956
        %v961 = vrot.slane %v960, 7
        %v962 = vsel %vm879, %v786, %v872
        %v963 = vsel %vm881, %v873, %v874
        %v964 = vsel %vm883, %v962, %v963
        %v965 = vsel %vm885, %v875, %v876
        %v966 = vsel %vm887, %v877, %v878
        %v967 = vsel %vm889, %v965, %v966
        %v968 = vsel %vm891, %v964, %v967
        %v969 = vsel %vm893, %v786, %v872
        %v970 = vsel %vm895, %v873, %v874
        %v971 = vsel %vm897, %v969, %v970
        %v972 = vsel %vm899, %v875, %v876
        %v973 = vsel %vm901, %v878, %v877
        %v974 = vsel %vm903, %v972, %v973
        %v975 = vsel %vm905, %v971, %v974
        %v976 = vrot.slane %v975, 1
        %v977 = vsel %vm881, %v786, %v872
        %v978 = vsel %vm885, %v873, %v874
        %v979 = vsel %vm910, %v977, %v978
        %v980 = vsel %vm887, %v875, %v876
        %v981 = vsel %vm879, %v877, %v878
        %v982 = vsel %vm914, %v981, %v980
        %v983 = vsel %vm916, %v979, %v982
        %v984 = vrot.slane %v983, 2
        %v985 = vsel %vm895, %v786, %v872
        %v986 = vsel %vm899, %v873, %v874
        %v987 = vsel %vm921, %v985, %v986
        %v988 = vsel %vm901, %v876, %v875
        %v989 = vsel %vm893, %v877, %v878
        %v990 = vsel %vm925, %v989, %v988
        %v991 = vsel %vm927, %v987, %v990
        %v992 = vrot.slane %v991, 3
        %v993 = vsel %vm885, %v786, %v872
        %v994 = vsel %vm887, %v873, %v874
        %v995 = vsel %vm889, %v993, %v994
        %v996 = vsel %vm879, %v875, %v876
        %v997 = vsel %vm881, %v877, %v878
        %v998 = vsel %vm883, %v996, %v997
        %v999 = vsel %vm891, %v998, %v995
        %v1000 = vrot.slane %v999, 4
        %v1001 = vsel %vm899, %v786, %v872
        %v1002 = vsel %vm901, %v874, %v873
        %v1003 = vsel %vm903, %v1001, %v1002
        %v1004 = vsel %vm893, %v875, %v876
        %v1005 = vsel %vm895, %v877, %v878
        %v1006 = vsel %vm897, %v1004, %v1005
        %v1007 = vsel %vm905, %v1006, %v1003
        %v1008 = vrot.slane %v1007, 5
        %v1009 = vsel %vm887, %v786, %v872
        %v1010 = vsel %vm879, %v873, %v874
        %v1011 = vsel %vm914, %v1010, %v1009
        %v1012 = vsel %vm881, %v875, %v876
        %v1013 = vsel %vm885, %v877, %v878
        %v1014 = vsel %vm910, %v1012, %v1013
        %v1015 = vsel %vm916, %v1014, %v1011
        %v1016 = vrot.slane %v1015, 6
        %v1017 = vsel %vm901, %v872, %v786
        %v1018 = vsel %vm893, %v873, %v874
        %v1019 = vsel %vm925, %v1018, %v1017
        %v1020 = vsel %vm895, %v875, %v876
        %v1021 = vsel %vm899, %v877, %v878
        %v1022 = vsel %vm921, %v1020, %v1021
        %v1023 = vsel %vm927, %v1022, %v1019
        %v1024 = vrot.slane %v1023, 7
        %v1025 = vperm.slane %v892, 0
        %v1026 = vperm.slane %v892, 1
        %v1027 = vperm.slane %v892, 2
        %v1028 = vperm.slane %v892, 3
        %v1029 = vperm.slane %v892, 4
        %v1030 = vperm.slane %v892, 5
        %v1031 = vperm.slane %v892, 6
        %v1032 = vperm.slane %v892, 7
        %v1033 = vperm.slane %v907, 0
        %v1034 = vperm.slane %v907, 1
        %v1035 = vperm.slane %v907, 2
        %v1036 = vperm.slane %v907, 3
        %v1037 = vperm.slane %v907, 4
        %v1038 = vperm.slane %v907, 5
        %v1039 = vperm.slane %v907, 6
        %v1040 = vperm.slane %v907, 7
        %v1041 = vperm.slane %v918, 0
        %v1042 = vperm.slane %v918, 1
        %v1043 = vperm.slane %v918, 2
        %v1044 = vperm.slane %v918, 3
        %v1045 = vperm.slane %v918, 4
        %v1046 = vperm.slane %v918, 5
        %v1047 = vperm.slane %v918, 6
        %v1048 = vperm.slane %v918, 7
        %v1049 = vperm.slane %v929, 0
        %v1050 = vperm.slane %v929, 1
        %v1051 = vperm.slane %v929, 2
        %v1052 = vperm.slane %v929, 3
        %v1053 = vperm.slane %v929, 4
        %v1054 = vperm.slane %v929, 5
        %v1055 = vperm.slane %v929, 6
        %v1056 = vperm.slane %v929, 7
        %v1057 = vperm.slane %v937, 0
        %v1058 = vperm.slane %v937, 1
        %v1059 = vperm.slane %v937, 2
        %v1060 = vperm.slane %v937, 3
        %v1061 = vperm.slane %v937, 4
        %v1062 = vperm.slane %v937, 5
        %v1063 = vperm.slane %v937, 6
        %v1064 = vperm.slane %v937, 7
        %v1065 = vperm.slane %v945, 0
        %v1066 = vperm.slane %v945, 1
        %v1067 = vperm.slane %v945, 2
        %v1068 = vperm.slane %v945, 3
        %v1069 = vperm.slane %v945, 4
        %v1070 = vperm.slane %v945, 5
        %v1071 = vperm.slane %v945, 6
        %v1072 = vperm.slane %v945, 7
        %v1073 = vperm.slane %v953, 0
        %v1074 = vperm.slane %v953, 1
        %v1075 = vperm.slane %v953, 2
        %v1076 = vperm.slane %v953, 3
        %v1077 = vperm.slane %v953, 4
        %v1078 = vperm.slane %v953, 5
        %v1079 = vperm.slane %v953, 6
        %v1080 = vperm.slane %v953, 7
        %v1081 = vperm.slane %v961, 0
        %v1082 = vperm.slane %v961, 1
        %v1083 = vperm.slane %v961, 2
        %v1084 = vperm.slane %v961, 3
        %v1085 = vperm.slane %v961, 4
        %v1086 = vperm.slane %v961, 5
        %v1087 = vperm.slane %v961, 6
        %v1088 = vperm.slane %v961, 7
        %v1089 = vperm.slane %v968, 0
        %v1090 = vperm.slane %v968, 1
        %v1091 = vperm.slane %v968, 2
        %v1092 = vperm.slane %v968, 3
        %v1093 = vperm.slane %v968, 4
        %v1094 = vperm.slane %v968, 5
        %v1095 = vperm.slane %v968, 6
        %v1096 = vperm.slane %v968, 7
        %v1097 = vperm.slane %v976, 0
        %v1098 = vperm.slane %v976, 1
        %v1099 = vperm.slane %v976, 2
        %v1100 = vperm.slane %v976, 3
        %v1101 = vperm.slane %v976, 4
        %v1102 = vperm.slane %v976, 5
        %v1103 = vperm.slane %v976, 6
        %v1104 = vperm.slane %v976, 7
        %v1105 = vperm.slane %v984, 0
        %v1106 = vperm.slane %v984, 1
        %v1107 = vperm.slane %v984, 2
        %v1108 = vperm.slane %v984, 3
        %v1109 = vperm.slane %v984, 4
        %v1110 = vperm.slane %v984, 5
        %v1111 = vperm.slane %v984, 6
        %v1112 = vperm.slane %v984, 7
        %v1113 = vperm.slane %v992, 0
        %v1114 = vperm.slane %v992, 1
        %v1115 = vperm.slane %v992, 2
        %v1116 = vperm.slane %v992, 3
        %v1117 = vperm.slane %v992, 4
        %v1118 = vperm.slane %v992, 5
        %v1119 = vperm.slane %v992, 6
        %v1120 = vperm.slane %v992, 7
        %v1121 = vperm.slane %v1000, 0
        %v1122 = vperm.slane %v1000, 1
        %v1123 = vperm.slane %v1000, 2
        %v1124 = vperm.slane %v1000, 3
        %v1125 = vperm.slane %v1000, 4
        %v1126 = vperm.slane %v1000, 5
        %v1127 = vperm.slane %v1000, 6
        %v1128 = vperm.slane %v1000, 7
        %v1129 = vperm.slane %v1008, 0
        %v1130 = vperm.slane %v1008, 1
        %v1131 = vperm.slane %v1008, 2
        %v1132 = vperm.slane %v1008, 3
        %v1133 = vperm.slane %v1008, 4
        %v1134 = vperm.slane %v1008, 5
        %v1135 = vperm.slane %v1008, 6
        %v1136 = vperm.slane %v1008, 7
        %v1137 = vperm.slane %v1016, 0
        %v1138 = vperm.slane %v1016, 1
        %v1139 = vperm.slane %v1016, 2
        %v1140 = vperm.slane %v1016, 3
        %v1141 = vperm.slane %v1016, 4
        %v1142 = vperm.slane %v1016, 5
        %v1143 = vperm.slane %v1016, 6
        %v1144 = vperm.slane %v1016, 7
        %v1145 = vperm.slane %v1024, 0
        %v1146 = vperm.slane %v1024, 1
        %v1147 = vperm.slane %v1024, 2
        %v1148 = vperm.slane %v1024, 3
        %v1149 = vperm.slane %v1024, 4
        %v1150 = vperm.slane %v1024, 5
        %v1151 = vperm.slane %v1024, 6
        %v1152 = vperm.slane %v1024, 7
        %v1281 = vmul.f32 %v1025, %v684
        %v1282 = vmul.f32 %v1026, %v686
        %v1283 = vmul.f32 %v1027, %v688
        %v1284 = vmul.f32 %v1028, %v690
        %v1285 = vmul.f32 %v1029, %v692
        %v1286 = vmul.f32 %v1030, %v694
        %v1287 = vmul.f32 %v1031, %v696
        %v1288 = vmul.f32 %v1032, %v698
        %v1289 = vmul.f32 %v1033, %v684
        %v1290 = vmul.f32 %v1034, %v686
        %v1291 = vmul.f32 %v1035, %v688
        %v1292 = vmul.f32 %v1036, %v690
        %v1293 = vmul.f32 %v1037, %v692
        %v1294 = vmul.f32 %v1038, %v694
        %v1295 = vmul.f32 %v1039, %v696
        %v1296 = vmul.f32 %v1040, %v698
        %v1297 = vmul.f32 %v1041, %v684
        %v1298 = vmul.f32 %v1042, %v686
        %v1299 = vmul.f32 %v1043, %v688
        %v1300 = vmul.f32 %v1044, %v690
        %v1301 = vmul.f32 %v1045, %v692
        %v1302 = vmul.f32 %v1046, %v694
        %v1303 = vmul.f32 %v1047, %v696
        %v1304 = vmul.f32 %v1048, %v698
        %v1305 = vmul.f32 %v1049, %v684
        %v1306 = vmul.f32 %v1050, %v686
        %v1307 = vmul.f32 %v1051, %v688
        %v1308 = vmul.f32 %v1052, %v690
        %v1309 = vmul.f32 %v1053, %v692
        %v1310 = vmul.f32 %v1054, %v694
        %v1311 = vmul.f32 %v1055, %v696
        %v1312 = vmul.f32 %v1056, %v698
        %v1313 = vmul.f32 %v1057, %v684
        %v1314 = vmul.f32 %v1058, %v686
        %v1315 = vmul.f32 %v1059, %v688
        %v1316 = vmul.f32 %v1060, %v690
        %v1317 = vmul.f32 %v1061, %v692
        %v1318 = vmul.f32 %v1062, %v694
        %v1319 = vmul.f32 %v1063, %v696
        %v1320 = vmul.f32 %v1064, %v698
        %v1321 = vmul.f32 %v1065, %v684
        %v1322 = vmul.f32 %v1066, %v686
        %v1323 = vmul.f32 %v1067, %v688
        %v1324 = vmul.f32 %v1068, %v690
        %v1325 = vmul.f32 %v1069, %v692
        %v1326 = vmul.f32 %v1070, %v694
        %v1327 = vmul.f32 %v1071, %v696
        %v1328 = vmul.f32 %v1072, %v698
        %v1329 = vmul.f32 %v1073, %v684
        %v1330 = vmul.f32 %v1074, %v686
        %v1331 = vmul.f32 %v1075, %v688
        %v1332 = vmul.f32 %v1076, %v690
        %v1333 = vmul.f32 %v1077, %v692
        %v1334 = vmul.f32 %v1078, %v694
        %v1335 = vmul.f32 %v1079, %v696
        %v1336 = vmul.f32 %v1080, %v698
        %v1337 = vmul.f32 %v1081, %v684
        %v1338 = vmul.f32 %v1082, %v686
        %v1339 = vmul.f32 %v1083, %v688
        %v1340 = vmul.f32 %v1084, %v690
        %v1341 = vmul.f32 %v1085, %v692
        %v1342 = vmul.f32 %v1086, %v694
        %v1343 = vmul.f32 %v1087, %v696
        %v1344 = vmul.f32 %v1088, %v698
        %v1345 = vmul.f32 %v1089, %v684
        %v1346 = vmul.f32 %v1090, %v686
        %v1347 = vmul.f32 %v1091, %v688
        %v1348 = vmul.f32 %v1092, %v690
        %v1349 = vmul.f32 %v1093, %v692
        %v1350 = vmul.f32 %v1094, %v694
        %v1351 = vmul.f32 %v1095, %v696
        %v1352 = vmul.f32 %v1096, %v698
        %v1353 = vmul.f32 %v1097, %v684
        %v1354 = vmul.f32 %v1098, %v686
        %v1355 = vmul.f32 %v1099, %v688
        %v1356 = vmul.f32 %v1100, %v690
        %v1357 = vmul.f32 %v1101, %v692
        %v1358 = vmul.f32 %v1102, %v694
        %v1359 = vmul.f32 %v1103, %v696
        %v1360 = vmul.f32 %v1104, %v698
        %v1361 = vmul.f32 %v1105, %v684
        %v1362 = vmul.f32 %v1106, %v686
        %v1363 = vmul.f32 %v1107, %v688
        %v1364 = vmul.f32 %v1108, %v690
        %v1365 = vmul.f32 %v1109, %v692
        %v1366 = vmul.f32 %v1110, %v694
        %v1367 = vmul.f32 %v1111, %v696
        %v1368 = vmul.f32 %v1112, %v698
        %v1369 = vmul.f32 %v1113, %v684
        %v1370 = vmul.f32 %v1114, %v686
        %v1371 = vmul.f32 %v1115, %v688
        %v1372 = vmul.f32 %v1116, %v690
        %v1373 = vmul.f32 %v1117, %v692
        %v1374 = vmul.f32 %v1118, %v694
        %v1375 = vmul.f32 %v1119, %v696
        %v1376 = vmul.f32 %v1120, %v698
        %v1377 = vmul.f32 %v1121, %v684
        %v1378 = vmul.f32 %v1122, %v686
        %v1379 = vmul.f32 %v1123, %v688
        %v1380 = vmul.f32 %v1124, %v690
        %v1381 = vmul.f32 %v1125, %v692
        %v1382 = vmul.f32 %v1126, %v694
        %v1383 = vmul.f32 %v1127, %v696
        %v1384 = vmul.f32 %v1128, %v698
        %v1385 = vmul.f32 %v1129, %v684
        %v1386 = vmul.f32 %v1130, %v686
        %v1387 = vmul.f32 %v1131, %v688
        %v1388 = vmul.f32 %v1132, %v690
        %v1389 = vmul.f32 %v1133, %v692
        %v1390 = vmul.f32 %v1134, %v694
        %v1391 = vmul.f32 %v1135, %v696
        %v1392 = vmul.f32 %v1136, %v698
        %v1393 = vmul.f32 %v1137, %v684
        %v1394 = vmul.f32 %v1138, %v686
        %v1395 = vmul.f32 %v1139, %v688
        %v1396 = vmul.f32 %v1140, %v690
        %v1397 = vmul.f32 %v1141, %v692
        %v1398 = vmul.f32 %v1142, %v694
        %v1399 = vmul.f32 %v1143, %v696
        %v1400 = vmul.f32 %v1144, %v698
        %v1401 = vmul.f32 %v1145, %v684
        %v1402 = vmul.f32 %v1146, %v686
        %v1403 = vmul.f32 %v1147, %v688
        %v1404 = vmul.f32 %v1148, %v690
        %v1405 = vmul.f32 %v1149, %v692
        %v1406 = vmul.f32 %v1150, %v694
        %v1407 = vmul.f32 %v1151, %v696
        %v1408 = vmul.f32 %v1152, %v698
        %v1425 = vrot.slane %v820, 7
        %v1426 = vrot.slane %v822, 6
        %v1427 = vrot.slane %v824, 5
        %v1428 = vrot.slane %v826, 4
        %v1429 = vrot.slane %v828, 3
        %v1430 = vrot.slane %v830, 2
        %v1431 = vrot.slane %v832, 1
        %v1432 = vrot.slane %v836, 7
        %v1433 = vrot.slane %v838, 6
        %v1434 = vrot.slane %v840, 5
        %v1435 = vrot.slane %v842, 4
        %v1436 = vrot.slane %v844, 3
        %v1437 = vrot.slane %v846, 2
        %v1438 = vrot.slane %v848, 1
        %v1439 = vsel %vm879, %v818, %v1425
        %v1440 = vsel %vm881, %v1426, %v1427
        %v1441 = vsel %vm883, %v1439, %v1440
        %v1442 = vsel %vm885, %v1428, %v1429
        %v1443 = vsel %vm887, %v1430, %v1431
        %v1444 = vsel %vm889, %v1442, %v1443
        %v1445 = vsel %vm891, %v1441, %v1444
        %v1446 = vsel %vm893, %v818, %v1425
        %v1447 = vsel %vm895, %v1426, %v1427
        %v1448 = vsel %vm897, %v1446, %v1447
        %v1449 = vsel %vm899, %v1428, %v1429
        %v1450 = vsel %vm901, %v1431, %v1430
        %v1451 = vsel %vm903, %v1449, %v1450
        %v1452 = vsel %vm905, %v1448, %v1451
        %v1453 = vrot.slane %v1452, 1
        %v1454 = vsel %vm881, %v818, %v1425
        %v1455 = vsel %vm885, %v1426, %v1427
        %v1456 = vsel %vm910, %v1454, %v1455
        %v1457 = vsel %vm887, %v1428, %v1429
        %v1458 = vsel %vm879, %v1430, %v1431
        %v1459 = vsel %vm914, %v1458, %v1457
        %v1460 = vsel %vm916, %v1456, %v1459
        %v1461 = vrot.slane %v1460, 2
        %v1462 = vsel %vm895, %v818, %v1425
        %v1463 = vsel %vm899, %v1426, %v1427
        %v1464 = vsel %vm921, %v1462, %v1463
        %v1465 = vsel %vm901, %v1429, %v1428
        %v1466 = vsel %vm893, %v1430, %v1431
        %v1467 = vsel %vm925, %v1466, %v1465
        %v1468 = vsel %vm927, %v1464, %v1467
        %v1469 = vrot.slane %v1468, 3
        %v1470 = vsel %vm885, %v818, %v1425
        %v1471 = vsel %vm887, %v1426, %v1427
        %v1472 = vsel %vm889, %v1470, %v1471
        %v1473 = vsel %vm879, %v1428, %v1429
        %v1474 = vsel %vm881, %v1430, %v1431
        %v1475 = vsel %vm883, %v1473, %v1474
        %v1476 = vsel %vm891, %v1475, %v1472
        %v1477 = vrot.slane %v1476, 4
        %v1478 = vsel %vm899, %v818, %v1425
        %v1479 = vsel %vm901, %v1427, %v1426
        %v1480 = vsel %vm903, %v1478, %v1479
        %v1481 = vsel %vm893, %v1428, %v1429
        %v1482 = vsel %vm895, %v1430, %v1431
        %v1483 = vsel %vm897, %v1481, %v1482
        %v1484 = vsel %vm905, %v1483, %v1480
        %v1485 = vrot.slane %v1484, 5
        %v1486 = vsel %vm887, %v818, %v1425
        %v1487 = vsel %vm879, %v1426, %v1427
        %v1488 = vsel %vm914, %v1487, %v1486
        %v1489 = vsel %vm881, %v1428, %v1429
        %v1490 = vsel %vm885, %v1430, %v1431
        %v1491 = vsel %vm910, %v1489, %v1490
        %v1492 = vsel %vm916, %v1491, %v1488
        %v1493 = vrot.slane %v1492, 6
        %v1494 = vsel %vm901, %v1425, %v818
        %v1495 = vsel %vm893, %v1426, %v1427
        %v1496 = vsel %vm925, %v1495, %v1494
        %v1497 = vsel %vm895, %v1428, %v1429
        %v1498 = vsel %vm899, %v1430, %v1431
        %v1499 = vsel %vm921, %v1497, %v1498
        %v1500 = vsel %vm927, %v1499, %v1496
        %v1501 = vrot.slane %v1500, 7
        %v1502 = vsel %vm879, %v834, %v1432
        %v1503 = vsel %vm881, %v1433, %v1434
        %v1504 = vsel %vm883, %v1502, %v1503
        %v1505 = vsel %vm885, %v1435, %v1436
        %v1506 = vsel %vm887, %v1437, %v1438
        %v1507 = vsel %vm889, %v1505, %v1506
        %v1508 = vsel %vm891, %v1504, %v1507
        %v1509 = vsel %vm893, %v834, %v1432
        %v1510 = vsel %vm895, %v1433, %v1434
        %v1511 = vsel %vm897, %v1509, %v1510
        %v1512 = vsel %vm899, %v1435, %v1436
        %v1513 = vsel %vm901, %v1438, %v1437
        %v1514 = vsel %vm903, %v1512, %v1513
        %v1515 = vsel %vm905, %v1511, %v1514
        %v1516 = vrot.slane %v1515, 1
        %v1517 = vsel %vm881, %v834, %v1432
        %v1518 = vsel %vm885, %v1433, %v1434
        %v1519 = vsel %vm910, %v1517, %v1518
        %v1520 = vsel %vm887, %v1435, %v1436
        %v1521 = vsel %vm879, %v1437, %v1438
        %v1522 = vsel %vm914, %v1521, %v1520
        %v1523 = vsel %vm916, %v1519, %v1522
        %v1524 = vrot.slane %v1523, 2
        %v1525 = vsel %vm895, %v834, %v1432
        %v1526 = vsel %vm899, %v1433, %v1434
        %v1527 = vsel %vm921, %v1525, %v1526
        %v1528 = vsel %vm901, %v1436, %v1435
        %v1529 = vsel %vm893, %v1437, %v1438
        %v1530 = vsel %vm925, %v1529, %v1528
        %v1531 = vsel %vm927, %v1527, %v1530
        %v1532 = vrot.slane %v1531, 3
        %v1533 = vsel %vm885, %v834, %v1432
        %v1534 = vsel %vm887, %v1433, %v1434
        %v1535 = vsel %vm889, %v1533, %v1534
        %v1536 = vsel %vm879, %v1435, %v1436
        %v1537 = vsel %vm881, %v1437, %v1438
        %v1538 = vsel %vm883, %v1536, %v1537
        %v1539 = vsel %vm891, %v1538, %v1535
        %v1540 = vrot.slane %v1539, 4
        %v1541 = vsel %vm899, %v834, %v1432
        %v1542 = vsel %vm901, %v1434, %v1433
        %v1543 = vsel %vm903, %v1541, %v1542
        %v1544 = vsel %vm893, %v1435, %v1436
        %v1545 = vsel %vm895, %v1437, %v1438
        %v1546 = vsel %vm897, %v1544, %v1545
        %v1547 = vsel %vm905, %v1546, %v1543
        %v1548 = vrot.slane %v1547, 5
        %v1549 = vsel %vm887, %v834, %v1432
        %v1550 = vsel %vm879, %v1433, %v1434
        %v1551 = vsel %vm914, %v1550, %v1549
        %v1552 = vsel %vm881, %v1435, %v1436
        %v1553 = vsel %vm885, %v1437, %v1438
        %v1554 = vsel %vm910, %v1552, %v1553
        %v1555 = vsel %vm916, %v1554, %v1551
        %v1556 = vrot.slane %v1555, 6
        %v1557 = vsel %vm901, %v1432, %v834
        %v1558 = vsel %vm893, %v1433, %v1434
        %v1559 = vsel %vm925, %v1558, %v1557
        %v1560 = vsel %vm895, %v1435, %v1436
        %v1561 = vsel %vm899, %v1437, %v1438
        %v1562 = vsel %vm921, %v1560, %v1561
        %v1563 = vsel %vm927, %v1562, %v1559
        %v1564 = vrot.slane %v1563, 7
        %v1565 = vperm.slane %v1445, 0
        %v1566 = vperm.slane %v1445, 1
        %v1567 = vperm.slane %v1445, 2
        %v1568 = vperm.slane %v1445, 3
        %v1569 = vperm.slane %v1445, 4
        %v1570 = vperm.slane %v1445, 5
        %v1571 = vperm.slane %v1445, 6
        %v1572 = vperm.slane %v1445, 7
        %v1573 = vperm.slane %v1453, 0
        %v1574 = vperm.slane %v1453, 1
        %v1575 = vperm.slane %v1453, 2
        %v1576 = vperm.slane %v1453, 3
        %v1577 = vperm.slane %v1453, 4
        %v1578 = vperm.slane %v1453, 5
        %v1579 = vperm.slane %v1453, 6
        %v1580 = vperm.slane %v1453, 7
        %v1581 = vperm.slane %v1461, 0
        %v1582 = vperm.slane %v1461, 1
        %v1583 = vperm.slane %v1461, 2
        %v1584 = vperm.slane %v1461, 3
        %v1585 = vperm.slane %v1461, 4
        %v1586 = vperm.slane %v1461, 5
        %v1587 = vperm.slane %v1461, 6
        %v1588 = vperm.slane %v1461, 7
        %v1589 = vperm.slane %v1469, 0
        %v1590 = vperm.slane %v1469, 1
        %v1591 = vperm.slane %v1469, 2
        %v1592 = vperm.slane %v1469, 3
        %v1593 = vperm.slane %v1469, 4
        %v1594 = vperm.slane %v1469, 5
        %v1595 = vperm.slane %v1469, 6
        %v1596 = vperm.slane %v1469, 7
        %v1597 = vperm.slane %v1477, 0
        %v1598 = vperm.slane %v1477, 1
        %v1599 = vperm.slane %v1477, 2
        %v1600 = vperm.slane %v1477, 3
        %v1601 = vperm.slane %v1477, 4
        %v1602 = vperm.slane %v1477, 5
        %v1603 = vperm.slane %v1477, 6
        %v1604 = vperm.slane %v1477, 7
        %v1605 = vperm.slane %v1485, 0
        %v1606 = vperm.slane %v1485, 1
        %v1607 = vperm.slane %v1485, 2
        %v1608 = vperm.slane %v1485, 3
        %v1609 = vperm.slane %v1485, 4
        %v1610 = vperm.slane %v1485, 5
        %v1611 = vperm.slane %v1485, 6
        %v1612 = vperm.slane %v1485, 7
        %v1613 = vperm.slane %v1493, 0
        %v1614 = vperm.slane %v1493, 1
        %v1615 = vperm.slane %v1493, 2
        %v1616 = vperm.slane %v1493, 3
        %v1617 = vperm.slane %v1493, 4
        %v1618 = vperm.slane %v1493, 5
        %v1619 = vperm.slane %v1493, 6
        %v1620 = vperm.slane %v1493, 7
        %v1621 = vperm.slane %v1501, 0
        %v1622 = vperm.slane %v1501, 1
        %v1623 = vperm.slane %v1501, 2
        %v1624 = vperm.slane %v1501, 3
        %v1625 = vperm.slane %v1501, 4
        %v1626 = vperm.slane %v1501, 5
        %v1627 = vperm.slane %v1501, 6
        %v1628 = vperm.slane %v1501, 7
        %v1629 = vperm.slane %v1508, 0
        %v1630 = vperm.slane %v1508, 1
        %v1631 = vperm.slane %v1508, 2
        %v1632 = vperm.slane %v1508, 3
        %v1633 = vperm.slane %v1508, 4
        %v1634 = vperm.slane %v1508, 5
        %v1635 = vperm.slane %v1508, 6
        %v1636 = vperm.slane %v1508, 7
        %v1637 = vperm.slane %v1516, 0
        %v1638 = vperm.slane %v1516, 1
        %v1639 = vperm.slane %v1516, 2
        %v1640 = vperm.slane %v1516, 3
        %v1641 = vperm.slane %v1516, 4
        %v1642 = vperm.slane %v1516, 5
        %v1643 = vperm.slane %v1516, 6
        %v1644 = vperm.slane %v1516, 7
        %v1645 = vperm.slane %v1524, 0
        %v1646 = vperm.slane %v1524, 1
        %v1647 = vperm.slane %v1524, 2
        %v1648 = vperm.slane %v1524, 3
        %v1649 = vperm.slane %v1524, 4
        %v1650 = vperm.slane %v1524, 5
        %v1651 = vperm.slane %v1524, 6
        %v1652 = vperm.slane %v1524, 7
        %v1653 = vperm.slane %v1532, 0
        %v1654 = vperm.slane %v1532, 1
        %v1655 = vperm.slane %v1532, 2
        %v1656 = vperm.slane %v1532, 3
        %v1657 = vperm.slane %v1532, 4
        %v1658 = vperm.slane %v1532, 5
        %v1659 = vperm.slane %v1532, 6
        %v1660 = vperm.slane %v1532, 7
        %v1661 = vperm.slane %v1540, 0
        %v1662 = vperm.slane %v1540, 1
        %v1663 = vperm.slane %v1540, 2
        %v1664 = vperm.slane %v1540, 3
        %v1665 = vperm.slane %v1540, 4
        %v1666 = vperm.slane %v1540, 5
        %v1667 = vperm.slane %v1540, 6
        %v1668 = vperm.slane %v1540, 7
        %v1669 = vperm.slane %v1548, 0
        %v1670 = vperm.slane %v1548, 1
        %v1671 = vperm.slane %v1548, 2
        %v1672 = vperm.slane %v1548, 3
        %v1673 = vperm.slane %v1548, 4
        %v1674 = vperm.slane %v1548, 5
        %v1675 = vperm.slane %v1548, 6
        %v1676 = vperm.slane %v1548, 7
        %v1677 = vperm.slane %v1556, 0
        %v1678 = vperm.slane %v1556, 1
        %v1679 = vperm.slane %v1556, 2
        %v1680 = vperm.slane %v1556, 3
        %v1681 = vperm.slane %v1556, 4
        %v1682 = vperm.slane %v1556, 5
        %v1683 = vperm.slane %v1556, 6
        %v1684 = vperm.slane %v1556, 7
        %v1685 = vperm.slane %v1564, 0
        %v1686 = vperm.slane %v1564, 1
        %v1687 = vperm.slane %v1564, 2
        %v1688 = vperm.slane %v1564, 3
        %v1689 = vperm.slane %v1564, 4
        %v1690 = vperm.slane %v1564, 5
        %v1691 = vperm.slane %v1564, 6
        %v1692 = vperm.slane %v1564, 7
        %v1821 = vmul.f32 %v1565, %v736
        %v1822 = vmul.f32 %v1566, %v738
        %v1823 = vmul.f32 %v1567, %v740
        %v1824 = vmul.f32 %v1568, %v742
        %v1825 = vmul.f32 %v1569, %v744
        %v1826 = vmul.f32 %v1570, %v746
        %v1827 = vmul.f32 %v1571, %v748
        %v1828 = vmul.f32 %v1572, %v750
        %v1829 = vmul.f32 %v1573, %v736
        %v1830 = vmul.f32 %v1574, %v738
        %v1831 = vmul.f32 %v1575, %v740
        %v1832 = vmul.f32 %v1576, %v742
        %v1833 = vmul.f32 %v1577, %v744
        %v1834 = vmul.f32 %v1578, %v746
        %v1835 = vmul.f32 %v1579, %v748
        %v1836 = vmul.f32 %v1580, %v750
        %v1837 = vmul.f32 %v1581, %v736
        %v1838 = vmul.f32 %v1582, %v738
        %v1839 = vmul.f32 %v1583, %v740
        %v1840 = vmul.f32 %v1584, %v742
        %v1841 = vmul.f32 %v1585, %v744
        %v1842 = vmul.f32 %v1586, %v746
        %v1843 = vmul.f32 %v1587, %v748
        %v1844 = vmul.f32 %v1588, %v750
        %v1845 = vmul.f32 %v1589, %v736
        %v1846 = vmul.f32 %v1590, %v738
        %v1847 = vmul.f32 %v1591, %v740
        %v1848 = vmul.f32 %v1592, %v742
        %v1849 = vmul.f32 %v1593, %v744
        %v1850 = vmul.f32 %v1594, %v746
        %v1851 = vmul.f32 %v1595, %v748
        %v1852 = vmul.f32 %v1596, %v750
        %v1853 = vmul.f32 %v1597, %v736
        %v1854 = vmul.f32 %v1598, %v738
        %v1855 = vmul.f32 %v1599, %v740
        %v1856 = vmul.f32 %v1600, %v742
        %v1857 = vmul.f32 %v1601, %v744
        %v1858 = vmul.f32 %v1602, %v746
        %v1859 = vmul.f32 %v1603, %v748
        %v1860 = vmul.f32 %v1604, %v750
        %v1861 = vmul.f32 %v1605, %v736
        %v1862 = vmul.f32 %v1606, %v738
        %v1863 = vmul.f32 %v1607, %v740
        %v1864 = vmul.f32 %v1608, %v742
        %v1865 = vmul.f32 %v1609, %v744
        %v1866 = vmul.f32 %v1610, %v746
        %v1867 = vmul.f32 %v1611, %v748
        %v1868 = vmul.f32 %v1612, %v750
        %v1869 = vmul.f32 %v1613, %v736
        %v1870 = vmul.f32 %v1614, %v738
        %v1871 = vmul.f32 %v1615, %v740
        %v1872 = vmul.f32 %v1616, %v742
        %v1873 = vmul.f32 %v1617, %v744
        %v1874 = vmul.f32 %v1618, %v746
        %v1875 = vmul.f32 %v1619, %v748
        %v1876 = vmul.f32 %v1620, %v750
        %v1877 = vmul.f32 %v1621, %v736
        %v1878 = vmul.f32 %v1622, %v738
        %v1879 = vmul.f32 %v1623, %v740
        %v1880 = vmul.f32 %v1624, %v742
        %v1881 = vmul.f32 %v1625, %v744
        %v1882 = vmul.f32 %v1626, %v746
        %v1883 = vmul.f32 %v1627, %v748
        %v1884 = vmul.f32 %v1628, %v750
        %v1885 = vmul.f32 %v1629, %v736
        %v1886 = vmul.f32 %v1630, %v738
        %v1887 = vmul.f32 %v1631, %v740
        %v1888 = vmul.f32 %v1632, %v742
        %v1889 = vmul.f32 %v1633, %v744
        %v1890 = vmul.f32 %v1634, %v746
        %v1891 = vmul.f32 %v1635, %v748
        %v1892 = vmul.f32 %v1636, %v750
        %v1893 = vmul.f32 %v1637, %v736
        %v1894 = vmul.f32 %v1638, %v738
        %v1895 = vmul.f32 %v1639, %v740
        %v1896 = vmul.f32 %v1640, %v742
        %v1897 = vmul.f32 %v1641, %v744
        %v1898 = vmul.f32 %v1642, %v746
        %v1899 = vmul.f32 %v1643, %v748
        %v1900 = vmul.f32 %v1644, %v750
        %v1901 = vmul.f32 %v1645, %v736
        %v1902 = vmul.f32 %v1646, %v738
        %v1903 = vmul.f32 %v1647, %v740
        %v1904 = vmul.f32 %v1648, %v742
        %v1905 = vmul.f32 %v1649, %v744
        %v1906 = vmul.f32 %v1650, %v746
        %v1907 = vmul.f32 %v1651, %v748
        %v1908 = vmul.f32 %v1652, %v750
        %v1909 = vmul.f32 %v1653, %v736
        %v1910 = vmul.f32 %v1654, %v738
        %v1911 = vmul.f32 %v1655, %v740
        %v1912 = vmul.f32 %v1656, %v742
        %v1913 = vmul.f32 %v1657, %v744
        %v1914 = vmul.f32 %v1658, %v746
        %v1915 = vmul.f32 %v1659, %v748
        %v1916 = vmul.f32 %v1660, %v750
        %v1917 = vmul.f32 %v1661, %v736
        %v1918 = vmul.f32 %v1662, %v738
        %v1919 = vmul.f32 %v1663, %v740
        %v1920 = vmul.f32 %v1664, %v742
        %v1921 = vmul.f32 %v1665, %v744
        %v1922 = vmul.f32 %v1666, %v746
        %v1923 = vmul.f32 %v1667, %v748
        %v1924 = vmul.f32 %v1668, %v750
        %v1925 = vmul.f32 %v1669, %v736
        %v1926 = vmul.f32 %v1670, %v738
        %v1927 = vmul.f32 %v1671, %v740
        %v1928 = vmul.f32 %v1672, %v742
        %v1929 = vmul.f32 %v1673, %v744
        %v1930 = vmul.f32 %v1674, %v746
        %v1931 = vmul.f32 %v1675, %v748
        %v1932 = vmul.f32 %v1676, %v750
        %v1933 = vmul.f32 %v1677, %v736
        %v1934 = vmul.f32 %v1678, %v738
        %v1935 = vmul.f32 %v1679, %v740
        %v1936 = vmul.f32 %v1680, %v742
        %v1937 = vmul.f32 %v1681, %v744
        %v1938 = vmul.f32 %v1682, %v746
        %v1939 = vmul.f32 %v1683, %v748
        %v1940 = vmul.f32 %v1684, %v750
        %v1941 = vmul.f32 %v1685, %v736
        %v1942 = vmul.f32 %v1686, %v738
        %v1943 = vmul.f32 %v1687, %v740
        %v1944 = vmul.f32 %v1688, %v742
        %v1945 = vmul.f32 %v1689, %v744
        %v1946 = vmul.f32 %v1690, %v746
        %v1947 = vmul.f32 %v1691, %v748
        %v1948 = vmul.f32 %v1692, %v750
        %v1949 = vsub.f32 %v1281, %v1821
        %v1950 = vsub.f32 %v1282, %v1822
        %v1951 = vsub.f32 %v1283, %v1823
        %v1952 = vsub.f32 %v1284, %v1824
        %v1953 = vsub.f32 %v1285, %v1825
        %v1954 = vsub.f32 %v1286, %v1826
        %v1955 = vsub.f32 %v1287, %v1827
        %v1956 = vsub.f32 %v1288, %v1828
        %v1957 = vsub.f32 %v1289, %v1829
        %v1958 = vsub.f32 %v1290, %v1830
        %v1959 = vsub.f32 %v1291, %v1831
        %v1960 = vsub.f32 %v1292, %v1832
        %v1961 = vsub.f32 %v1293, %v1833
        %v1962 = vsub.f32 %v1294, %v1834
        %v1963 = vsub.f32 %v1295, %v1835
        %v1964 = vsub.f32 %v1296, %v1836
        %v1965 = vsub.f32 %v1297, %v1837
        %v1966 = vsub.f32 %v1298, %v1838
        %v1967 = vsub.f32 %v1299, %v1839
        %v1968 = vsub.f32 %v1300, %v1840
        %v1969 = vsub.f32 %v1301, %v1841
        %v1970 = vsub.f32 %v1302, %v1842
        %v1971 = vsub.f32 %v1303, %v1843
        %v1972 = vsub.f32 %v1304, %v1844
        %v1973 = vsub.f32 %v1305, %v1845
        %v1974 = vsub.f32 %v1306, %v1846
        %v1975 = vsub.f32 %v1307, %v1847
        %v1976 = vsub.f32 %v1308, %v1848
        %v1977 = vsub.f32 %v1309, %v1849
        %v1978 = vsub.f32 %v1310, %v1850
        %v1979 = vsub.f32 %v1311, %v1851
        %v1980 = vsub.f32 %v1312, %v1852
        %v1981 = vsub.f32 %v1313, %v1853
        %v1982 = vsub.f32 %v1314, %v1854
        %v1983 = vsub.f32 %v1315, %v1855
        %v1984 = vsub.f32 %v1316, %v1856
        %v1985 = vsub.f32 %v1317, %v1857
        %v1986 = vsub.f32 %v1318, %v1858
        %v1987 = vsub.f32 %v1319, %v1859
        %v1988 = vsub.f32 %v1320, %v1860
        %v1989 = vsub.f32 %v1321, %v1861
        %v1990 = vsub.f32 %v1322, %v1862
        %v1991 = vsub.f32 %v1323, %v1863
        %v1992 = vsub.f32 %v1324, %v1864
        %v1993 = vsub.f32 %v1325, %v1865
        %v1994 = vsub.f32 %v1326, %v1866
        %v1995 = vsub.f32 %v1327, %v1867
        %v1996 = vsub.f32 %v1328, %v1868
        %v1997 = vsub.f32 %v1329, %v1869
        %v1998 = vsub.f32 %v1330, %v1870
        %v1999 = vsub.f32 %v1331, %v1871
        %v2000 = vsub.f32 %v1332, %v1872
        %v2001 = vsub.f32 %v1333, %v1873
        %v2002 = vsub.f32 %v1334, %v1874
        %v2003 = vsub.f32 %v1335, %v1875
        %v2004 = vsub.f32 %v1336, %v1876
        %v2005 = vsub.f32 %v1337, %v1877
        %v2006 = vsub.f32 %v1338, %v1878
        %v2007 = vsub.f32 %v1339, %v1879
        %v2008 = vsub.f32 %v1340, %v1880
        %v2009 = vsub.f32 %v1341, %v1881
        %v2010 = vsub.f32 %v1342, %v1882
        %v2011 = vsub.f32 %v1343, %v1883
        %v2012 = vsub.f32 %v1344, %v1884
        %v2013 = vsub.f32 %v1345, %v1885
        %v2014 = vsub.f32 %v1346, %v1886
        %v2015 = vsub.f32 %v1347, %v1887
        %v2016 = vsub.f32 %v1348, %v1888
        %v2017 = vsub.f32 %v1349, %v1889
        %v2018 = vsub.f32 %v1350, %v1890
        %v2019 = vsub.f32 %v1351, %v1891
        %v2020 = vsub.f32 %v1352, %v1892
        %v2021 = vsub.f32 %v1353, %v1893
        %v2022 = vsub.f32 %v1354, %v1894
        %v2023 = vsub.f32 %v1355, %v1895
        %v2024 = vsub.f32 %v1356, %v1896
        %v2025 = vsub.f32 %v1357, %v1897
        %v2026 = vsub.f32 %v1358, %v1898
        %v2027 = vsub.f32 %v1359, %v1899
        %v2028 = vsub.f32 %v1360, %v1900
        %v2029 = vsub.f32 %v1361, %v1901
        %v2030 = vsub.f32 %v1362, %v1902
        %v2031 = vsub.f32 %v1363, %v1903
        %v2032 = vsub.f32 %v1364, %v1904
        %v2033 = vsub.f32 %v1365, %v1905
        %v2034 = vsub.f32 %v1366, %v1906
        %v2035 = vsub.f32 %v1367, %v1907
        %v2036 = vsub.f32 %v1368, %v1908
        %v2037 = vsub.f32 %v1369, %v1909
        %v2038 = vsub.f32 %v1370, %v1910
        %v2039 = vsub.f32 %v1371, %v1911
        %v2040 = vsub.f32 %v1372, %v1912
        %v2041 = vsub.f32 %v1373, %v1913
        %v2042 = vsub.f32 %v1374, %v1914
        %v2043 = vsub.f32 %v1375, %v1915
        %v2044 = vsub.f32 %v1376, %v1916
        %v2045 = vsub.f32 %v1377, %v1917
        %v2046 = vsub.f32 %v1378, %v1918
        %v2047 = vsub.f32 %v1379, %v1919
        %v2048 = vsub.f32 %v1380, %v1920
        %v2049 = vsub.f32 %v1381, %v1921
        %v2050 = vsub.f32 %v1382, %v1922
        %v2051 = vsub.f32 %v1383, %v1923
        %v2052 = vsub.f32 %v1384, %v1924
        %v2053 = vsub.f32 %v1385, %v1925
        %v2054 = vsub.f32 %v1386, %v1926
        %v2055 = vsub.f32 %v1387, %v1927
        %v2056 = vsub.f32 %v1388, %v1928
        %v2057 = vsub.f32 %v1389, %v1929
        %v2058 = vsub.f32 %v1390, %v1930
        %v2059 = vsub.f32 %v1391, %v1931
        %v2060 = vsub.f32 %v1392, %v1932
        %v2061 = vsub.f32 %v1393, %v1933
        %v2062 = vsub.f32 %v1394, %v1934
        %v2063 = vsub.f32 %v1395, %v1935
        %v2064 = vsub.f32 %v1396, %v1936
        %v2065 = vsub.f32 %v1397, %v1937
        %v2066 = vsub.f32 %v1398, %v1938
        %v2067 = vsub.f32 %v1399, %v1939
        %v2068 = vsub.f32 %v1400, %v1940
        %v2069 = vsub.f32 %v1401, %v1941
        %v2070 = vsub.f32 %v1402, %v1942
        %v2071 = vsub.f32 %v1403, %v1943
        %v2072 = vsub.f32 %v1404, %v1944
        %v2073 = vsub.f32 %v1405, %v1945
        %v2074 = vsub.f32 %v1406, %v1946
        %v2075 = vsub.f32 %v1407, %v1947
        %v2076 = vsub.f32 %v1408, %v1948
        %v2077 = vpack.c.bf16 %v1950, %v1949
        %v2078 = vpack.c.bf16 %v1952, %v1951
        %v2079 = vpack.c.bf16 %v1954, %v1953
        %v2080 = vpack.c.bf16 %v1956, %v1955
        %v2081 = vpack.c.bf16 %v1958, %v1957
        %v2082 = vpack.c.bf16 %v1960, %v1959
        %v2083 = vpack.c.bf16 %v1962, %v1961
        %v2084 = vpack.c.bf16 %v1964, %v1963
        %v2085 = vpack.c.bf16 %v1966, %v1965
        %v2086 = vpack.c.bf16 %v1968, %v1967
        %v2087 = vpack.c.bf16 %v1970, %v1969
        %v2088 = vpack.c.bf16 %v1972, %v1971
        %v2089 = vpack.c.bf16 %v1974, %v1973
        %v2090 = vpack.c.bf16 %v1976, %v1975
        %v2091 = vpack.c.bf16 %v1978, %v1977
        %v2092 = vpack.c.bf16 %v1980, %v1979
        %v2093 = vpack.c.bf16 %v1982, %v1981
        %v2094 = vpack.c.bf16 %v1984, %v1983
        %v2095 = vpack.c.bf16 %v1986, %v1985
        %v2096 = vpack.c.bf16 %v1988, %v1987
        %v2097 = vpack.c.bf16 %v1990, %v1989
        %v2098 = vpack.c.bf16 %v1992, %v1991
        %v2099 = vpack.c.bf16 %v1994, %v1993
        %v2100 = vpack.c.bf16 %v1996, %v1995
        %v2101 = vpack.c.bf16 %v1998, %v1997
        %v2102 = vpack.c.bf16 %v2000, %v1999
        %v2103 = vpack.c.bf16 %v2002, %v2001
        %v2104 = vpack.c.bf16 %v2004, %v2003
        %v2105 = vpack.c.bf16 %v2006, %v2005
        %v2106 = vpack.c.bf16 %v2008, %v2007
        %v2107 = vpack.c.bf16 %v2010, %v2009
        %v2108 = vpack.c.bf16 %v2012, %v2011
        %v2109 = vpack.c.bf16 %v2014, %v2013
        %v2110 = vpack.c.bf16 %v2016, %v2015
        %v2111 = vpack.c.bf16 %v2018, %v2017
        %v2112 = vpack.c.bf16 %v2020, %v2019
        %v2113 = vpack.c.bf16 %v2022, %v2021
        %v2114 = vpack.c.bf16 %v2024, %v2023
        %v2115 = vpack.c.bf16 %v2026, %v2025
        %v2116 = vpack.c.bf16 %v2028, %v2027
        %v2117 = vpack.c.bf16 %v2030, %v2029
        %v2118 = vpack.c.bf16 %v2032, %v2031
        %v2119 = vpack.c.bf16 %v2034, %v2033
        %v2120 = vpack.c.bf16 %v2036, %v2035
        %v2121 = vpack.c.bf16 %v2038, %v2037
        %v2122 = vpack.c.bf16 %v2040, %v2039
        %v2123 = vpack.c.bf16 %v2042, %v2041
        %v2124 = vpack.c.bf16 %v2044, %v2043
        %v2125 = vpack.c.bf16 %v2046, %v2045
        %v2126 = vpack.c.bf16 %v2048, %v2047
        %v2127 = vpack.c.bf16 %v2050, %v2049
        %v2128 = vpack.c.bf16 %v2052, %v2051
        %v2129 = vpack.c.bf16 %v2054, %v2053
        %v2130 = vpack.c.bf16 %v2056, %v2055
        %v2131 = vpack.c.bf16 %v2058, %v2057
        %v2132 = vpack.c.bf16 %v2060, %v2059
        %v2133 = vpack.c.bf16 %v2062, %v2061
        %v2134 = vpack.c.bf16 %v2064, %v2063
        %v2135 = vpack.c.bf16 %v2066, %v2065
        %v2136 = vpack.c.bf16 %v2068, %v2067
        %v2137 = vpack.c.bf16 %v2070, %v2069
        %v2138 = vpack.c.bf16 %v2072, %v2071
        %v2139 = vpack.c.bf16 %v2074, %v2073
        %v2140 = vpack.c.bf16 %v2076, %v2075
        %2141 = vst [vmem:[#allocation2] sm:$0xff] %v2077
        %2142 = vst [vmem:[#allocation2 + $0x8] sm:$0xff] %v2078
        %2143 = vst [vmem:[#allocation2 + $0x10] sm:$0xff] %v2079
        %2144 = vst [vmem:[#allocation2 + $0x18] sm:$0xff] %v2080
        %2145 = vst [vmem:[#allocation2 + $0x40] sm:$0xff] %v2081
        %2146 = vst [vmem:[#allocation2 + $0x48] sm:$0xff] %v2082
        %2147 = vst [vmem:[#allocation2 + $0x50] sm:$0xff] %v2083
        %2148 = vst [vmem:[#allocation2 + $0x58] sm:$0xff] %v2084
        %2149 = vst [vmem:[#allocation2 + $0x80] sm:$0xff] %v2085
        %2150 = vst [vmem:[#allocation2 + $0x88] sm:$0xff] %v2086
        %2151 = vst [vmem:[#allocation2 + $0x90] sm:$0xff] %v2087
        %2152 = vst [vmem:[#allocation2 + $0x98] sm:$0xff] %v2088
        %2153 = vst [vmem:[#allocation2 + $0xc0] sm:$0xff] %v2089
        %2154 = vst [vmem:[#allocation2 + $0xc8] sm:$0xff] %v2090
        %2155 = vst [vmem:[#allocation2 + $0xd0] sm:$0xff] %v2091
        %2156 = vst [vmem:[#allocation2 + $0xd8] sm:$0xff] %v2092
        %2157 = vst [vmem:[#allocation2 + $0x100] sm:$0xff] %v2093
        %2158 = vst [vmem:[#allocation2 + $0x108] sm:$0xff] %v2094
        %2159 = vst [vmem:[#allocation2 + $0x110] sm:$0xff] %v2095
        %2160 = vst [vmem:[#allocation2 + $0x118] sm:$0xff] %v2096
        %2161 = vst [vmem:[#allocation2 + $0x140] sm:$0xff] %v2097
        %2162 = vst [vmem:[#allocation2 + $0x148] sm:$0xff] %v2098
        %2163 = vst [vmem:[#allocation2 + $0x150] sm:$0xff] %v2099
        %2164 = vst [vmem:[#allocation2 + $0x158] sm:$0xff] %v2100
        %2165 = vst [vmem:[#allocation2 + $0x180] sm:$0xff] %v2101
        %2166 = vst [vmem:[#allocation2 + $0x188] sm:$0xff] %v2102
        %2167 = vst [vmem:[#allocation2 + $0x190] sm:$0xff] %v2103
        %2168 = vst [vmem:[#allocation2 + $0x198] sm:$0xff] %v2104
        %2169 = vst [vmem:[#allocation2 + $0x1c0] sm:$0xff] %v2105
        %2170 = vst [vmem:[#allocation2 + $0x1c8] sm:$0xff] %v2106
        %2171 = vst [vmem:[#allocation2 + $0x1d0] sm:$0xff] %v2107
        %2172 = vst [vmem:[#allocation2 + $0x1d8] sm:$0xff] %v2108
        %2173 = vst [vmem:[#allocation2 + $0x200] sm:$0xff] %v2109
        %2174 = vst [vmem:[#allocation2 + $0x208] sm:$0xff] %v2110
        %2175 = vst [vmem:[#allocation2 + $0x210] sm:$0xff] %v2111
        %2176 = vst [vmem:[#allocation2 + $0x218] sm:$0xff] %v2112
        %2177 = vst [vmem:[#allocation2 + $0x240] sm:$0xff] %v2113
        %2178 = vst [vmem:[#allocation2 + $0x248] sm:$0xff] %v2114
        %2179 = vst [vmem:[#allocation2 + $0x250] sm:$0xff] %v2115
        %2180 = vst [vmem:[#allocation2 + $0x258] sm:$0xff] %v2116
        %2181 = vst [vmem:[#allocation2 + $0x280] sm:$0xff] %v2117
        %2182 = vst [vmem:[#allocation2 + $0x288] sm:$0xff] %v2118
        %2183 = vst [vmem:[#allocation2 + $0x290] sm:$0xff] %v2119
        %2184 = vst [vmem:[#allocation2 + $0x298] sm:$0xff] %v2120
        %2185 = vst [vmem:[#allocation2 + $0x2c0] sm:$0xff] %v2121
        %2186 = vst [vmem:[#allocation2 + $0x2c8] sm:$0xff] %v2122
        %2187 = vst [vmem:[#allocation2 + $0x2d0] sm:$0xff] %v2123
        %2188 = vst [vmem:[#allocation2 + $0x2d8] sm:$0xff] %v2124
        %2189 = vst [vmem:[#allocation2 + $0x300] sm:$0xff] %v2125
        %2190 = vst [vmem:[#allocation2 + $0x308] sm:$0xff] %v2126
        %2191 = vst [vmem:[#allocation2 + $0x310] sm:$0xff] %v2127
        %2192 = vst [vmem:[#allocation2 + $0x318] sm:$0xff] %v2128
        %2193 = vst [vmem:[#allocation2 + $0x340] sm:$0xff] %v2129
        %2194 = vst [vmem:[#allocation2 + $0x348] sm:$0xff] %v2130
        %2195 = vst [vmem:[#allocation2 + $0x350] sm:$0xff] %v2131
        %2196 = vst [vmem:[#allocation2 + $0x358] sm:$0xff] %v2132
        %2197 = vst [vmem:[#allocation2 + $0x380] sm:$0xff] %v2133
        %2198 = vst [vmem:[#allocation2 + $0x388] sm:$0xff] %v2134
        %2199 = vst [vmem:[#allocation2 + $0x390] sm:$0xff] %v2135
        %2200 = vst [vmem:[#allocation2 + $0x398] sm:$0xff] %v2136
        %2201 = vst [vmem:[#allocation2 + $0x3c0] sm:$0xff] %v2137
        %2202 = vst [vmem:[#allocation2 + $0x3c8] sm:$0xff] %v2138
        %2203 = vst [vmem:[#allocation2 + $0x3d0] sm:$0xff] %v2139
        %2204 = vst [vmem:[#allocation2 + $0x3d8] sm:$0xff] %v2140
        %v2205 = vpack.c.bf16 %v1822, %v1821
        %v2206 = vpack.c.bf16 %v1824, %v1823
        %v2207 = vpack.c.bf16 %v1826, %v1825
        %v2208 = vpack.c.bf16 %v1828, %v1827
        %v2209 = vpack.c.bf16 %v1830, %v1829
        %v2210 = vpack.c.bf16 %v1832, %v1831
        %v2211 = vpack.c.bf16 %v1834, %v1833
        %v2212 = vpack.c.bf16 %v1836, %v1835
        %v2213 = vpack.c.bf16 %v1838, %v1837
        %v2214 = vpack.c.bf16 %v1840, %v1839
        %v2215 = vpack.c.bf16 %v1842, %v1841
        %v2216 = vpack.c.bf16 %v1844, %v1843
        %v2217 = vpack.c.bf16 %v1846, %v1845
        %v2218 = vpack.c.bf16 %v1848, %v1847
        %v2219 = vpack.c.bf16 %v1850, %v1849
        %v2220 = vpack.c.bf16 %v1852, %v1851
        %v2221 = vpack.c.bf16 %v1854, %v1853
        %v2222 = vpack.c.bf16 %v1856, %v1855
        %v2223 = vpack.c.bf16 %v1858, %v1857
        %v2224 = vpack.c.bf16 %v1860, %v1859
        %v2225 = vpack.c.bf16 %v1862, %v1861
        %v2226 = vpack.c.bf16 %v1864, %v1863
        %v2227 = vpack.c.bf16 %v1866, %v1865
        %v2228 = vpack.c.bf16 %v1868, %v1867
        %v2229 = vpack.c.bf16 %v1870, %v1869
        %v2230 = vpack.c.bf16 %v1872, %v1871
        %v2231 = vpack.c.bf16 %v1874, %v1873
        %v2232 = vpack.c.bf16 %v1876, %v1875
        %v2233 = vpack.c.bf16 %v1878, %v1877
        %v2234 = vpack.c.bf16 %v1880, %v1879
        %v2235 = vpack.c.bf16 %v1882, %v1881
        %v2236 = vpack.c.bf16 %v1884, %v1883
        %v2237 = vpack.c.bf16 %v1886, %v1885
        %v2238 = vpack.c.bf16 %v1888, %v1887
        %v2239 = vpack.c.bf16 %v1890, %v1889
        %v2240 = vpack.c.bf16 %v1892, %v1891
        %v2241 = vpack.c.bf16 %v1894, %v1893
        %v2242 = vpack.c.bf16 %v1896, %v1895
        %v2243 = vpack.c.bf16 %v1898, %v1897
        %v2244 = vpack.c.bf16 %v1900, %v1899
        %v2245 = vpack.c.bf16 %v1902, %v1901
        %v2246 = vpack.c.bf16 %v1904, %v1903
        %v2247 = vpack.c.bf16 %v1906, %v1905
        %v2248 = vpack.c.bf16 %v1908, %v1907
        %v2249 = vpack.c.bf16 %v1910, %v1909
        %v2250 = vpack.c.bf16 %v1912, %v1911
        %v2251 = vpack.c.bf16 %v1914, %v1913
        %v2252 = vpack.c.bf16 %v1916, %v1915
        %v2253 = vpack.c.bf16 %v1918, %v1917
        %v2254 = vpack.c.bf16 %v1920, %v1919
        %v2255 = vpack.c.bf16 %v1922, %v1921
        %v2256 = vpack.c.bf16 %v1924, %v1923
        %v2257 = vpack.c.bf16 %v1926, %v1925
        %v2258 = vpack.c.bf16 %v1928, %v1927
        %v2259 = vpack.c.bf16 %v1930, %v1929
        %v2260 = vpack.c.bf16 %v1932, %v1931
        %v2261 = vpack.c.bf16 %v1934, %v1933
        %v2262 = vpack.c.bf16 %v1936, %v1935
        %v2263 = vpack.c.bf16 %v1938, %v1937
        %v2264 = vpack.c.bf16 %v1940, %v1939
        %v2265 = vpack.c.bf16 %v1942, %v1941
        %v2266 = vpack.c.bf16 %v1944, %v1943
        %v2267 = vpack.c.bf16 %v1946, %v1945
        %v2268 = vpack.c.bf16 %v1948, %v1947
        %2269 = vst [vmem:[#allocation2 + $0x20] sm:$0xff] %v2205
        %2270 = vst [vmem:[#allocation2 + $0x28] sm:$0xff] %v2206
        %2271 = vst [vmem:[#allocation2 + $0x30] sm:$0xff] %v2207
        %2272 = vst [vmem:[#allocation2 + $0x38] sm:$0xff] %v2208
        %2273 = vst [vmem:[#allocation2 + $0x60] sm:$0xff] %v2209
        %2274 = vst [vmem:[#allocation2 + $0x68] sm:$0xff] %v2210
        %2275 = vst [vmem:[#allocation2 + $0x70] sm:$0xff] %v2211
        %2276 = vst [vmem:[#allocation2 + $0x78] sm:$0xff] %v2212
        %2277 = vst [vmem:[#allocation2 + $0xa0] sm:$0xff] %v2213
        %2278 = vst [vmem:[#allocation2 + $0xa8] sm:$0xff] %v2214
        %2279 = vst [vmem:[#allocation2 + $0xb0] sm:$0xff] %v2215
        %2280 = vst [vmem:[#allocation2 + $0xb8] sm:$0xff] %v2216
        %2281 = vst [vmem:[#allocation2 + $0xe0] sm:$0xff] %v2217
        %2282 = vst [vmem:[#allocation2 + $0xe8] sm:$0xff] %v2218
        %2283 = vst [vmem:[#allocation2 + $0xf0] sm:$0xff] %v2219
        %2284 = vst [vmem:[#allocation2 + $0xf8] sm:$0xff] %v2220
        %2285 = vst [vmem:[#allocation2 + $0x120] sm:$0xff] %v2221
        %2286 = vst [vmem:[#allocation2 + $0x128] sm:$0xff] %v2222
        %2287 = vst [vmem:[#allocation2 + $0x130] sm:$0xff] %v2223
        %2288 = vst [vmem:[#allocation2 + $0x138] sm:$0xff] %v2224
        %2289 = vst [vmem:[#allocation2 + $0x160] sm:$0xff] %v2225
        %2290 = vst [vmem:[#allocation2 + $0x168] sm:$0xff] %v2226
        %2291 = vst [vmem:[#allocation2 + $0x170] sm:$0xff] %v2227
        %2292 = vst [vmem:[#allocation2 + $0x178] sm:$0xff] %v2228
        %2293 = vst [vmem:[#allocation2 + $0x1a0] sm:$0xff] %v2229
        %2294 = vst [vmem:[#allocation2 + $0x1a8] sm:$0xff] %v2230
        %2295 = vst [vmem:[#allocation2 + $0x1b0] sm:$0xff] %v2231
        %2296 = vst [vmem:[#allocation2 + $0x1b8] sm:$0xff] %v2232
        %2297 = vst [vmem:[#allocation2 + $0x1e0] sm:$0xff] %v2233
        %2298 = vst [vmem:[#allocation2 + $0x1e8] sm:$0xff] %v2234
        %2299 = vst [vmem:[#allocation2 + $0x1f0] sm:$0xff] %v2235
        %2300 = vst [vmem:[#allocation2 + $0x1f8] sm:$0xff] %v2236
        %2301 = vst [vmem:[#allocation2 + $0x220] sm:$0xff] %v2237
        %2302 = vst [vmem:[#allocation2 + $0x228] sm:$0xff] %v2238
        %2303 = vst [vmem:[#allocation2 + $0x230] sm:$0xff] %v2239
        %2304 = vst [vmem:[#allocation2 + $0x238] sm:$0xff] %v2240
        %2305 = vst [vmem:[#allocation2 + $0x260] sm:$0xff] %v2241
        %2306 = vst [vmem:[#allocation2 + $0x268] sm:$0xff] %v2242
        %2307 = vst [vmem:[#allocation2 + $0x270] sm:$0xff] %v2243
        %2308 = vst [vmem:[#allocation2 + $0x278] sm:$0xff] %v2244
        %2309 = vst [vmem:[#allocation2 + $0x2a0] sm:$0xff] %v2245
        %2310 = vst [vmem:[#allocation2 + $0x2a8] sm:$0xff] %v2246
        %2311 = vst [vmem:[#allocation2 + $0x2b0] sm:$0xff] %v2247
        %2312 = vst [vmem:[#allocation2 + $0x2b8] sm:$0xff] %v2248
        %2313 = vst [vmem:[#allocation2 + $0x2e0] sm:$0xff] %v2249
        %2314 = vst [vmem:[#allocation2 + $0x2e8] sm:$0xff] %v2250
        %2315 = vst [vmem:[#allocation2 + $0x2f0] sm:$0xff] %v2251
        %2316 = vst [vmem:[#allocation2 + $0x2f8] sm:$0xff] %v2252
        %2317 = vst [vmem:[#allocation2 + $0x320] sm:$0xff] %v2253
        %2318 = vst [vmem:[#allocation2 + $0x328] sm:$0xff] %v2254
        %2319 = vst [vmem:[#allocation2 + $0x330] sm:$0xff] %v2255
        %2320 = vst [vmem:[#allocation2 + $0x338] sm:$0xff] %v2256
        %2321 = vst [vmem:[#allocation2 + $0x360] sm:$0xff] %v2257
        %2322 = vst [vmem:[#allocation2 + $0x368] sm:$0xff] %v2258
        %2323 = vst [vmem:[#allocation2 + $0x370] sm:$0xff] %v2259
        %2324 = vst [vmem:[#allocation2 + $0x378] sm:$0xff] %v2260
        %2325 = vst [vmem:[#allocation2 + $0x3a0] sm:$0xff] %v2261
        %2326 = vst [vmem:[#allocation2 + $0x3a8] sm:$0xff] %v2262
        %2327 = vst [vmem:[#allocation2 + $0x3b0] sm:$0xff] %v2263
        %2328 = vst [vmem:[#allocation2 + $0x3b8] sm:$0xff] %v2264
        %2329 = vst [vmem:[#allocation2 + $0x3e0] sm:$0xff] %v2265
        %2330 = vst [vmem:[#allocation2 + $0x3e8] sm:$0xff] %v2266
        %2331 = vst [vmem:[#allocation2 + $0x3f0] sm:$0xff] %v2267
        %2332 = vst [vmem:[#allocation2 + $0x3f8] sm:$0xff] %v2268
        %v2333 = vld [vmem:[#allocation6] sm:$0xf]
        %v2334 = vld [vmem:[#allocation6 + $0x4] sm:$0xf]
        %v2335 = vld [vmem:[#allocation2] sm:$0xff]
        %v2336 = vld [vmem:[#allocation2 + $0x8] sm:$0xff]
        %v2337 = vld [vmem:[#allocation2 + $0x10] sm:$0xff]
        %v2338 = vld [vmem:[#allocation2 + $0x18] sm:$0xff]
        %v2339 = vld [vmem:[#allocation2 + $0x20] sm:$0xff]
        %v2340 = vld [vmem:[#allocation2 + $0x28] sm:$0xff]
        %v2341 = vld [vmem:[#allocation2 + $0x30] sm:$0xff]
        %v2342 = vld [vmem:[#allocation2 + $0x38] sm:$0xff]
        %v2343 = vld [vmem:[#allocation2 + $0x40] sm:$0xff]
        %v2344 = vld [vmem:[#allocation2 + $0x48] sm:$0xff]
        %v2345 = vld [vmem:[#allocation2 + $0x50] sm:$0xff]
        %v2346 = vld [vmem:[#allocation2 + $0x58] sm:$0xff]
        %v2347 = vld [vmem:[#allocation2 + $0x60] sm:$0xff]
        %v2348 = vld [vmem:[#allocation2 + $0x68] sm:$0xff]
        %v2349 = vld [vmem:[#allocation2 + $0x70] sm:$0xff]
        %v2350 = vld [vmem:[#allocation2 + $0x78] sm:$0xff]
        %v2351 = vld [vmem:[#allocation2 + $0x80] sm:$0xff]
        %v2352 = vld [vmem:[#allocation2 + $0x88] sm:$0xff]
        %v2353 = vld [vmem:[#allocation2 + $0x90] sm:$0xff]
        %v2354 = vld [vmem:[#allocation2 + $0x98] sm:$0xff]
        %v2355 = vld [vmem:[#allocation2 + $0xa0] sm:$0xff]
        %v2356 = vld [vmem:[#allocation2 + $0xa8] sm:$0xff]
        %v2357 = vld [vmem:[#allocation2 + $0xb0] sm:$0xff]
        %v2358 = vld [vmem:[#allocation2 + $0xb8] sm:$0xff]
        %v2359 = vld [vmem:[#allocation2 + $0xc0] sm:$0xff]
        %v2360 = vld [vmem:[#allocation2 + $0xc8] sm:$0xff]
        %v2361 = vld [vmem:[#allocation2 + $0xd0] sm:$0xff]
        %v2362 = vld [vmem:[#allocation2 + $0xd8] sm:$0xff]
        %v2363 = vld [vmem:[#allocation2 + $0xe0] sm:$0xff]
        %v2364 = vld [vmem:[#allocation2 + $0xe8] sm:$0xff]
        %v2365 = vld [vmem:[#allocation2 + $0xf0] sm:$0xff]
        %v2366 = vld [vmem:[#allocation2 + $0xf8] sm:$0xff]
        %v2367 = vld [vmem:[#allocation2 + $0x100] sm:$0xff]
        %v2368 = vld [vmem:[#allocation2 + $0x108] sm:$0xff]
        %v2369 = vld [vmem:[#allocation2 + $0x110] sm:$0xff]
        %v2370 = vld [vmem:[#allocation2 + $0x118] sm:$0xff]
        %v2371 = vld [vmem:[#allocation2 + $0x120] sm:$0xff]
        %v2372 = vld [vmem:[#allocation2 + $0x128] sm:$0xff]
        %v2373 = vld [vmem:[#allocation2 + $0x130] sm:$0xff]
        %v2374 = vld [vmem:[#allocation2 + $0x138] sm:$0xff]
        %v2375 = vld [vmem:[#allocation2 + $0x140] sm:$0xff]
        %v2376 = vld [vmem:[#allocation2 + $0x148] sm:$0xff]
        %v2377 = vld [vmem:[#allocation2 + $0x150] sm:$0xff]
        %v2378 = vld [vmem:[#allocation2 + $0x158] sm:$0xff]
        %v2379 = vld [vmem:[#allocation2 + $0x160] sm:$0xff]
        %v2380 = vld [vmem:[#allocation2 + $0x168] sm:$0xff]
        %v2381 = vld [vmem:[#allocation2 + $0x170] sm:$0xff]
        %v2382 = vld [vmem:[#allocation2 + $0x178] sm:$0xff]
        %v2383 = vld [vmem:[#allocation2 + $0x180] sm:$0xff]
        %v2384 = vld [vmem:[#allocation2 + $0x188] sm:$0xff]
        %v2385 = vld [vmem:[#allocation2 + $0x190] sm:$0xff]
        %v2386 = vld [vmem:[#allocation2 + $0x198] sm:$0xff]
        %v2387 = vld [vmem:[#allocation2 + $0x1a0] sm:$0xff]
        %v2388 = vld [vmem:[#allocation2 + $0x1a8] sm:$0xff]
        %v2389 = vld [vmem:[#allocation2 + $0x1b0] sm:$0xff]
        %v2390 = vld [vmem:[#allocation2 + $0x1b8] sm:$0xff]
        %v2391 = vld [vmem:[#allocation2 + $0x1c0] sm:$0xff]
        %v2392 = vld [vmem:[#allocation2 + $0x1c8] sm:$0xff]
        %v2393 = vld [vmem:[#allocation2 + $0x1d0] sm:$0xff]
        %v2394 = vld [vmem:[#allocation2 + $0x1d8] sm:$0xff]
        %v2395 = vld [vmem:[#allocation2 + $0x1e0] sm:$0xff]
        %v2396 = vld [vmem:[#allocation2 + $0x1e8] sm:$0xff]
        %v2397 = vld [vmem:[#allocation2 + $0x1f0] sm:$0xff]
        %v2398 = vld [vmem:[#allocation2 + $0x1f8] sm:$0xff]
        %v2399 = vld [vmem:[#allocation2 + $0x200] sm:$0xff]
        %v2400 = vld [vmem:[#allocation2 + $0x208] sm:$0xff]
        %v2401 = vld [vmem:[#allocation2 + $0x210] sm:$0xff]
        %v2402 = vld [vmem:[#allocation2 + $0x218] sm:$0xff]
        %v2403 = vld [vmem:[#allocation2 + $0x220] sm:$0xff]
        %v2404 = vld [vmem:[#allocation2 + $0x228] sm:$0xff]
        %v2405 = vld [vmem:[#allocation2 + $0x230] sm:$0xff]
        %v2406 = vld [vmem:[#allocation2 + $0x238] sm:$0xff]
        %v2407 = vld [vmem:[#allocation2 + $0x240] sm:$0xff]
        %v2408 = vld [vmem:[#allocation2 + $0x248] sm:$0xff]
        %v2409 = vld [vmem:[#allocation2 + $0x250] sm:$0xff]
        %v2410 = vld [vmem:[#allocation2 + $0x258] sm:$0xff]
        %v2411 = vld [vmem:[#allocation2 + $0x260] sm:$0xff]
        %v2412 = vld [vmem:[#allocation2 + $0x268] sm:$0xff]
        %v2413 = vld [vmem:[#allocation2 + $0x270] sm:$0xff]
        %v2414 = vld [vmem:[#allocation2 + $0x278] sm:$0xff]
        %v2415 = vld [vmem:[#allocation2 + $0x280] sm:$0xff]
        %v2416 = vld [vmem:[#allocation2 + $0x288] sm:$0xff]
        %v2417 = vld [vmem:[#allocation2 + $0x290] sm:$0xff]
        %v2418 = vld [vmem:[#allocation2 + $0x298] sm:$0xff]
        %v2419 = vld [vmem:[#allocation2 + $0x2a0] sm:$0xff]
        %v2420 = vld [vmem:[#allocation2 + $0x2a8] sm:$0xff]
        %v2421 = vld [vmem:[#allocation2 + $0x2b0] sm:$0xff]
        %v2422 = vld [vmem:[#allocation2 + $0x2b8] sm:$0xff]
        %v2423 = vld [vmem:[#allocation2 + $0x2c0] sm:$0xff]
        %v2424 = vld [vmem:[#allocation2 + $0x2c8] sm:$0xff]
        %v2425 = vld [vmem:[#allocation2 + $0x2d0] sm:$0xff]
        %v2426 = vld [vmem:[#allocation2 + $0x2d8] sm:$0xff]
        %v2427 = vld [vmem:[#allocation2 + $0x2e0] sm:$0xff]
        %v2428 = vld [vmem:[#allocation2 + $0x2e8] sm:$0xff]
        %v2429 = vld [vmem:[#allocation2 + $0x2f0] sm:$0xff]
        %v2430 = vld [vmem:[#allocation2 + $0x2f8] sm:$0xff]
        %v2431 = vld [vmem:[#allocation2 + $0x300] sm:$0xff]
        %v2432 = vld [vmem:[#allocation2 + $0x308] sm:$0xff]
        %v2433 = vld [vmem:[#allocation2 + $0x310] sm:$0xff]
        %v2434 = vld [vmem:[#allocation2 + $0x318] sm:$0xff]
        %v2435 = vld [vmem:[#allocation2 + $0x320] sm:$0xff]
        %v2436 = vld [vmem:[#allocation2 + $0x328] sm:$0xff]
        %v2437 = vld [vmem:[#allocation2 + $0x330] sm:$0xff]
        %v2438 = vld [vmem:[#allocation2 + $0x338] sm:$0xff]
        %v2439 = vld [vmem:[#allocation2 + $0x340] sm:$0xff]
        %v2440 = vld [vmem:[#allocation2 + $0x348] sm:$0xff]
        %v2441 = vld [vmem:[#allocation2 + $0x350] sm:$0xff]
        %v2442 = vld [vmem:[#allocation2 + $0x358] sm:$0xff]
        %v2443 = vld [vmem:[#allocation2 + $0x360] sm:$0xff]
        %v2444 = vld [vmem:[#allocation2 + $0x368] sm:$0xff]
        %v2445 = vld [vmem:[#allocation2 + $0x370] sm:$0xff]
        %v2446 = vld [vmem:[#allocation2 + $0x378] sm:$0xff]
        %v2447 = vld [vmem:[#allocation2 + $0x380] sm:$0xff]
        %v2448 = vld [vmem:[#allocation2 + $0x388] sm:$0xff]
        %v2449 = vld [vmem:[#allocation2 + $0x390] sm:$0xff]
        %v2450 = vld [vmem:[#allocation2 + $0x398] sm:$0xff]
        %v2451 = vld [vmem:[#allocation2 + $0x3a0] sm:$0xff]
        %v2452 = vld [vmem:[#allocation2 + $0x3a8] sm:$0xff]
        %v2453 = vld [vmem:[#allocation2 + $0x3b0] sm:$0xff]
        %v2454 = vld [vmem:[#allocation2 + $0x3b8] sm:$0xff]
        %v2455 = vld [vmem:[#allocation2 + $0x3c0] sm:$0xff]
        %v2456 = vld [vmem:[#allocation2 + $0x3c8] sm:$0xff]
        %v2457 = vld [vmem:[#allocation2 + $0x3d0] sm:$0xff]
        %v2458 = vld [vmem:[#allocation2 + $0x3d8] sm:$0xff]
        %v2459 = vld [vmem:[#allocation2 + $0x3e0] sm:$0xff]
        %v2460 = vld [vmem:[#allocation2 + $0x3e8] sm:$0xff]
        %v2461 = vld [vmem:[#allocation2 + $0x3f0] sm:$0xff]
        %v2462 = vld [vmem:[#allocation2 + $0x3f8] sm:$0xff]
        %v2465 = vunpack.c.l.b16 %v2333
        %v2466 = vunpack.c.l.b16 %v2334
        %v2467 = vpack.c.b16 %v2466, %v2465
        %v2597 = vunpack.c.l.b16 %v2335
        %v2598 = vunpack.c.h.b16 %v2335
        %v2599 = vunpack.c.l.b16 %v2336
        %v2600 = vunpack.c.h.b16 %v2336
        %v2601 = vunpack.c.l.b16 %v2337
        %v2602 = vunpack.c.h.b16 %v2337
        %v2603 = vunpack.c.l.b16 %v2338
        %v2604 = vunpack.c.h.b16 %v2338
        %v2605 = vunpack.c.l.b16 %v2339
        %v2606 = vunpack.c.h.b16 %v2339
        %v2607 = vunpack.c.l.b16 %v2340
        %v2608 = vunpack.c.h.b16 %v2340
        %v2609 = vunpack.c.l.b16 %v2341
        %v2610 = vunpack.c.h.b16 %v2341
        %v2611 = vunpack.c.l.b16 %v2342
        %v2612 = vunpack.c.h.b16 %v2342
        %v2613 = vunpack.c.l.b16 %v2343
        %v2614 = vunpack.c.h.b16 %v2343
        %v2615 = vunpack.c.l.b16 %v2344
        %v2616 = vunpack.c.h.b16 %v2344
        %v2617 = vunpack.c.l.b16 %v2345
        %v2618 = vunpack.c.h.b16 %v2345
        %v2619 = vunpack.c.l.b16 %v2346
        %v2620 = vunpack.c.h.b16 %v2346
        %v2621 = vunpack.c.l.b16 %v2347
        %v2622 = vunpack.c.h.b16 %v2347
        %v2623 = vunpack.c.l.b16 %v2348
        %v2624 = vunpack.c.h.b16 %v2348
        %v2625 = vunpack.c.l.b16 %v2349
        %v2626 = vunpack.c.h.b16 %v2349
        %v2627 = vunpack.c.l.b16 %v2350
        %v2628 = vunpack.c.h.b16 %v2350
        %v2629 = vunpack.c.l.b16 %v2351
        %v2630 = vunpack.c.h.b16 %v2351
        %v2631 = vunpack.c.l.b16 %v2352
        %v2632 = vunpack.c.h.b16 %v2352
        %v2633 = vunpack.c.l.b16 %v2353
        %v2634 = vunpack.c.h.b16 %v2353
        %v2635 = vunpack.c.l.b16 %v2354
        %v2636 = vunpack.c.h.b16 %v2354
        %v2637 = vunpack.c.l.b16 %v2355
        %v2638 = vunpack.c.h.b16 %v2355
        %v2639 = vunpack.c.l.b16 %v2356
        %v2640 = vunpack.c.h.b16 %v2356
        %v2641 = vunpack.c.l.b16 %v2357
        %v2642 = vunpack.c.h.b16 %v2357
        %v2643 = vunpack.c.l.b16 %v2358
        %v2644 = vunpack.c.h.b16 %v2358
        %v2645 = vunpack.c.l.b16 %v2359
        %v2646 = vunpack.c.h.b16 %v2359
        %v2647 = vunpack.c.l.b16 %v2360
        %v2648 = vunpack.c.h.b16 %v2360
        %v2649 = vunpack.c.l.b16 %v2361
        %v2650 = vunpack.c.h.b16 %v2361
        %v2651 = vunpack.c.l.b16 %v2362
        %v2652 = vunpack.c.h.b16 %v2362
        %v2653 = vunpack.c.l.b16 %v2363
        %v2654 = vunpack.c.h.b16 %v2363
        %v2655 = vunpack.c.l.b16 %v2364
        %v2656 = vunpack.c.h.b16 %v2364
        %v2657 = vunpack.c.l.b16 %v2365
        %v2658 = vunpack.c.h.b16 %v2365
        %v2659 = vunpack.c.l.b16 %v2366
        %v2660 = vunpack.c.h.b16 %v2366
        %v2661 = vunpack.c.l.b16 %v2367
        %v2662 = vunpack.c.h.b16 %v2367
        %v2663 = vunpack.c.l.b16 %v2368
        %v2664 = vunpack.c.h.b16 %v2368
        %v2665 = vunpack.c.l.b16 %v2369
        %v2666 = vunpack.c.h.b16 %v2369
        %v2667 = vunpack.c.l.b16 %v2370
        %v2668 = vunpack.c.h.b16 %v2370
        %v2669 = vunpack.c.l.b16 %v2371
        %v2670 = vunpack.c.h.b16 %v2371
        %v2671 = vunpack.c.l.b16 %v2372
        %v2672 = vunpack.c.h.b16 %v2372
        %v2673 = vunpack.c.l.b16 %v2373
        %v2674 = vunpack.c.h.b16 %v2373
        %v2675 = vunpack.c.l.b16 %v2374
        %v2676 = vunpack.c.h.b16 %v2374
        %v2677 = vunpack.c.l.b16 %v2375
        %v2678 = vunpack.c.h.b16 %v2375
        %v2679 = vunpack.c.l.b16 %v2376
        %v2680 = vunpack.c.h.b16 %v2376
        %v2681 = vunpack.c.l.b16 %v2377
        %v2682 = vunpack.c.h.b16 %v2377
        %v2683 = vunpack.c.l.b16 %v2378
        %v2684 = vunpack.c.h.b16 %v2378
        %v2685 = vunpack.c.l.b16 %v2379
        %v2686 = vunpack.c.h.b16 %v2379
        %v2687 = vunpack.c.l.b16 %v2380
        %v2688 = vunpack.c.h.b16 %v2380
        %v2689 = vunpack.c.l.b16 %v2381
        %v2690 = vunpack.c.h.b16 %v2381
        %v2691 = vunpack.c.l.b16 %v2382
        %v2692 = vunpack.c.h.b16 %v2382
        %v2693 = vunpack.c.l.b16 %v2383
        %v2694 = vunpack.c.h.b16 %v2383
        %v2695 = vunpack.c.l.b16 %v2384
        %v2696 = vunpack.c.h.b16 %v2384
        %v2697 = vunpack.c.l.b16 %v2385
        %v2698 = vunpack.c.h.b16 %v2385
        %v2699 = vunpack.c.l.b16 %v2386
        %v2700 = vunpack.c.h.b16 %v2386
        %v2701 = vunpack.c.l.b16 %v2387
        %v2702 = vunpack.c.h.b16 %v2387
        %v2703 = vunpack.c.l.b16 %v2388
        %v2704 = vunpack.c.h.b16 %v2388
        %v2705 = vunpack.c.l.b16 %v2389
        %v2706 = vunpack.c.h.b16 %v2389
        %v2707 = vunpack.c.l.b16 %v2390
        %v2708 = vunpack.c.h.b16 %v2390
        %v2709 = vunpack.c.l.b16 %v2391
        %v2710 = vunpack.c.h.b16 %v2391
        %v2711 = vunpack.c.l.b16 %v2392
        %v2712 = vunpack.c.h.b16 %v2392
        %v2713 = vunpack.c.l.b16 %v2393
        %v2714 = vunpack.c.h.b16 %v2393
        %v2715 = vunpack.c.l.b16 %v2394
        %v2716 = vunpack.c.h.b16 %v2394
        %v2717 = vunpack.c.l.b16 %v2395
        %v2718 = vunpack.c.h.b16 %v2395
        %v2719 = vunpack.c.l.b16 %v2396
        %v2720 = vunpack.c.h.b16 %v2396
        %v2721 = vunpack.c.l.b16 %v2397
        %v2722 = vunpack.c.h.b16 %v2397
        %v2723 = vunpack.c.l.b16 %v2398
        %v2724 = vunpack.c.h.b16 %v2398
        %v2725 = vunpack.c.l.b16 %v2399
        %v2726 = vunpack.c.h.b16 %v2399
        %v2727 = vunpack.c.l.b16 %v2400
        %v2728 = vunpack.c.h.b16 %v2400
        %v2729 = vunpack.c.l.b16 %v2401
        %v2730 = vunpack.c.h.b16 %v2401
        %v2731 = vunpack.c.l.b16 %v2402
        %v2732 = vunpack.c.h.b16 %v2402
        %v2733 = vunpack.c.l.b16 %v2403
        %v2734 = vunpack.c.h.b16 %v2403
        %v2735 = vunpack.c.l.b16 %v2404
        %v2736 = vunpack.c.h.b16 %v2404
        %v2737 = vunpack.c.l.b16 %v2405
        %v2738 = vunpack.c.h.b16 %v2405
        %v2739 = vunpack.c.l.b16 %v2406
        %v2740 = vunpack.c.h.b16 %v2406
        %v2741 = vunpack.c.l.b16 %v2407
        %v2742 = vunpack.c.h.b16 %v2407
        %v2743 = vunpack.c.l.b16 %v2408
        %v2744 = vunpack.c.h.b16 %v2408
        %v2745 = vunpack.c.l.b16 %v2409
        %v2746 = vunpack.c.h.b16 %v2409
        %v2747 = vunpack.c.l.b16 %v2410
        %v2748 = vunpack.c.h.b16 %v2410
        %v2749 = vunpack.c.l.b16 %v2411
        %v2750 = vunpack.c.h.b16 %v2411
        %v2751 = vunpack.c.l.b16 %v2412
        %v2752 = vunpack.c.h.b16 %v2412
        %v2753 = vunpack.c.l.b16 %v2413
        %v2754 = vunpack.c.h.b16 %v2413
        %v2755 = vunpack.c.l.b16 %v2414
        %v2756 = vunpack.c.h.b16 %v2414
        %v2757 = vunpack.c.l.b16 %v2415
        %v2758 = vunpack.c.h.b16 %v2415
        %v2759 = vunpack.c.l.b16 %v2416
        %v2760 = vunpack.c.h.b16 %v2416
        %v2761 = vunpack.c.l.b16 %v2417
        %v2762 = vunpack.c.h.b16 %v2417
        %v2763 = vunpack.c.l.b16 %v2418
        %v2764 = vunpack.c.h.b16 %v2418
        %v2765 = vunpack.c.l.b16 %v2419
        %v2766 = vunpack.c.h.b16 %v2419
        %v2767 = vunpack.c.l.b16 %v2420
        %v2768 = vunpack.c.h.b16 %v2420
        %v2769 = vunpack.c.l.b16 %v2421
        %v2770 = vunpack.c.h.b16 %v2421
        %v2771 = vunpack.c.l.b16 %v2422
        %v2772 = vunpack.c.h.b16 %v2422
        %v2773 = vunpack.c.l.b16 %v2423
        %v2774 = vunpack.c.h.b16 %v2423
        %v2775 = vunpack.c.l.b16 %v2424
        %v2776 = vunpack.c.h.b16 %v2424
        %v2777 = vunpack.c.l.b16 %v2425
        %v2778 = vunpack.c.h.b16 %v2425
        %v2779 = vunpack.c.l.b16 %v2426
        %v2780 = vunpack.c.h.b16 %v2426
        %v2781 = vunpack.c.l.b16 %v2427
        %v2782 = vunpack.c.h.b16 %v2427
        %v2783 = vunpack.c.l.b16 %v2428
        %v2784 = vunpack.c.h.b16 %v2428
        %v2785 = vunpack.c.l.b16 %v2429
        %v2786 = vunpack.c.h.b16 %v2429
        %v2787 = vunpack.c.l.b16 %v2430
        %v2788 = vunpack.c.h.b16 %v2430
        %v2789 = vunpack.c.l.b16 %v2431
        %v2790 = vunpack.c.h.b16 %v2431
        %v2791 = vunpack.c.l.b16 %v2432
        %v2792 = vunpack.c.h.b16 %v2432
        %v2793 = vunpack.c.l.b16 %v2433
        %v2794 = vunpack.c.h.b16 %v2433
        %v2795 = vunpack.c.l.b16 %v2434
        %v2796 = vunpack.c.h.b16 %v2434
        %v2797 = vunpack.c.l.b16 %v2435
        %v2798 = vunpack.c.h.b16 %v2435
        %v2799 = vunpack.c.l.b16 %v2436
        %v2800 = vunpack.c.h.b16 %v2436
        %v2801 = vunpack.c.l.b16 %v2437
        %v2802 = vunpack.c.h.b16 %v2437
        %v2803 = vunpack.c.l.b16 %v2438
        %v2804 = vunpack.c.h.b16 %v2438
        %v2805 = vunpack.c.l.b16 %v2439
        %v2806 = vunpack.c.h.b16 %v2439
        %v2807 = vunpack.c.l.b16 %v2440
        %v2808 = vunpack.c.h.b16 %v2440
        %v2809 = vunpack.c.l.b16 %v2441
        %v2810 = vunpack.c.h.b16 %v2441
        %v2811 = vunpack.c.l.b16 %v2442
        %v2812 = vunpack.c.h.b16 %v2442
        %v2813 = vunpack.c.l.b16 %v2443
        %v2814 = vunpack.c.h.b16 %v2443
        %v2815 = vunpack.c.l.b16 %v2444
        %v2816 = vunpack.c.h.b16 %v2444
        %v2817 = vunpack.c.l.b16 %v2445
        %v2818 = vunpack.c.h.b16 %v2445
        %v2819 = vunpack.c.l.b16 %v2446
        %v2820 = vunpack.c.h.b16 %v2446
        %v2821 = vunpack.c.l.b16 %v2447
        %v2822 = vunpack.c.h.b16 %v2447
        %v2823 = vunpack.c.l.b16 %v2448
        %v2824 = vunpack.c.h.b16 %v2448
        %v2825 = vunpack.c.l.b16 %v2449
        %v2826 = vunpack.c.h.b16 %v2449
        %v2827 = vunpack.c.l.b16 %v2450
        %v2828 = vunpack.c.h.b16 %v2450
        %v2829 = vunpack.c.l.b16 %v2451
        %v2830 = vunpack.c.h.b16 %v2451
        %v2831 = vunpack.c.l.b16 %v2452
        %v2832 = vunpack.c.h.b16 %v2452
        %v2833 = vunpack.c.l.b16 %v2453
        %v2834 = vunpack.c.h.b16 %v2453
        %v2835 = vunpack.c.l.b16 %v2454
        %v2836 = vunpack.c.h.b16 %v2454
        %v2837 = vunpack.c.l.b16 %v2455
        %v2838 = vunpack.c.h.b16 %v2455
        %v2839 = vunpack.c.l.b16 %v2456
        %v2840 = vunpack.c.h.b16 %v2456
        %v2841 = vunpack.c.l.b16 %v2457
        %v2842 = vunpack.c.h.b16 %v2457
        %v2843 = vunpack.c.l.b16 %v2458
        %v2844 = vunpack.c.h.b16 %v2458
        %v2845 = vunpack.c.l.b16 %v2459
        %v2846 = vunpack.c.h.b16 %v2459
        %v2847 = vunpack.c.l.b16 %v2460
        %v2848 = vunpack.c.h.b16 %v2460
        %v2849 = vunpack.c.l.b16 %v2461
        %v2850 = vunpack.c.h.b16 %v2461
        %v2851 = vunpack.c.l.b16 %v2462
        %v2852 = vunpack.c.h.b16 %v2462
        %v2853 = vpack.c.b16 %v2613, %v2597
        %v2854 = vpack.c.b16 %v2614, %v2598
        %v2855 = vpack.c.b16 %v2615, %v2599
        %v2856 = vpack.c.b16 %v2616, %v2600
        %v2857 = vpack.c.b16 %v2617, %v2601
        %v2858 = vpack.c.b16 %v2618, %v2602
        %v2859 = vpack.c.b16 %v2619, %v2603
        %v2860 = vpack.c.b16 %v2620, %v2604
        %v2861 = vpack.c.b16 %v2621, %v2605
        %v2862 = vpack.c.b16 %v2622, %v2606
        %v2863 = vpack.c.b16 %v2623, %v2607
        %v2864 = vpack.c.b16 %v2624, %v2608
        %v2865 = vpack.c.b16 %v2625, %v2609
        %v2866 = vpack.c.b16 %v2626, %v2610
        %v2867 = vpack.c.b16 %v2627, %v2611
        %v2868 = vpack.c.b16 %v2628, %v2612
        %v2869 = vpack.c.b16 %v2645, %v2629
        %v2870 = vpack.c.b16 %v2646, %v2630
        %v2871 = vpack.c.b16 %v2647, %v2631
        %v2872 = vpack.c.b16 %v2648, %v2632
        %v2873 = vpack.c.b16 %v2649, %v2633
        %v2874 = vpack.c.b16 %v2650, %v2634
        %v2875 = vpack.c.b16 %v2651, %v2635
        %v2876 = vpack.c.b16 %v2652, %v2636
        %v2877 = vpack.c.b16 %v2653, %v2637
        %v2878 = vpack.c.b16 %v2654, %v2638
        %v2879 = vpack.c.b16 %v2655, %v2639
        %v2880 = vpack.c.b16 %v2656, %v2640
        %v2881 = vpack.c.b16 %v2657, %v2641
        %v2882 = vpack.c.b16 %v2658, %v2642
        %v2883 = vpack.c.b16 %v2659, %v2643
        %v2884 = vpack.c.b16 %v2660, %v2644
        %v2885 = vpack.c.b16 %v2677, %v2661
        %v2886 = vpack.c.b16 %v2678, %v2662
        %v2887 = vpack.c.b16 %v2679, %v2663
        %v2888 = vpack.c.b16 %v2680, %v2664
        %v2889 = vpack.c.b16 %v2681, %v2665
        %v2890 = vpack.c.b16 %v2682, %v2666
        %v2891 = vpack.c.b16 %v2683, %v2667
        %v2892 = vpack.c.b16 %v2684, %v2668
        %v2893 = vpack.c.b16 %v2685, %v2669
        %v2894 = vpack.c.b16 %v2686, %v2670
        %v2895 = vpack.c.b16 %v2687, %v2671
        %v2896 = vpack.c.b16 %v2688, %v2672
        %v2897 = vpack.c.b16 %v2689, %v2673
        %v2898 = vpack.c.b16 %v2690, %v2674
        %v2899 = vpack.c.b16 %v2691, %v2675
        %v2900 = vpack.c.b16 %v2692, %v2676
        %v2901 = vpack.c.b16 %v2709, %v2693
        %v2902 = vpack.c.b16 %v2710, %v2694
        %v2903 = vpack.c.b16 %v2711, %v2695
        %v2904 = vpack.c.b16 %v2712, %v2696
        %v2905 = vpack.c.b16 %v2713, %v2697
        %v2906 = vpack.c.b16 %v2714, %v2698
        %v2907 = vpack.c.b16 %v2715, %v2699
        %v2908 = vpack.c.b16 %v2716, %v2700
        %v2909 = vpack.c.b16 %v2717, %v2701
        %v2910 = vpack.c.b16 %v2718, %v2702
        %v2911 = vpack.c.b16 %v2719, %v2703
        %v2912 = vpack.c.b16 %v2720, %v2704
        %v2913 = vpack.c.b16 %v2721, %v2705
        %v2914 = vpack.c.b16 %v2722, %v2706
        %v2915 = vpack.c.b16 %v2723, %v2707
        %v2916 = vpack.c.b16 %v2724, %v2708
        %v2917 = vpack.c.b16 %v2741, %v2725
        %v2918 = vpack.c.b16 %v2742, %v2726
        %v2919 = vpack.c.b16 %v2743, %v2727
        %v2920 = vpack.c.b16 %v2744, %v2728
        %v2921 = vpack.c.b16 %v2745, %v2729
        %v2922 = vpack.c.b16 %v2746, %v2730
        %v2923 = vpack.c.b16 %v2747, %v2731
        %v2924 = vpack.c.b16 %v2748, %v2732
        %v2925 = vpack.c.b16 %v2749, %v2733
        %v2926 = vpack.c.b16 %v2750, %v2734
        %v2927 = vpack.c.b16 %v2751, %v2735
        %v2928 = vpack.c.b16 %v2752, %v2736
        %v2929 = vpack.c.b16 %v2753, %v2737
        %v2930 = vpack.c.b16 %v2754, %v2738
        %v2931 = vpack.c.b16 %v2755, %v2739
        %v2932 = vpack.c.b16 %v2756, %v2740
        %v2933 = vpack.c.b16 %v2773, %v2757
        %v2934 = vpack.c.b16 %v2774, %v2758
        %v2935 = vpack.c.b16 %v2775, %v2759
        %v2936 = vpack.c.b16 %v2776, %v2760
        %v2937 = vpack.c.b16 %v2777, %v2761
        %v2938 = vpack.c.b16 %v2778, %v2762
        %v2939 = vpack.c.b16 %v2779, %v2763
        %v2940 = vpack.c.b16 %v2780, %v2764
        %v2941 = vpack.c.b16 %v2781, %v2765
        %v2942 = vpack.c.b16 %v2782, %v2766
        %v2943 = vpack.c.b16 %v2783, %v2767
        %v2944 = vpack.c.b16 %v2784, %v2768
        %v2945 = vpack.c.b16 %v2785, %v2769
        %v2946 = vpack.c.b16 %v2786, %v2770
        %v2947 = vpack.c.b16 %v2787, %v2771
        %v2948 = vpack.c.b16 %v2788, %v2772
        %v2949 = vpack.c.b16 %v2805, %v2789
        %v2950 = vpack.c.b16 %v2806, %v2790
        %v2951 = vpack.c.b16 %v2807, %v2791
        %v2952 = vpack.c.b16 %v2808, %v2792
        %v2953 = vpack.c.b16 %v2809, %v2793
        %v2954 = vpack.c.b16 %v2810, %v2794
        %v2955 = vpack.c.b16 %v2811, %v2795
        %v2956 = vpack.c.b16 %v2812, %v2796
        %v2957 = vpack.c.b16 %v2813, %v2797
        %v2958 = vpack.c.b16 %v2814, %v2798
        %v2959 = vpack.c.b16 %v2815, %v2799
        %v2960 = vpack.c.b16 %v2816, %v2800
        %v2961 = vpack.c.b16 %v2817, %v2801
        %v2962 = vpack.c.b16 %v2818, %v2802
        %v2963 = vpack.c.b16 %v2819, %v2803
        %v2964 = vpack.c.b16 %v2820, %v2804
        %v2965 = vpack.c.b16 %v2837, %v2821
        %v2966 = vpack.c.b16 %v2838, %v2822
        %v2967 = vpack.c.b16 %v2839, %v2823
        %v2968 = vpack.c.b16 %v2840, %v2824
        %v2969 = vpack.c.b16 %v2841, %v2825
        %v2970 = vpack.c.b16 %v2842, %v2826
        %v2971 = vpack.c.b16 %v2843, %v2827
        %v2972 = vpack.c.b16 %v2844, %v2828
        %v2973 = vpack.c.b16 %v2845, %v2829
        %v2974 = vpack.c.b16 %v2846, %v2830
        %v2975 = vpack.c.b16 %v2847, %v2831
        %v2976 = vpack.c.b16 %v2848, %v2832
        %v2977 = vpack.c.b16 %v2849, %v2833
        %v2978 = vpack.c.b16 %v2850, %v2834
        %v2979 = vpack.c.b16 %v2851, %v2835
        %v2980 = vpack.c.b16 %v2852, %v2836
        %3109 = vmatpush.bf16.msra.mxu0 %v2965
        %3110 = vmatpush.bf16.msra.mxu0 %v2949
        %3111 = vmatpush.bf16.msra.mxu0 %v2933
        %3112 = vmatpush.bf16.msra.mxu0 %v2917
        %3113 = vmatpush.bf16.msra.mxu0 %v2901
        %3114 = vmatpush.bf16.msra.mxu0 %v2885
        %3115 = vmatpush.bf16.msra.mxu0 %v2869
        %3116 = vmatpush.bf16.msra.mxu0 %v2853
        %3117 = vmatmul.bf16.gmra.mxu0 %v2467
        %v3118 = vpop.f32.mrf.mxu0
        %v3119 = vadd.f32 0.0, %v3118
        %v3120 = vpop.f32.mrf.mxu0
        %v3121 = vadd.f32 0.0, %v3120
        %3122 = vdwg.mxu0
        %3123 = vmatpush.bf16.msra.mxu0 %v2966
        %3124 = vmatpush.bf16.msra.mxu0 %v2950
        %3125 = vmatpush.bf16.msra.mxu0 %v2934
        %3126 = vmatpush.bf16.msra.mxu0 %v2918
        %3127 = vmatpush.bf16.msra.mxu0 %v2902
        %3128 = vmatpush.bf16.msra.mxu0 %v2886
        %3129 = vmatpush.bf16.msra.mxu0 %v2870
        %3130 = vmatpush.bf16.msra.mxu0 %v2854
        %3131 = vmatmul.bf16.gmra.mxu0 %v2467
        %v3132 = vpop.f32.mrf.mxu0
        %v3133 = vadd.f32 0.0, %v3132
        %v3134 = vpop.f32.mrf.mxu0
        %v3135 = vadd.f32 0.0, %v3134
        %3136 = vdwg.mxu0
        %3137 = vmatpush.bf16.msra.mxu0 %v2967
        %3138 = vmatpush.bf16.msra.mxu0 %v2951
        %3139 = vmatpush.bf16.msra.mxu0 %v2935
        %3140 = vmatpush.bf16.msra.mxu0 %v2919
        %3141 = vmatpush.bf16.msra.mxu0 %v2903
        %3142 = vmatpush.bf16.msra.mxu0 %v2887
        %3143 = vmatpush.bf16.msra.mxu0 %v2871
        %3144 = vmatpush.bf16.msra.mxu0 %v2855
        %3145 = vmatmul.bf16.gmra.mxu0 %v2467
        %v3146 = vpop.f32.mrf.mxu0
        %v3147 = vadd.f32 0.0, %v3146
        %v3148 = vpop.f32.mrf.mxu0
        %v3149 = vadd.f32 0.0, %v3148
        %3150 = vdwg.mxu0
        %3151 = vmatpush.bf16.msra.mxu0 %v2968
        %3152 = vmatpush.bf16.msra.mxu0 %v2952
        %3153 = vmatpush.bf16.msra.mxu0 %v2936
        %3154 = vmatpush.bf16.msra.mxu0 %v2920
        %3155 = vmatpush.bf16.msra.mxu0 %v2904
        %3156 = vmatpush.bf16.msra.mxu0 %v2888
        %3157 = vmatpush.bf16.msra.mxu0 %v2872
        %3158 = vmatpush.bf16.msra.mxu0 %v2856
        %3159 = vmatmul.bf16.gmra.mxu0 %v2467
        %v3160 = vpop.f32.mrf.mxu0
        %v3161 = vadd.f32 0.0, %v3160
        %v3162 = vpop.f32.mrf.mxu0
        %v3163 = vadd.f32 0.0, %v3162
        %3164 = vdwg.mxu0
        %3165 = vmatpush.bf16.msra.mxu0 %v2969
        %3166 = vmatpush.bf16.msra.mxu0 %v2953
        %3167 = vmatpush.bf16.msra.mxu0 %v2937
        %3168 = vmatpush.bf16.msra.mxu0 %v2921
        %3169 = vmatpush.bf16.msra.mxu0 %v2905
        %3170 = vmatpush.bf16.msra.mxu0 %v2889
        %3171 = vmatpush.bf16.msra.mxu0 %v2873
        %3172 = vmatpush.bf16.msra.mxu0 %v2857
        %3173 = vmatmul.bf16.gmra.mxu0 %v2467
        %v3174 = vpop.f32.mrf.mxu0
        %v3175 = vadd.f32 0.0, %v3174
        %v3176 = vpop.f32.mrf.mxu0
        %v3177 = vadd.f32 0.0, %v3176
        %3178 = vdwg.mxu0
        %3179 = vmatpush.bf16.msra.mxu0 %v2970
        %3180 = vmatpush.bf16.msra.mxu0 %v2954
        %3181 = vmatpush.bf16.msra.mxu0 %v2938
        %3182 = vmatpush.bf16.msra.mxu0 %v2922
        %3183 = vmatpush.bf16.msra.mxu0 %v2906
        %3184 = vmatpush.bf16.msra.mxu0 %v2890
        %3185 = vmatpush.bf16.msra.mxu0 %v2874
        %3186 = vmatpush.bf16.msra.mxu0 %v2858
        %3187 = vmatmul.bf16.gmra.mxu0 %v2467
        %v3188 = vpop.f32.mrf.mxu0
        %v3189 = vadd.f32 0.0, %v3188
        %v3190 = vpop.f32.mrf.mxu0
        %v3191 = vadd.f32 0.0, %v3190
        %3192 = vdwg.mxu0
        %3193 = vmatpush.bf16.msra.mxu0 %v2971
        %3194 = vmatpush.bf16.msra.mxu0 %v2955
        %3195 = vmatpush.bf16.msra.mxu0 %v2939
        %3196 = vmatpush.bf16.msra.mxu0 %v2923
        %3197 = vmatpush.bf16.msra.mxu0 %v2907
        %3198 = vmatpush.bf16.msra.mxu0 %v2891
        %3199 = vmatpush.bf16.msra.mxu0 %v2875
        %3200 = vmatpush.bf16.msra.mxu0 %v2859
        %3201 = vmatmul.bf16.gmra.mxu0 %v2467
        %v3202 = vpop.f32.mrf.mxu0
        %v3203 = vadd.f32 0.0, %v3202
        %v3204 = vpop.f32.mrf.mxu0
        %v3205 = vadd.f32 0.0, %v3204
        %3206 = vdwg.mxu0
        %3207 = vmatpush.bf16.msra.mxu0 %v2972
        %3208 = vmatpush.bf16.msra.mxu0 %v2956
        %3209 = vmatpush.bf16.msra.mxu0 %v2940
        %3210 = vmatpush.bf16.msra.mxu0 %v2924
        %3211 = vmatpush.bf16.msra.mxu0 %v2908
        %3212 = vmatpush.bf16.msra.mxu0 %v2892
        %3213 = vmatpush.bf16.msra.mxu0 %v2876
        %3214 = vmatpush.bf16.msra.mxu0 %v2860
        %3215 = vmatmul.bf16.gmra.mxu0 %v2467
        %v3216 = vpop.f32.mrf.mxu0
        %v3217 = vadd.f32 0.0, %v3216
        %v3218 = vpop.f32.mrf.mxu0
        %v3219 = vadd.f32 0.0, %v3218
        %3220 = vdwg.mxu0
        %3221 = vmatpush.bf16.msra.mxu0 %v2973
        %3222 = vmatpush.bf16.msra.mxu0 %v2957
        %3223 = vmatpush.bf16.msra.mxu0 %v2941
        %3224 = vmatpush.bf16.msra.mxu0 %v2925
        %3225 = vmatpush.bf16.msra.mxu0 %v2909
        %3226 = vmatpush.bf16.msra.mxu0 %v2893
        %3227 = vmatpush.bf16.msra.mxu0 %v2877
        %3228 = vmatpush.bf16.msra.mxu0 %v2861
        %3229 = vmatmul.bf16.gmra.mxu0 %v2467
        %v3230 = vpop.f32.mrf.mxu0
        %v3231 = vadd.f32 0.0, %v3230
        %v3232 = vpop.f32.mrf.mxu0
        %v3233 = vadd.f32 0.0, %v3232
        %3234 = vdwg.mxu0
        %3235 = vmatpush.bf16.msra.mxu0 %v2974
        %3236 = vmatpush.bf16.msra.mxu0 %v2958
        %3237 = vmatpush.bf16.msra.mxu0 %v2942
        %3238 = vmatpush.bf16.msra.mxu0 %v2926
        %3239 = vmatpush.bf16.msra.mxu0 %v2910
        %3240 = vmatpush.bf16.msra.mxu0 %v2894
        %3241 = vmatpush.bf16.msra.mxu0 %v2878
        %3242 = vmatpush.bf16.msra.mxu0 %v2862
        %3243 = vmatmul.bf16.gmra.mxu0 %v2467
        %v3244 = vpop.f32.mrf.mxu0
        %v3245 = vadd.f32 0.0, %v3244
        %v3246 = vpop.f32.mrf.mxu0
        %v3247 = vadd.f32 0.0, %v3246
        %3248 = vdwg.mxu0
        %3249 = vmatpush.bf16.msra.mxu0 %v2975
        %3250 = vmatpush.bf16.msra.mxu0 %v2959
        %3251 = vmatpush.bf16.msra.mxu0 %v2943
        %3252 = vmatpush.bf16.msra.mxu0 %v2927
        %3253 = vmatpush.bf16.msra.mxu0 %v2911
        %3254 = vmatpush.bf16.msra.mxu0 %v2895
        %3255 = vmatpush.bf16.msra.mxu0 %v2879
        %3256 = vmatpush.bf16.msra.mxu0 %v2863
        %3257 = vmatmul.bf16.gmra.mxu0 %v2467
        %v3258 = vpop.f32.mrf.mxu0
        %v3259 = vadd.f32 0.0, %v3258
        %v3260 = vpop.f32.mrf.mxu0
        %v3261 = vadd.f32 0.0, %v3260
        %3262 = vdwg.mxu0
        %3263 = vmatpush.bf16.msra.mxu0 %v2976
        %3264 = vmatpush.bf16.msra.mxu0 %v2960
        %3265 = vmatpush.bf16.msra.mxu0 %v2944
        %3266 = vmatpush.bf16.msra.mxu0 %v2928
        %3267 = vmatpush.bf16.msra.mxu0 %v2912
        %3268 = vmatpush.bf16.msra.mxu0 %v2896
        %3269 = vmatpush.bf16.msra.mxu0 %v2880
        %3270 = vmatpush.bf16.msra.mxu0 %v2864
        %3271 = vmatmul.bf16.gmra.mxu0 %v2467
        %v3272 = vpop.f32.mrf.mxu0
        %v3273 = vadd.f32 0.0, %v3272
        %v3274 = vpop.f32.mrf.mxu0
        %v3275 = vadd.f32 0.0, %v3274
        %3276 = vdwg.mxu0
        %3277 = vmatpush.bf16.msra.mxu0 %v2977
        %3278 = vmatpush.bf16.msra.mxu0 %v2961
        %3279 = vmatpush.bf16.msra.mxu0 %v2945
        %3280 = vmatpush.bf16.msra.mxu0 %v2929
        %3281 = vmatpush.bf16.msra.mxu0 %v2913
        %3282 = vmatpush.bf16.msra.mxu0 %v2897
        %3283 = vmatpush.bf16.msra.mxu0 %v2881
        %3284 = vmatpush.bf16.msra.mxu0 %v2865
        %3285 = vmatmul.bf16.gmra.mxu0 %v2467
        %v3286 = vpop.f32.mrf.mxu0
        %v3287 = vadd.f32 0.0, %v3286
        %v3288 = vpop.f32.mrf.mxu0
        %v3289 = vadd.f32 0.0, %v3288
        %3290 = vdwg.mxu0
        %3291 = vmatpush.bf16.msra.mxu0 %v2978
        %3292 = vmatpush.bf16.msra.mxu0 %v2962
        %3293 = vmatpush.bf16.msra.mxu0 %v2946
        %3294 = vmatpush.bf16.msra.mxu0 %v2930
        %3295 = vmatpush.bf16.msra.mxu0 %v2914
        %3296 = vmatpush.bf16.msra.mxu0 %v2898
        %3297 = vmatpush.bf16.msra.mxu0 %v2882
        %3298 = vmatpush.bf16.msra.mxu0 %v2866
        %3299 = vmatmul.bf16.gmra.mxu0 %v2467
        %v3300 = vpop.f32.mrf.mxu0
        %v3301 = vadd.f32 0.0, %v3300
        %v3302 = vpop.f32.mrf.mxu0
        %v3303 = vadd.f32 0.0, %v3302
        %3304 = vdwg.mxu0
        %3305 = vmatpush.bf16.msra.mxu0 %v2979
        %3306 = vmatpush.bf16.msra.mxu0 %v2963
        %3307 = vmatpush.bf16.msra.mxu0 %v2947
        %3308 = vmatpush.bf16.msra.mxu0 %v2931
        %3309 = vmatpush.bf16.msra.mxu0 %v2915
        %3310 = vmatpush.bf16.msra.mxu0 %v2899
        %3311 = vmatpush.bf16.msra.mxu0 %v2883
        %3312 = vmatpush.bf16.msra.mxu0 %v2867
        %3313 = vmatmul.bf16.gmra.mxu0 %v2467
        %v3314 = vpop.f32.mrf.mxu0
        %v3315 = vadd.f32 0.0, %v3314
        %v3316 = vpop.f32.mrf.mxu0
        %v3317 = vadd.f32 0.0, %v3316
        %3318 = vdwg.mxu0
        %3319 = vmatpush.bf16.msra.mxu0 %v2980
        %3320 = vmatpush.bf16.msra.mxu0 %v2964
        %3321 = vmatpush.bf16.msra.mxu0 %v2948
        %3322 = vmatpush.bf16.msra.mxu0 %v2932
        %3323 = vmatpush.bf16.msra.mxu0 %v2916
        %3324 = vmatpush.bf16.msra.mxu0 %v2900
        %3325 = vmatpush.bf16.msra.mxu0 %v2884
        %3326 = vmatpush.bf16.msra.mxu0 %v2868
        %3327 = vmatmul.bf16.gmra.mxu0 %v2467
        %v3328 = vpop.f32.mrf.mxu0
        %v3329 = vadd.f32 0.0, %v3328
        %v3330 = vpop.f32.mrf.mxu0
        %v3331 = vadd.f32 0.0, %v3330
        %3332 = vdwg.mxu0
        %v3333 = vrcp.pop %v3121
        %v3334 = vmul.f32 %v3121, %v3333
        %v3335 = vsub.f32 1.0, %v3334
        %v3336 = vmul.f32 %v3333, %v3335
        %v3337 = vadd.f32 %v3333, %v3336
        %vm3338 = vweird.f32 %v3121
        %vm3339 = vweird.f32 %v3333
        %vm3340 = vmor %vm3338, %vm3339
        %v3341 = vsel %vm3340, %v3333, %v3337
        %v3342 = vand.u32 2147483647, %v3121
        %vm3343 = vcmp.eq.f32.partialorder %v3342, 8.507059e+37
        %v3344 = vand.u32 %v3121, 2147483648
        %v3345 = vor.u32 1.1754944e-38, %v3344
        %v3346 = vsel %vm3343, %v3345, %v3341
        %v3347 = vmul.f32 1.0, %v3346
        %v3348 = vrcp.pop %v3135
        %v3349 = vmul.f32 %v3135, %v3348
        %v3350 = vsub.f32 1.0, %v3349
        %v3351 = vmul.f32 %v3348, %v3350
        %v3352 = vadd.f32 %v3348, %v3351
        %vm3353 = vweird.f32 %v3135
        %vm3354 = vweird.f32 %v3348
        %vm3355 = vmor %vm3353, %vm3354
        %v3356 = vsel %vm3355, %v3348, %v3352
        %v3357 = vand.u32 2147483647, %v3135
        %vm3358 = vcmp.eq.f32.partialorder %v3357, 8.507059e+37
        %v3359 = vand.u32 %v3135, 2147483648
        %v3360 = vor.u32 1.1754944e-38, %v3359
        %v3361 = vsel %vm3358, %v3360, %v3356
        %v3362 = vmul.f32 1.0, %v3361
        %v3363 = vrcp.pop %v3149
        %v3364 = vmul.f32 %v3149, %v3363
        %v3365 = vsub.f32 1.0, %v3364
        %v3366 = vmul.f32 %v3363, %v3365
        %v3367 = vadd.f32 %v3363, %v3366
        %vm3368 = vweird.f32 %v3149
        %vm3369 = vweird.f32 %v3363
        %vm3370 = vmor %vm3368, %vm3369
        %v3371 = vsel %vm3370, %v3363, %v3367
        %v3372 = vand.u32 2147483647, %v3149
        %vm3373 = vcmp.eq.f32.partialorder %v3372, 8.507059e+37
        %v3374 = vand.u32 %v3149, 2147483648
        %v3375 = vor.u32 1.1754944e-38, %v3374
        %v3376 = vsel %vm3373, %v3375, %v3371
        %v3377 = vmul.f32 1.0, %v3376
        %v3378 = vrcp.pop %v3163
        %v3379 = vmul.f32 %v3163, %v3378
        %v3380 = vsub.f32 1.0, %v3379
        %v3381 = vmul.f32 %v3378, %v3380
        %v3382 = vadd.f32 %v3378, %v3381
        %vm3383 = vweird.f32 %v3163
        %vm3384 = vweird.f32 %v3378
        %vm3385 = vmor %vm3383, %vm3384
        %v3386 = vsel %vm3385, %v3378, %v3382
        %v3387 = vand.u32 2147483647, %v3163
        %vm3388 = vcmp.eq.f32.partialorder %v3387, 8.507059e+37
        %v3389 = vand.u32 %v3163, 2147483648
        %v3390 = vor.u32 1.1754944e-38, %v3389
        %v3391 = vsel %vm3388, %v3390, %v3386
        %v3392 = vmul.f32 1.0, %v3391
        %v3393 = vrcp.pop %v3177
        %v3394 = vmul.f32 %v3177, %v3393
        %v3395 = vsub.f32 1.0, %v3394
        %v3396 = vmul.f32 %v3393, %v3395
        %v3397 = vadd.f32 %v3393, %v3396
        %vm3398 = vweird.f32 %v3177
        %vm3399 = vweird.f32 %v3393
        %vm3400 = vmor %vm3398, %vm3399
        %v3401 = vsel %vm3400, %v3393, %v3397
        %v3402 = vand.u32 2147483647, %v3177
        %vm3403 = vcmp.eq.f32.partialorder %v3402, 8.507059e+37
        %v3404 = vand.u32 %v3177, 2147483648
        %v3405 = vor.u32 1.1754944e-38, %v3404
        %v3406 = vsel %vm3403, %v3405, %v3401
        %v3407 = vmul.f32 1.0, %v3406
        %v3408 = vrcp.pop %v3191
        %v3409 = vmul.f32 %v3191, %v3408
        %v3410 = vsub.f32 1.0, %v3409
        %v3411 = vmul.f32 %v3408, %v3410
        %v3412 = vadd.f32 %v3408, %v3411
        %vm3413 = vweird.f32 %v3191
        %vm3414 = vweird.f32 %v3408
        %vm3415 = vmor %vm3413, %vm3414
        %v3416 = vsel %vm3415, %v3408, %v3412
        %v3417 = vand.u32 2147483647, %v3191
        %vm3418 = vcmp.eq.f32.partialorder %v3417, 8.507059e+37
        %v3419 = vand.u32 %v3191, 2147483648
        %v3420 = vor.u32 1.1754944e-38, %v3419
        %v3421 = vsel %vm3418, %v3420, %v3416
        %v3422 = vmul.f32 1.0, %v3421
        %v3423 = vrcp.pop %v3205
        %v3424 = vmul.f32 %v3205, %v3423
        %v3425 = vsub.f32 1.0, %v3424
        %v3426 = vmul.f32 %v3423, %v3425
        %v3427 = vadd.f32 %v3423, %v3426
        %vm3428 = vweird.f32 %v3205
        %vm3429 = vweird.f32 %v3423
        %vm3430 = vmor %vm3428, %vm3429
        %v3431 = vsel %vm3430, %v3423, %v3427
        %v3432 = vand.u32 2147483647, %v3205
        %vm3433 = vcmp.eq.f32.partialorder %v3432, 8.507059e+37
        %v3434 = vand.u32 %v3205, 2147483648
        %v3435 = vor.u32 1.1754944e-38, %v3434
        %v3436 = vsel %vm3433, %v3435, %v3431
        %v3437 = vmul.f32 1.0, %v3436
        %v3438 = vrcp.pop %v3219
        %v3439 = vmul.f32 %v3219, %v3438
        %v3440 = vsub.f32 1.0, %v3439
        %v3441 = vmul.f32 %v3438, %v3440
        %v3442 = vadd.f32 %v3438, %v3441
        %vm3443 = vweird.f32 %v3219
        %vm3444 = vweird.f32 %v3438
        %vm3445 = vmor %vm3443, %vm3444
        %v3446 = vsel %vm3445, %v3438, %v3442
        %v3447 = vand.u32 2147483647, %v3219
        %vm3448 = vcmp.eq.f32.partialorder %v3447, 8.507059e+37
        %v3449 = vand.u32 %v3219, 2147483648
        %v3450 = vor.u32 1.1754944e-38, %v3449
        %v3451 = vsel %vm3448, %v3450, %v3446
        %v3452 = vmul.f32 1.0, %v3451
        %v3453 = vperm.slane %v3347, 0
        %v3454 = vperm.slane %v3362, 0
        %v3455 = vperm.slane %v3377, 0
        %v3456 = vperm.slane %v3392, 0
        %v3457 = vperm.slane %v3407, 0
        %v3458 = vperm.slane %v3422, 0
        %v3459 = vperm.slane %v3437, 0
        %v3460 = vperm.slane %v3452, 0
        %v3461 = vmul.f32 %v3119, %v3453
        %v3462 = vmul.f32 %v3133, %v3454
        %v3463 = vmul.f32 %v3147, %v3455
        %v3464 = vmul.f32 %v3161, %v3456
        %v3465 = vmul.f32 %v3175, %v3457
        %v3466 = vmul.f32 %v3189, %v3458
        %v3467 = vmul.f32 %v3203, %v3459
        %v3468 = vmul.f32 %v3217, %v3460
        %v3473 = vperm.slane %v621, 0
        %v3474 = vperm.slane %v621, 4
        %v3475 = vperm.slane %v622, 0
        %v3476 = vperm.slane %v622, 4
        %v3477 = vperm.slane %v623, 0
        %v3478 = vperm.slane %v623, 4
        %v3479 = vperm.slane %v624, 0
        %v3480 = vperm.slane %v624, 4
        %v3489 = vperm.slane %v3473, 0
        %v3490 = vperm.slane %v3474, 0
        %v3491 = vperm.slane %v3475, 0
        %v3492 = vperm.slane %v3476, 0
        %v3493 = vperm.slane %v3477, 0
        %v3494 = vperm.slane %v3478, 0
        %v3495 = vperm.slane %v3479, 0
        %v3496 = vperm.slane %v3480, 0
        %v3497 = vmul.f32 %v3489, %v3119
        %v3498 = vmul.f32 %v3490, %v3133
        %v3499 = vmul.f32 %v3491, %v3147
        %v3500 = vmul.f32 %v3492, %v3161
        %v3501 = vmul.f32 %v3493, %v3175
        %v3502 = vmul.f32 %v3494, %v3189
        %v3503 = vmul.f32 %v3495, %v3203
        %v3504 = vmul.f32 %v3496, %v3217
        %v3509 = vperm.slane %v641, 0
        %v3510 = vperm.slane %v641, 4
        %v3511 = vperm.slane %v642, 0
        %v3512 = vperm.slane %v642, 4
        %v3513 = vperm.slane %v643, 0
        %v3514 = vperm.slane %v643, 4
        %v3515 = vperm.slane %v644, 0
        %v3516 = vperm.slane %v644, 4
        %v3525 = vperm.slane %v3509, 0
        %v3526 = vperm.slane %v3510, 0
        %v3527 = vperm.slane %v3511, 0
        %v3528 = vperm.slane %v3512, 0
        %v3529 = vperm.slane %v3513, 0
        %v3530 = vperm.slane %v3514, 0
        %v3531 = vperm.slane %v3515, 0
        %v3532 = vperm.slane %v3516, 0
        %v3533 = vmul.f32 %v3525, %v3231
        %v3534 = vmul.f32 %v3526, %v3245
        %v3535 = vmul.f32 %v3527, %v3259
        %v3536 = vmul.f32 %v3528, %v3273
        %v3537 = vmul.f32 %v3529, %v3287
        %v3538 = vmul.f32 %v3530, %v3301
        %v3539 = vmul.f32 %v3531, %v3315
        %v3540 = vmul.f32 %v3532, %v3329
        %v3541 = vadd.f32 %v3497, %v3533
        %v3542 = vadd.f32 %v3498, %v3534
        %v3543 = vadd.f32 %v3499, %v3535
        %v3544 = vadd.f32 %v3500, %v3536
        %v3545 = vadd.f32 %v3501, %v3537
        %v3546 = vadd.f32 %v3502, %v3538
        %v3547 = vadd.f32 %v3503, %v3539
        %v3548 = vadd.f32 %v3504, %v3540
        %v3557 = vrot.slane %v3135, 4
        %v3558 = vrot.slane %v3163, 4
        %v3559 = vrot.slane %v3191, 4
        %v3560 = vrot.slane %v3219, 4
        %v3561 = vsel %vm891, %v3121, %v3557
        %v3562 = vsel %vm891, %v3149, %v3558
        %v3563 = vsel %vm891, %v3177, %v3559
        %v3564 = vsel %vm891, %v3205, %v3560
        %v3569 = vmul.f32 %v621, %v3561
        %v3570 = vmul.f32 %v622, %v3562
        %v3571 = vmul.f32 %v623, %v3563
        %v3572 = vmul.f32 %v624, %v3564
        %v3581 = vrot.slane %v3247, 4
        %v3582 = vrot.slane %v3275, 4
        %v3583 = vrot.slane %v3303, 4
        %v3584 = vrot.slane %v3331, 4
        %v3585 = vsel %vm891, %v3233, %v3581
        %v3586 = vsel %vm891, %v3261, %v3582
        %v3587 = vsel %vm891, %v3289, %v3583
        %v3588 = vsel %vm891, %v3317, %v3584
        %v3593 = vmul.f32 %v641, %v3585
        %v3594 = vmul.f32 %v642, %v3586
        %v3595 = vmul.f32 %v643, %v3587
        %v3596 = vmul.f32 %v644, %v3588
        %v3597 = vadd.f32 %v3569, %v3593
        %v3598 = vadd.f32 %v3570, %v3594
        %v3599 = vadd.f32 %v3571, %v3595
        %v3600 = vadd.f32 %v3572, %v3596
        %v3601 = vrcp.pop %v3597
        %v3602 = vmul.f32 %v3597, %v3601
        %v3603 = vsub.f32 1.0, %v3602
        %v3604 = vmul.f32 %v3601, %v3603
        %v3605 = vadd.f32 %v3601, %v3604
        %vm3606 = vweird.f32 %v3597
        %vm3607 = vweird.f32 %v3601
        %vm3608 = vmor %vm3606, %vm3607
        %v3609 = vsel %vm3608, %v3601, %v3605
        %v3610 = vand.u32 2147483647, %v3597
        %vm3611 = vcmp.eq.f32.partialorder %v3610, 8.507059e+37
        %v3612 = vand.u32 %v3597, 2147483648
        %v3613 = vor.u32 1.1754944e-38, %v3612
        %v3614 = vsel %vm3611, %v3613, %v3609
        %v3615 = vmul.f32 1.0, %v3614
        %v3616 = vrcp.pop %v3598
        %v3617 = vmul.f32 %v3598, %v3616
        %v3618 = vsub.f32 1.0, %v3617
        %v3619 = vmul.f32 %v3616, %v3618
        %v3620 = vadd.f32 %v3616, %v3619
        %vm3621 = vweird.f32 %v3598
        %vm3622 = vweird.f32 %v3616
        %vm3623 = vmor %vm3621, %vm3622
        %v3624 = vsel %vm3623, %v3616, %v3620
        %v3625 = vand.u32 2147483647, %v3598
        %vm3626 = vcmp.eq.f32.partialorder %v3625, 8.507059e+37
        %v3627 = vand.u32 %v3598, 2147483648
        %v3628 = vor.u32 1.1754944e-38, %v3627
        %v3629 = vsel %vm3626, %v3628, %v3624
        %v3630 = vmul.f32 1.0, %v3629
        %v3631 = vrcp.pop %v3599
        %v3632 = vmul.f32 %v3599, %v3631
        %v3633 = vsub.f32 1.0, %v3632
        %v3634 = vmul.f32 %v3631, %v3633
        %v3635 = vadd.f32 %v3631, %v3634
        %vm3636 = vweird.f32 %v3599
        %vm3637 = vweird.f32 %v3631
        %vm3638 = vmor %vm3636, %vm3637
        %v3639 = vsel %vm3638, %v3631, %v3635
        %v3640 = vand.u32 2147483647, %v3599
        %vm3641 = vcmp.eq.f32.partialorder %v3640, 8.507059e+37
        %v3642 = vand.u32 %v3599, 2147483648
        %v3643 = vor.u32 1.1754944e-38, %v3642
        %v3644 = vsel %vm3641, %v3643, %v3639
        %v3645 = vmul.f32 1.0, %v3644
        %v3646 = vrcp.pop %v3600
        %v3647 = vmul.f32 %v3600, %v3646
        %v3648 = vsub.f32 1.0, %v3647
        %v3649 = vmul.f32 %v3646, %v3648
        %v3650 = vadd.f32 %v3646, %v3649
        %vm3651 = vweird.f32 %v3600
        %vm3652 = vweird.f32 %v3646
        %vm3653 = vmor %vm3651, %vm3652
        %v3654 = vsel %vm3653, %v3646, %v3650
        %v3655 = vand.u32 2147483647, %v3600
        %vm3656 = vcmp.eq.f32.partialorder %v3655, 8.507059e+37
        %v3657 = vand.u32 %v3600, 2147483648
        %v3658 = vor.u32 1.1754944e-38, %v3657
        %v3659 = vsel %vm3656, %v3658, %v3654
        %v3660 = vmul.f32 1.0, %v3659
        %v3665 = vperm.slane %v3615, 0
        %v3666 = vperm.slane %v3615, 4
        %v3667 = vperm.slane %v3630, 0
        %v3668 = vperm.slane %v3630, 4
        %v3669 = vperm.slane %v3645, 0
        %v3670 = vperm.slane %v3645, 4
        %v3671 = vperm.slane %v3660, 0
        %v3672 = vperm.slane %v3660, 4
        %v3681 = vperm.slane %v3665, 0
        %v3682 = vperm.slane %v3666, 0
        %v3683 = vperm.slane %v3667, 0
        %v3684 = vperm.slane %v3668, 0
        %v3685 = vperm.slane %v3669, 0
        %v3686 = vperm.slane %v3670, 0
        %v3687 = vperm.slane %v3671, 0
        %v3688 = vperm.slane %v3672, 0
        %v3689 = vmul.f32 %v3541, %v3681
        %v3690 = vmul.f32 %v3542, %v3682
        %v3691 = vmul.f32 %v3543, %v3683
        %v3692 = vmul.f32 %v3544, %v3684
        %v3693 = vmul.f32 %v3545, %v3685
        %v3694 = vmul.f32 %v3546, %v3686
        %v3695 = vmul.f32 %v3547, %v3687
        %v3696 = vmul.f32 %v3548, %v3688
        %vm3697 = vweird.f32 %v3461
        %vm3698 = vweird.f32 %v3462
        %vm3699 = vweird.f32 %v3463
        %vm3700 = vweird.f32 %v3464
        %vm3701 = vweird.f32 %v3465
        %vm3702 = vweird.f32 %v3466
        %vm3703 = vweird.f32 %v3467
        %vm3704 = vweird.f32 %v3468
        %vm3705 = vmxor %vm3697, 1
        %vm3706 = vmxor %vm3698, 1
        %vm3707 = vmxor %vm3699, 1
        %vm3708 = vmxor %vm3700, 1
        %vm3709 = vmxor %vm3701, 1
        %vm3710 = vmxor %vm3702, 1
        %vm3711 = vmxor %vm3703, 1
        %vm3712 = vmxor %vm3704, 1
        %v3713 = vsel %vm597, 1, 0
        %v3714 = vsel %vm598, 1, 0
        %v3715 = vsel %vm599, 1, 0
        %v3716 = vsel %vm600, 1, 0
        %v3717 = vperm.slane %v3713, 1
        %v3718 = vperm.slane %v3713, 5
        %v3719 = vperm.slane %v3714, 1
        %v3720 = vperm.slane %v3714, 5
        %v3721 = vperm.slane %v3715, 1
        %v3722 = vperm.slane %v3715, 5
        %v3723 = vperm.slane %v3716, 1
        %v3724 = vperm.slane %v3716, 5
        %v3725 = vperm.slane %v3717, 1
        %v3726 = vperm.slane %v3718, 1
        %v3727 = vperm.slane %v3719, 1
        %v3728 = vperm.slane %v3720, 1
        %v3729 = vperm.slane %v3721, 1
        %v3730 = vperm.slane %v3722, 1
        %v3731 = vperm.slane %v3723, 1
        %v3732 = vperm.slane %v3724, 1
        %vm3733 = vcmp.eq.s32.totalorder %v3725, 1
        %vm3734 = vcmp.eq.s32.totalorder %v3726, 1
        %vm3735 = vcmp.eq.s32.totalorder %v3727, 1
        %vm3736 = vcmp.eq.s32.totalorder %v3728, 1
        %vm3737 = vcmp.eq.s32.totalorder %v3729, 1
        %vm3738 = vcmp.eq.s32.totalorder %v3730, 1
        %vm3739 = vcmp.eq.s32.totalorder %v3731, 1
        %vm3740 = vcmp.eq.s32.totalorder %v3732, 1
        %vm3741 = vmand %vm3705, %vm3733
        %vm3742 = vmand %vm3706, %vm3734
        %vm3743 = vmand %vm3707, %vm3735
        %vm3744 = vmand %vm3708, %vm3736
        %vm3745 = vmand %vm3709, %vm3737
        %vm3746 = vmand %vm3710, %vm3738
        %vm3747 = vmand %vm3711, %vm3739
        %vm3748 = vmand %vm3712, %vm3740
        %v3749 = vsel %vm3741, %v3461, 0.0
        %v3750 = vsel %vm3742, %v3462, 0.0
        %v3751 = vsel %vm3743, %v3463, 0.0
        %v3752 = vsel %vm3744, %v3464, 0.0
        %v3753 = vsel %vm3745, %v3465, 0.0
        %v3754 = vsel %vm3746, %v3466, 0.0
        %v3755 = vsel %vm3747, %v3467, 0.0
        %v3756 = vsel %vm3748, %v3468, 0.0
        %vm3757 = vweird.f32 %v3689
        %vm3758 = vweird.f32 %v3690
        %vm3759 = vweird.f32 %v3691
        %vm3760 = vweird.f32 %v3692
        %vm3761 = vweird.f32 %v3693
        %vm3762 = vweird.f32 %v3694
        %vm3763 = vweird.f32 %v3695
        %vm3764 = vweird.f32 %v3696
        %vm3765 = vmxor %vm3757, 1
        %vm3766 = vmxor %vm3758, 1
        %vm3767 = vmxor %vm3759, 1
        %vm3768 = vmxor %vm3760, 1
        %vm3769 = vmxor %vm3761, 1
        %vm3770 = vmxor %vm3762, 1
        %vm3771 = vmxor %vm3763, 1
        %vm3772 = vmxor %vm3764, 1
        %vm3773 = vmand %vm3765, %vm3733
        %vm3774 = vmand %vm3766, %vm3734
        %vm3775 = vmand %vm3767, %vm3735
        %vm3776 = vmand %vm3768, %vm3736
        %vm3777 = vmand %vm3769, %vm3737
        %vm3778 = vmand %vm3770, %vm3738
        %vm3779 = vmand %vm3771, %vm3739
        %vm3780 = vmand %vm3772, %vm3740
        %v3781 = vsel %vm3773, %v3689, 0.0
        %v3782 = vsel %vm3774, %v3690, 0.0
        %v3783 = vsel %vm3775, %v3691, 0.0
        %v3784 = vsel %vm3776, %v3692, 0.0
        %v3785 = vsel %vm3777, %v3693, 0.0
        %v3786 = vsel %vm3778, %v3694, 0.0
        %v3787 = vsel %vm3779, %v3695, 0.0
        %v3788 = vsel %vm3780, %v3696, 0.0
        %v3789 = vperm.slane %v181, 1
        %v3790 = vperm.slane %v181, 5
        %v3791 = vperm.slane %v182, 1
        %v3792 = vperm.slane %v182, 5
        %v3793 = vperm.slane %v183, 1
        %v3794 = vperm.slane %v183, 5
        %v3795 = vperm.slane %v184, 1
        %v3796 = vperm.slane %v184, 5
        %v3805 = vperm.slane %v3789, 1
        %v3806 = vperm.slane %v3790, 1
        %v3807 = vperm.slane %v3791, 1
        %v3808 = vperm.slane %v3792, 1
        %v3809 = vperm.slane %v3793, 1
        %v3810 = vperm.slane %v3794, 1
        %v3811 = vperm.slane %v3795, 1
        %v3812 = vperm.slane %v3796, 1
        %v3813 = vmul.f32 %v3805, %v3781
        %v3814 = vmul.f32 %v3806, %v3782
        %v3815 = vmul.f32 %v3807, %v3783
        %v3816 = vmul.f32 %v3808, %v3784
        %v3817 = vmul.f32 %v3809, %v3785
        %v3818 = vmul.f32 %v3810, %v3786
        %v3819 = vmul.f32 %v3811, %v3787
        %v3820 = vmul.f32 %v3812, %v3788
        %v3821 = vperm.slane %v181, 0
        %v3822 = vperm.slane %v181, 4
        %v3823 = vperm.slane %v182, 0
        %v3824 = vperm.slane %v182, 4
        %v3825 = vperm.slane %v183, 0
        %v3826 = vperm.slane %v183, 4
        %v3827 = vperm.slane %v184, 0
        %v3828 = vperm.slane %v184, 4
        %v3837 = vperm.slane %v3821, 0
        %v3838 = vperm.slane %v3822, 0
        %v3839 = vperm.slane %v3823, 0
        %v3840 = vperm.slane %v3824, 0
        %v3841 = vperm.slane %v3825, 0
        %v3842 = vperm.slane %v3826, 0
        %v3843 = vperm.slane %v3827, 0
        %v3844 = vperm.slane %v3828, 0
        %v3845 = vmul.f32 %v3837, %v3749
        %v3846 = vmul.f32 %v3838, %v3750
        %v3847 = vmul.f32 %v3839, %v3751
        %v3848 = vmul.f32 %v3840, %v3752
        %v3849 = vmul.f32 %v3841, %v3753
        %v3850 = vmul.f32 %v3842, %v3754
        %v3851 = vmul.f32 %v3843, %v3755
        %v3852 = vmul.f32 %v3844, %v3756
        %v3853 = vadd.f32 %v3813, %v3845
        %v3854 = vadd.f32 %v3814, %v3846
        %v3855 = vadd.f32 %v3815, %v3847
        %v3856 = vadd.f32 %v3816, %v3848
        %v3857 = vadd.f32 %v3817, %v3849
        %v3858 = vadd.f32 %v3818, %v3850
        %v3859 = vadd.f32 %v3819, %v3851
        %v3860 = vadd.f32 %v3820, %v3852
        %v3861 = vmul.f32 %v3853, 4.3
        %v3862 = vmul.f32 %v3854, 4.3
        %v3863 = vmul.f32 %v3855, 4.3
        %v3864 = vmul.f32 %v3856, 4.3
        %v3865 = vmul.f32 %v3857, 4.3
        %v3866 = vmul.f32 %v3858, 4.3
        %v3867 = vmul.f32 %v3859, 4.3
        %v3868 = vmul.f32 %v3860, 4.3
        %v3869 = vadd.f32 %v3861, 1.0
        %v3870 = vadd.f32 %v3862, 1.0
        %v3871 = vadd.f32 %v3863, 1.0
        %v3872 = vadd.f32 %v3864, 1.0
        %v3873 = vadd.f32 %v3865, 1.0
        %v3874 = vadd.f32 %v3866, 1.0
        %v3875 = vadd.f32 %v3867, 1.0
        %v3876 = vadd.f32 %v3868, 1.0
        %v3877 = vmul.f32 %v3869, -0.00487
        %v3878 = vmul.f32 %v3870, -0.00487
        %v3879 = vmul.f32 %v3871, -0.00487
        %v3880 = vmul.f32 %v3872, -0.00487
        %v3881 = vmul.f32 %v3873, -0.00487
        %v3882 = vmul.f32 %v3874, -0.00487
        %v3883 = vmul.f32 %v3875, -0.00487
        %v3884 = vmul.f32 %v3876, -0.00487
        %v3885 = vmul.f32 %v3877, 1.442695
        %v3886 = vpow.pop %v3885
        %v3887 = vmul.f32 %v3878, 1.442695
        %v3888 = vpow.pop %v3887
        %v3889 = vmul.f32 %v3879, 1.442695
        %v3890 = vpow.pop %v3889
        %v3891 = vmul.f32 %v3880, 1.442695
        %v3892 = vpow.pop %v3891
        %v3893 = vmul.f32 %v3881, 1.442695
        %v3894 = vpow.pop %v3893
        %v3895 = vmul.f32 %v3882, 1.442695
        %v3896 = vpow.pop %v3895
        %v3897 = vmul.f32 %v3883, 1.442695
        %v3898 = vpow.pop %v3897
        %v3899 = vmul.f32 %v3884, 1.442695
        %v3900 = vpow.pop %v3899
        %v3901 = vsub.f32 1.0, %v3886
        %v3902 = vsub.f32 1.0, %v3888
        %v3903 = vsub.f32 1.0, %v3890
        %v3904 = vsub.f32 1.0, %v3892
        %v3905 = vsub.f32 1.0, %v3894
        %v3906 = vsub.f32 1.0, %v3896
        %v3907 = vsub.f32 1.0, %v3898
        %v3908 = vsub.f32 1.0, %v3900
        %v3909 = vmul.f32 %v3901, 411.1968
        %v3910 = vmul.f32 %v3902, 411.1968
        %v3911 = vmul.f32 %v3903, 411.1968
        %v3912 = vmul.f32 %v3904, 411.1968
        %v3913 = vmul.f32 %v3905, 411.1968
        %v3914 = vmul.f32 %v3906, 411.1968
        %v3915 = vmul.f32 %v3907, 411.1968
        %v3916 = vmul.f32 %v3908, 411.1968
        %v3917 = vmul.f32 %v3886, 0.9848077
        %v3918 = vmul.f32 %v3888, 0.9848077
        %v3919 = vmul.f32 %v3890, 0.9848077
        %v3920 = vmul.f32 %v3892, 0.9848077
        %v3921 = vmul.f32 %v3894, 0.9848077
        %v3922 = vmul.f32 %v3896, 0.9848077
        %v3923 = vmul.f32 %v3898, 0.9848077
        %v3924 = vmul.f32 %v3900, 0.9848077
        %v3925 = vsub.f32 1.0, %v3917
        %v3926 = vsub.f32 1.0, %v3918
        %v3927 = vsub.f32 1.0, %v3919
        %v3928 = vsub.f32 1.0, %v3920
        %v3929 = vsub.f32 1.0, %v3921
        %v3930 = vsub.f32 1.0, %v3922
        %v3931 = vsub.f32 1.0, %v3923
        %v3932 = vsub.f32 1.0, %v3924
        %v3933 = vrcp.pop %v3925
        %v3934 = vmul.f32 %v3925, %v3933
        %v3935 = vsub.f32 1.0, %v3934
        %v3936 = vmul.f32 %v3933, %v3935
        %v3937 = vadd.f32 %v3933, %v3936
        %vm3938 = vweird.f32 %v3925
        %vm3939 = vweird.f32 %v3933
        %vm3940 = vmor %vm3938, %vm3939
        %v3941 = vsel %vm3940, %v3933, %v3937
        %v3942 = vand.u32 2147483647, %v3925
        %vm3943 = vcmp.eq.f32.partialorder %v3942, 8.507059e+37
        %v3944 = vand.u32 %v3925, 2147483648
        %v3945 = vor.u32 1.1754944e-38, %v3944
        %v3946 = vsel %vm3943, %v3945, %v3941
        %v3947 = vmul.f32 %v3909, %v3946
        %v3948 = vrcp.pop %v3926
        %v3949 = vmul.f32 %v3926, %v3948
        %v3950 = vsub.f32 1.0, %v3949
        %v3951 = vmul.f32 %v3948, %v3950
        %v3952 = vadd.f32 %v3948, %v3951
        %vm3953 = vweird.f32 %v3926
        %vm3954 = vweird.f32 %v3948
        %vm3955 = vmor %vm3953, %vm3954
        %v3956 = vsel %vm3955, %v3948, %v3952
        %v3957 = vand.u32 2147483647, %v3926
        %vm3958 = vcmp.eq.f32.partialorder %v3957, 8.507059e+37
        %v3959 = vand.u32 %v3926, 2147483648
        %v3960 = vor.u32 1.1754944e-38, %v3959
        %v3961 = vsel %vm3958, %v3960, %v3956
        %v3962 = vmul.f32 %v3910, %v3961
        %v3963 = vrcp.pop %v3927
        %v3964 = vmul.f32 %v3927, %v3963
        %v3965 = vsub.f32 1.0, %v3964
        %v3966 = vmul.f32 %v3963, %v3965
        %v3967 = vadd.f32 %v3963, %v3966
        %vm3968 = vweird.f32 %v3927
        %vm3969 = vweird.f32 %v3963
        %vm3970 = vmor %vm3968, %vm3969
        %v3971 = vsel %vm3970, %v3963, %v3967
        %v3972 = vand.u32 2147483647, %v3927
        %vm3973 = vcmp.eq.f32.partialorder %v3972, 8.507059e+37
        %v3974 = vand.u32 %v3927, 2147483648
        %v3975 = vor.u32 1.1754944e-38, %v3974
        %v3976 = vsel %vm3973, %v3975, %v3971
        %v3977 = vmul.f32 %v3911, %v3976
        %v3978 = vrcp.pop %v3928
        %v3979 = vmul.f32 %v3928, %v3978
        %v3980 = vsub.f32 1.0, %v3979
        %v3981 = vmul.f32 %v3978, %v3980
        %v3982 = vadd.f32 %v3978, %v3981
        %vm3983 = vweird.f32 %v3928
        %vm3984 = vweird.f32 %v3978
        %vm3985 = vmor %vm3983, %vm3984
        %v3986 = vsel %vm3985, %v3978, %v3982
        %v3987 = vand.u32 2147483647, %v3928
        %vm3988 = vcmp.eq.f32.partialorder %v3987, 8.507059e+37
        %v3989 = vand.u32 %v3928, 2147483648
        %v3990 = vor.u32 1.1754944e-38, %v3989
        %v3991 = vsel %vm3988, %v3990, %v3986
        %v3992 = vmul.f32 %v3912, %v3991
        %v3993 = vrcp.pop %v3929
        %v3994 = vmul.f32 %v3929, %v3993
        %v3995 = vsub.f32 1.0, %v3994
        %v3996 = vmul.f32 %v3993, %v3995
        %v3997 = vadd.f32 %v3993, %v3996
        %vm3998 = vweird.f32 %v3929
        %vm3999 = vweird.f32 %v3993
        %vm4000 = vmor %vm3998, %vm3999
        %v4001 = vsel %vm4000, %v3993, %v3997
        %v4002 = vand.u32 2147483647, %v3929
        %vm4003 = vcmp.eq.f32.partialorder %v4002, 8.507059e+37
        %v4004 = vand.u32 %v3929, 2147483648
        %v4005 = vor.u32 1.1754944e-38, %v4004
        %v4006 = vsel %vm4003, %v4005, %v4001
        %v4007 = vmul.f32 %v3913, %v4006
        %v4008 = vrcp.pop %v3930
        %v4009 = vmul.f32 %v3930, %v4008
        %v4010 = vsub.f32 1.0, %v4009
        %v4011 = vmul.f32 %v4008, %v4010
        %v4012 = vadd.f32 %v4008, %v4011
        %vm4013 = vweird.f32 %v3930
        %vm4014 = vweird.f32 %v4008
        %vm4015 = vmor %vm4013, %vm4014
        %v4016 = vsel %vm4015, %v4008, %v4012
        %v4017 = vand.u32 2147483647, %v3930
        %vm4018 = vcmp.eq.f32.partialorder %v4017, 8.507059e+37
        %v4019 = vand.u32 %v3930, 2147483648
        %v4020 = vor.u32 1.1754944e-38, %v4019
        %v4021 = vsel %vm4018, %v4020, %v4016
        %v4022 = vmul.f32 %v3914, %v4021
        %v4023 = vrcp.pop %v3931
        %v4024 = vmul.f32 %v3931, %v4023
        %v4025 = vsub.f32 1.0, %v4024
        %v4026 = vmul.f32 %v4023, %v4025
        %v4027 = vadd.f32 %v4023, %v4026
        %vm4028 = vweird.f32 %v3931
        %vm4029 = vweird.f32 %v4023
        %vm4030 = vmor %vm4028, %vm4029
        %v4031 = vsel %vm4030, %v4023, %v4027
        %v4032 = vand.u32 2147483647, %v3931
        %vm4033 = vcmp.eq.f32.partialorder %v4032, 8.507059e+37
        %v4034 = vand.u32 %v3931, 2147483648
        %v4035 = vor.u32 1.1754944e-38, %v4034
        %v4036 = vsel %vm4033, %v4035, %v4031
        %v4037 = vmul.f32 %v3915, %v4036
        %v4038 = vrcp.pop %v3932
        %v4039 = vmul.f32 %v3932, %v4038
        %v4040 = vsub.f32 1.0, %v4039
        %v4041 = vmul.f32 %v4038, %v4040
        %v4042 = vadd.f32 %v4038, %v4041
        %vm4043 = vweird.f32 %v3932
        %vm4044 = vweird.f32 %v4038
        %vm4045 = vmor %vm4043, %vm4044
        %v4046 = vsel %vm4045, %v4038, %v4042
        %v4047 = vand.u32 2147483647, %v3932
        %vm4048 = vcmp.eq.f32.partialorder %v4047, 8.507059e+37
        %v4049 = vand.u32 %v3932, 2147483648
        %v4050 = vor.u32 1.1754944e-38, %v4049
        %v4051 = vsel %vm4048, %v4050, %v4046
        %v4052 = vmul.f32 %v3916, %v4051
        %v4053 = vadd.f32 %v3947, 1.4210855e-14
        %v4054 = vadd.f32 %v3962, 1.4210855e-14
        %v4055 = vadd.f32 %v3977, 1.4210855e-14
        %v4056 = vadd.f32 %v3992, 1.4210855e-14
        %v4057 = vadd.f32 %v4007, 1.4210855e-14
        %v4058 = vadd.f32 %v4022, 1.4210855e-14
        %v4059 = vadd.f32 %v4037, 1.4210855e-14
        %v4060 = vadd.f32 %v4052, 1.4210855e-14
        %4061 = vst [vmem:[%s178] sm:$0xff] %v4053
        %4062 = vst [vmem:[%s178 + $0x8] sm:$0xff] %v4054
        %4063 = vst [vmem:[%s178 + $0x10] sm:$0xff] %v4055
        %4064 = vst [vmem:[%s178 + $0x18] sm:$0xff] %v4056
        %4065 = vst [vmem:[%s178 + $0x20] sm:$0xff] %v4057
        %4066 = vst [vmem:[%s178 + $0x28] sm:$0xff] %v4058
        %4067 = vst [vmem:[%s178 + $0x30] sm:$0xff] %v4059
        %4068 = vst [vmem:[%s178 + $0x38] sm:$0xff] %v4060
        %s4069 = sand.u32 %s75, 1
        %s4070 = scalar_lea.sflag [#allocation5], %s4069
        %s4071 = sand.u32 %s75, 1
        %s4072 = smul.addr %s4071, 64
        %s4073 = scalar_lea.vmem [#allocation8], %s4072
        // Predicated region
        $region37: #{tpu_custom_call.1} parent=27 // pred_check
          %p4074 = pneg %p85
        $region38: #{tpu_custom_call.1} parent=27 // pred_check_branch
          %4076 = sbr.rel (%p4074) target = $region40
        $region39: #{tpu_custom_call.1} parent=27 // pred_region
          %s4077 = smul.u32 8, %s20
          %4079 = vsyncadd %s4070, 0
          %s4080 = smul.addr %s4077, 8
          %s4081 = scalar_lea.hbm %s2, %s4080
          %s4083 = sshll.u32 %s4073, 4
          %s4084 = int_to_ptr.vmem [resolvable:$true] %s4083
          %s4085 = sshll.u32 %s4081, 4
          %s4086 = int_to_ptr.hbm [resolvable:$true] %s4085
          %4088 = dma.vmem_to_hbm [thread:$0]  %s4084, 1024, %s4086, %s4070
        $region40: #{tpu_custom_call.1} parent=27 // pred_fallthru
          _
      $region28: #{tpu_custom_call.1} parent=5 // pred_fallthru
        _
      %p4089 = scmp.le.s32.totalorder 2, %s15
      // Predicated region
      $region41: #{tpu_custom_call.1} parent=5 // pred_check
        %p4090 = pneg %p4089
      $region42: #{tpu_custom_call.1} parent=5 // pred_check_branch
        %4092 = sbr.rel (%p4090) target = $region44
      $region43: #{tpu_custom_call.1} parent=5 // pred_region
        %s4093 = ssub.s32 %s15, 2
        // Predicated region
        $region45: #{tpu_custom_call.1} parent=43 // pred_check
          %p4094 = pneg %p91
        $region46: #{tpu_custom_call.1} parent=43 // pred_check_branch
          %4096 = sbr.rel (%p4094) target = $region48
        $region47: #{tpu_custom_call.1} parent=43 // pred_region
          %s4097 = sand.u32 %s76, 1
          %s4098 = scalar_lea.sflag [#allocation5], %s4097
          %s4099 = sand.u32 %s76, 1
          %s4100 = smul.addr %s4099, 64
          %s4101 = scalar_lea.vmem [#allocation8], %s4100
          %4103 = dma.done %s4098, 1024
        $region48: #{tpu_custom_call.1} parent=43 // pred_fallthru
          _
      $region44: #{tpu_custom_call.1} parent=5 // pred_fallthru
        _
    $region6: #{tpu_custom_call.1} parent=1 // loop_footer
      %s19 = sadd.s32 1, %s15
    $region7: #{tpu_custom_call.1} parent=1 // loop_footer_branch
      %14 = sbr.rel target = $region3
    $region8: #{tpu_custom_call.1} parent=1 // loop_exit
      _
    %4104 = vsyncpa [#allocation4], 1
    %s4105 = scalar_lea.sflag [#allocation4], 1
    %4106 = vsyncpa %s4105, 1
    %4107 = vsyncpa [#allocation7], 1
    %4108 = vsyncpa [#allocation5], 1
    %s4109 = scalar_lea.sflag [#allocation5], 1
    %4110 = vsyncpa %s4109, 1

</llo_original>
